<compile_context>
chip_gen: v7x
topology: tpu7x:2x2x1
jax: 0.10.0
libtpu: 0.0.40
codegen_flags: <defaults>
</compile_context>

<pallas_src>
import functools

import jax
import jax.numpy as jnp
from jax import lax
from jax.experimental import pallas as pl
from jax.experimental.pallas import tpu as pltpu


# ----------------------------------------------------------------------------
# Pallas kernel: one tile of locations (shape (S, 128)), all gt boxes, loop
# over the (small, static) batch.
# ----------------------------------------------------------------------------
def _fcos_loss_kernel(bbox_ref, loc_ref, cls_ref, rc_ref, out_ref, *,
                      B, M, C, accumulate):
    alpha = 0.25            # focal-loss alpha; gamma = 2 hard-coded as squares
    BIG = 9999999.0
    eps_log = 1e-10
    eps_div = 1e-9

    S = loc_ref.shape[1]
    L = loc_ref.shape[2]

    if accumulate:
        @pl.when(pl.program_id(0) == 0)
        def _zero():
            out_ref[...] = jnp.zeros_like(out_ref)

    loc = loc_ref[...]                 # (6, S, L) f32: cx, cy, lo, hi, rad, valid
    cx, cy = loc[0], loc[1]
    lim_lo, lim_hi = loc[2], loc[3]
    radius, validf = loc[4], loc[5]
    valid_b = validf > 0.0

    # B is small and static -> full Python unroll over batch; every per-batch
    # intermediate below is a fully sublane-occupied (S, 128) slab.
    for b in range(B):
        cls_b = cls_ref[b].astype(jnp.float32)     # (C, S, L)
        rc_b = rc_ref[b].astype(jnp.float32)       # (5, S, L): l, t, r, b, cnt
        p_l, p_t, p_r, p_b = rc_b[0], rc_b[1], rc_b[2], rc_b[3]
        cnt_x = rc_b[4]

        # ---- running min-area assignment over gt boxes (SMEM scalars) -------
        best_area = jnp.full((S, L), BIG, jnp.float32)
        tgt_l = jnp.zeros((S, L), jnp.float32)
        tgt_t = jnp.zeros((S, L), jnp.float32)
        tgt_r = jnp.zeros((S, L), jnp.float32)
        tgt_b = jnp.zeros((S, L), jnp.float32)
        cls_sel = jnp.zeros((S, L), jnp.float32)
        any_pos = jnp.zeros((S, L), jnp.bool_)

        # TODO(synk): for realistic padded gt counts (M >= 32) switch this
        # full unroll to lax.fori_loop(0, M, body, carry, unroll=2) to bound
        # vreg live ranges; full unroll is best for tiny static M.
        for m in range(M):
            o = (b * M + m) * 8
            x1 = bbox_ref[o + 0]
            y1 = bbox_ref[o + 1]
            x2 = bbox_ref[o + 2]
            y2 = bbox_ref[o + 3]
            bc = bbox_ref[o + 4]
            xc = bbox_ref[o + 5]       # precomputed box centers (wrapper)
            yc = bbox_ref[o + 6]

            l_off = cx - x1            # scalar operands splat for free
            t_off = cy - y1
            r_off = x2 - cx
            b_off = y2 - cy
            area = (l_off + r_off) * (t_off + b_off)
            off_min = jnp.minimum(jnp.minimum(l_off, t_off),
                                  jnp.minimum(r_off, b_off))
            off_max = jnp.maximum(jnp.maximum(l_off, t_off),
                                  jnp.maximum(r_off, b_off))

            m_lim = (off_max > lim_lo) & (off_max <= lim_hi)
            m_in = off_min > 0.0
            c_off = jnp.maximum(jnp.abs(cx - xc), jnp.abs(cy - yc))
            pos = m_lim & m_in & (c_off < radius)

            area_m = jnp.where(pos, area, BIG)
            take = area_m < best_area   # strict < => torch.min first-index tie
            best_area = jnp.where(take, area_m, best_area)
            tgt_l = jnp.where(take, l_off, tgt_l)
            tgt_t = jnp.where(take, t_off, tgt_t)
            tgt_r = jnp.where(take, r_off, tgt_r)
            tgt_b = jnp.where(take, b_off, tgt_b)
            cls_sel = jnp.where(take, bc, cls_sel)
            any_pos = jnp.logical_or(any_pos, pos)

        mask2 = any_pos                               # has a positive gt box
        mask_pos = jnp.logical_and(mask2, valid_b)    # exclude tile padding
        mposf = mask_pos.astype(jnp.float32)

        # ---- centerness target ----------------------------------------------
        lr_min = jnp.minimum(tgt_l, tgt_r)
        lr_max = jnp.maximum(tgt_l, tgt_r)
        tb_min = jnp.minimum(tgt_t, tgt_b)
        tb_max = jnp.maximum(tgt_t, tgt_b)
        cnt_raw = jnp.sqrt(jnp.maximum(
            lr_min * tb_min
            * pl.reciprocal(lr_max * tb_max + eps_div, approx=True), 0.0))
        cnt_target = jnp.where(mask2, cnt_raw, -1.0)

        # ---- focal loss: all-negative sum over C + single-class correction --
        # (no (C,S,L) one-hot materialized; target class is 0 for negatives,
        # exactly like the reference).
        one_m_p = 1.0 - cls_b
        neg_terms = -(1.0 - alpha) * (cls_b * cls_b) * jnp.log(one_m_p + eps_log)
        neg_sum = jnp.sum(neg_terms, axis=0)                       # (S, L)
        cls_idx = jnp.where(mask2, cls_sel, 0.0).astype(jnp.int32)
        c_iota = lax.broadcasted_iota(jnp.int32, (C, S, L), 0)
        p_tgt = jnp.sum(jnp.where(c_iota == cls_idx[None], cls_b, 0.0), axis=0)
        one_m_pt = 1.0 - p_tgt
        correction = (-alpha * one_m_pt * one_m_pt * jnp.log(p_tgt + eps_log)
                      + (1.0 - alpha) * p_tgt * p_tgt * jnp.log(one_m_pt + eps_log))
        fl_loc = (neg_sum + correction) * validf       # padding lanes zeroed

        # ---- centerness BCE-with-logits (positives only) ---------------------
        bce = (jnp.maximum(cnt_x, 0.0) - cnt_x * cnt_target
               + jnp.log(1.0 + jnp.exp(-jnp.abs(cnt_x))))
        cnt_contrib = jnp.where(mask_pos, bce, 0.0)

        # ---- GIoU regression loss (positives only) ----------------------------
        # Negative-location targets forced to -1 (matches the reference) so the
        # math below stays finite everywhere the where-mask can see.
        t_l = jnp.where(mask2, tgt_l, -1.0)
        t_t = jnp.where(mask2, tgt_t, -1.0)
        t_r = jnp.where(mask2, tgt_r, -1.0)
        t_b = jnp.where(mask2, tgt_b, -1.0)
        outer = (jnp.maximum(jnp.maximum(p_l, t_l) + jnp.maximum(p_r, t_r), 0.0) *
                 jnp.maximum(jnp.maximum(p_t, t_t) + jnp.maximum(p_b, t_b), 0.0))
        overlap = (jnp.maximum(jnp.minimum(p_l, t_l) + jnp.minimum(p_r, t_r), 0.0) *
                   jnp.maximum(jnp.minimum(p_t, t_t) + jnp.minimum(p_b, t_b), 0.0))
        area1 = (p_r + p_l) * (p_b + p_t)
        area2 = (t_r + t_l) * (t_b + t_t)
        union = area1 + area2 - overlap
        iou = overlap / (union + eps_div)                  # exact divides for parity
        giou = 1.0 - iou + (outer - union) / (outer + eps_div)
        reg_contrib = jnp.where(mask_pos, giou, 0.0)

        # ---- single slab write/RMW per batch element -------------------------
        stacked = jnp.stack([fl_loc, cnt_contrib, reg_contrib, mposf], axis=0)
        if accumulate:
            out_ref[pl.ds(4 * b, 4)] += stacked    # VMEM-resident accumulator
        else:
            out_ref[pl.ds(4 * b, 4)] = stacked     # per-tile partial output


# ----------------------------------------------------------------------------
# Wrapper: JAX glue (reshape/concat/pad, no HBM transposes) + pallas_call +
# final tiny normalization.
# ----------------------------------------------------------------------------
def fcos_loss_pallas(cls_preds, cnt_preds, reg_preds, batch_bboxes,
                     strides, limit_range, central_sampling_radius=1.5,
                     tile=2048, per_tile_partials=None):
    batch_bboxes = batch_bboxes.astype(jnp.float32)
    B, M, _ = batch_bboxes.shape

    cls_list, rc_list, loc_list = [], [], []
    for i, (cp, ctp, rp) in enumerate(zip(cls_preds, cnt_preds, reg_preds)):
        _, C, H, W = cp.shape
        s = strides[i]
        lo, hi = limit_range[i]
        # Native NC(HW) layout: the location axis stays minor (lanes).
        cls_list.append(cp.reshape(B, C, H * W))
        # Merge reg (4 rows) + cnt (1 row) into one 5-channel stream.
        rc_list.append(jnp.concatenate(
            [rp.reshape(B, 4, H * W), ctp.reshape(B, 1, H * W)], axis=1))
        gy = jnp.arange(0, H * s, s, dtype=jnp.float32)
        gx = jnp.arange(0, W * s, s, dtype=jnp.float32)
        gyy, gxx = jnp.meshgrid(gy, gx, indexing="ij")
        cx = gxx.reshape(-1) + float(s // 2)
        cy = gyy.reshape(-1) + float(s // 2)
        n = H * W
        loc = jnp.stack([
            cx, cy,
            jnp.full((n,), float(lo), jnp.float32),
            jnp.full((n,), float(hi), jnp.float32),
            jnp.full((n,), float(central_sampling_radius * s), jnp.float32),
            jnp.ones((n,), jnp.float32)], axis=0)            # (6, n) + valid flag
        loc_list.append(loc)

    # TODO(synk): for very large N the concat + pad below costs an extra HBM
    # read+write of the predictions; a (level x tile) grid with per-level
    # inputs would remove it.
    cls_pred = jnp.concatenate(cls_list, axis=2)             # (B, C, N), native dtype
    rc_pred = jnp.concatenate(rc_list, axis=2)               # (B, 5, N)
    loc_info = jnp.concatenate(loc_list, axis=1)             # (6, N) f32

    N = loc_info.shape[1]
    C = cls_pred.shape[1]

    # tile must be a multiple of 1024 so the sublane chunk S = tile // 128 is a
    # multiple of 8 (BlockSpec (8,128) divisibility on the last two dims).
    assert tile % 1024 == 0
    n_total = ((N + tile - 1) // tile) * tile
    n_pad = n_total - N
    if n_pad:
        cls_pred = jnp.pad(cls_pred, ((0, 0), (0, 0), (0, n_pad)))
        rc_pred = jnp.pad(rc_pred, ((0, 0), (0, 0), (0, n_pad)))
        loc_info = jnp.pad(loc_info, ((0, 0), (0, n_pad)))   # valid flag -> 0
    num_tiles = n_total // tile
    S = tile // 128
    Stot = n_total // 128

    # Sublane+lane dense layout: (..., Stot, 128); pure reshape of the minor axis.
    cls_pred = cls_pred.reshape(B, C, Stot, 128)
    rc_pred = rc_pred.reshape(B, 5, Stot, 128)
    loc_info = loc_info.reshape(6, Stot, 128)

    # GT-box scalar table for SMEM: [x1, y1, x2, y2, cls, xc, yc, 0] per box.
    xc = (batch_bboxes[:, :, 0] + batch_bboxes[:, :, 2]) * 0.5
    yc = (batch_bboxes[:, :, 1] + batch_bboxes[:, :, 3]) * 0.5
    bbox_tab = jnp.concatenate(
        [batch_bboxes, xc[..., None], yc[..., None],
         jnp.zeros((B, M, 1), jnp.float32)], axis=-1).reshape(-1)   # (B*M*8,)

    if per_tile_partials is None:
        # v7x has 2 TensorCores: shard the tile grid via per-tile partial
        # outputs; single-TC parts keep the VMEM-resident accumulator.
        try:
            dk = jax.devices()[0].device_kind.lower()
            per_tile_partials = ("v7" in dk) or ("7x" in dk)
        except Exception:
            per_tile_partials = False

    kernel = functools.partial(_fcos_loss_kernel, B=B, M=M, C=C,
                               accumulate=not per_tile_partials)

    if per_tile_partials:
        out_shape = jax.ShapeDtypeStruct((num_tiles, 4 * B, S, 128), jnp.float32)
        out_spec = pl.BlockSpec((None, 4 * B, S, 128), lambda t: (t, 0, 0, 0))
        dim_sem = ("parallel",)
    else:
        out_shape = jax.ShapeDtypeStruct((4 * B, S, 128), jnp.float32)
        out_spec = pl.BlockSpec((4 * B, S, 128), lambda t: (0, 0, 0))
        dim_sem = ("arbitrary",)

    # Double-buffered input blocks + output; capped at 64 MiB so the same
    # config stays inside v7x's smaller physical VMEM.
    bytes_per_step = 4 * tile * (6 + B * C + B * 5) * 2 + 4 * 4 * B * tile * 2
    vmem_limit = int(min(max(3 * bytes_per_step, 32 * 1024 * 1024),
                         64 * 1024 * 1024))

    cost = pl.CostEstimate(
        flops=int(B * n_total * (34 * M + 10 * C + 80)),
        transcendentals=int(B * n_total * (C + 8)),
        bytes_accessed=int(4 * (6 * n_total + B * M * 8
                                + B * (C + 5) * n_total + 4 * B * n_total)),
    )

    partial = pl.pallas_call(
        kernel,
        out_shape=out_shape,
        grid=(num_tiles,),
        in_specs=[
            pl.BlockSpec(memory_space=pltpu.MemorySpace.SMEM),      # gt-box scalars
            pl.BlockSpec((6, S, 128), lambda t: (0, t, 0)),         # location meta
            pl.BlockSpec((B, C, S, 128), lambda t: (0, 0, t, 0)),   # cls probs
            pl.BlockSpec((B, 5, S, 128), lambda t: (0, 0, t, 0)),   # reg + cnt
        ],
        out_specs=out_spec,
        compiler_params=pltpu.CompilerParams(
            dimension_semantics=dim_sem,
            vmem_limit_bytes=vmem_limit),
        cost_estimate=cost,
    )(bbox_tab, loc_info, cls_pred, rc_pred)

    if per_tile_partials:
        sums = jnp.sum(partial, axis=(0, 2, 3)).reshape(B, 4)
    else:
        sums = jnp.sum(partial, axis=(1, 2)).reshape(B, 4)

    num_pos = jnp.maximum(sums[:, 3], 1.0)
    cls_loss = jnp.mean(sums[:, 0] / num_pos)
    cnt_loss = jnp.mean(sums[:, 1] / num_pos)
    reg_loss = jnp.mean(sums[:, 2] / num_pos)
    return cls_loss, cnt_loss, reg_loss


# ----------------------------------------------------------------------------
# Pure-JAX reference (mirrors the PyTorch module) for a correctness check.
# ----------------------------------------------------------------------------
def fcos_loss_reference(cls_preds, cnt_preds, reg_preds, batch_bboxes,
                        strides, limit_range, num_classes,
                        central_sampling_radius=1.5):
    bb = batch_bboxes.astype(jnp.float32)
    B = bb.shape[0]
    cls_p_all, cnt_p_all, reg_p_all = [], [], []
    cls_t_all, cnt_t_all, reg_t_all = [], [], []
    for i, (cp, ctp, rp) in enumerate(zip(cls_preds, cnt_preds, reg_preds)):
        _, C, H, W = cp.shape
        s = strides[i]
        lo, hi = limit_range[i]
        gy = jnp.arange(0, H * s, s, dtype=jnp.float32)
        gx = jnp.arange(0, W * s, s, dtype=jnp.float32)
        gyy, gxx = jnp.meshgrid(gy, gx, indexing="ij")
        cx = gxx.reshape(-1) + float(s // 2)
        cy = gyy.reshape(-1) + float(s // 2)
        x1 = bb[:, :, 0][:, None, :]
        y1 = bb[:, :, 1][:, None, :]
        x2 = bb[:, :, 2][:, None, :]
        y2 = bb[:, :, 3][:, None, :]
        l_off = cx[None, :, None] - x1
        t_off = cy[None, :, None] - y1
        r_off = x2 - cx[None, :, None]
        b_off = y2 - cy[None, :, None]
        ltrb = jnp.stack([l_off, t_off, r_off, b_off], -1)
        areas = (l_off + r_off) * (t_off + b_off)
        off_min = jnp.min(ltrb, axis=-1)
        off_max = jnp.max(ltrb, axis=-1)
        mask_limit = (off_max > lo) & (off_max <= hi)
        mask_in = off_min > 0
        xc = (x1 + x2) / 2
        yc = (y1 + y2) / 2
        c_off_max = jnp.maximum(jnp.abs(cx[None, :, None] - xc),
                                jnp.abs(cy[None, :, None] - yc))
        mask_cs = c_off_max < central_sampling_radius * s
        mask_pos_bbox = mask_limit & mask_in & mask_cs
        areas_m = jnp.where(mask_pos_bbox, areas, 9999999.0)
        amin_idx = jnp.argmin(areas_m, axis=-1)
        reg_target = jnp.take_along_axis(ltrb, amin_idx[:, :, None, None],
                                         axis=2)[:, :, 0, :]
        cls4 = jnp.broadcast_to(bb[:, :, 4][:, None, :], areas.shape)
        cls_target_idx = jnp.take_along_axis(cls4, amin_idx[:, :, None],
                                             axis=2)[:, :, 0]
        mask2 = jnp.sum(mask_pos_bbox.astype(jnp.int32), axis=-1) >= 1
        lr_min = jnp.minimum(reg_target[..., 0], reg_target[..., 2])
        lr_max = jnp.maximum(reg_target[..., 0], reg_target[..., 2])
        tb_min = jnp.minimum(reg_target[..., 1], reg_target[..., 3])
        tb_max = jnp.maximum(reg_target[..., 1], reg_target[..., 3])
        cnt_raw = jnp.sqrt(jnp.maximum(lr_min * tb_min / (lr_max * tb_max + 1e-9), 0.0))
        cls_idx = jnp.where(mask2, cls_target_idx, 0.0).astype(jnp.int32)
        cls_t = jax.nn.one_hot(cls_idx, num_classes, dtype=jnp.float32)
        cnt_t = jnp.where(mask2, cnt_raw, -1.0)[..., None]
        reg_t = jnp.where(mask2[..., None], reg_target, -1.0)
        cls_p_all.append(jnp.transpose(cp.reshape(B, C, H * W), (0, 2, 1)))
        cnt_p_all.append(jnp.transpose(ctp.reshape(B, 1, H * W), (0, 2, 1)))
        reg_p_all.append(jnp.transpose(rp.reshape(B, 4, H * W), (0, 2, 1)))
        cls_t_all.append(cls_t)
        cnt_t_all.append(cnt_t)
        reg_t_all.append(reg_t)

    cls_p = jnp.concatenate(cls_p_all, 1)
    cnt_p = jnp.concatenate(cnt_p_all, 1)
    reg_p = jnp.concatenate(reg_p_all, 1)
    cls_t = jnp.concatenate(cls_t_all, 1)
    cnt_t = jnp.concatenate(cnt_t_all, 1)
    reg_t = jnp.concatenate(reg_t_all, 1)

    mask_pos = cnt_t > -1
    num_pos = jnp.maximum(jnp.sum(mask_pos, axis=(1, 2)).astype(jnp.float32), 1.0)

    pt = cls_p * cls_t + (1 - cls_p) * (1 - cls_t)
    w = 0.25 * cls_t + 0.75 * (1 - cls_t)
    fl = -w * (1 - pt) ** 2 * jnp.log(pt + 1e-10)
    cls_loss = jnp.mean(jnp.sum(fl, axis=(1, 2)) / num_pos)

    x = cnt_p[..., 0]
    y = cnt_t[..., 0]
    m = mask_pos[..., 0]
    bce = jnp.maximum(x, 0.0) - x * y + jnp.log(1.0 + jnp.exp(-jnp.abs(x)))
    cnt_loss = jnp.mean(jnp.sum(jnp.where(m, bce, 0.0), axis=1) / num_pos)

    p_l, p_t, p_r, p_b = (reg_p[..., k] for k in range(4))
    t_l, t_t, t_r, t_b = (reg_t[..., k] for k in range(4))
    outer = (jnp.maximum(jnp.maximum(p_l, t_l) + jnp.maximum(p_r, t_r), 0.0) *
             jnp.maximum(jnp.maximum(p_t, t_t) + jnp.maximum(p_b, t_b), 0.0))
    overlap = (jnp.maximum(jnp.minimum(p_l, t_l) + jnp.minimum(p_r, t_r), 0.0) *
               jnp.maximum(jnp.minimum(p_t, t_t) + jnp.minimum(p_b, t_b), 0.0))
    area1 = (p_r + p_l) * (p_b + p_t)
    area2 = (t_r + t_l) * (t_b + t_t)
    union = area1 + area2 - overlap
    iou = overlap / (union + 1e-9)
    giou = 1 - iou + (outer - union) / (outer + 1e-9)
    reg_loss = jnp.mean(jnp.sum(jnp.where(m, giou, 0.0), axis=1) / num_pos)
    return cls_loss, cnt_loss, reg_loss


if __name__ == "__main__":
    key = jax.random.PRNGKey(0)
    B = 2
    num_classes = 8
    M = 8                               # gt boxes per image
    strides = [8, 16]
    limit_range = [(-1.0, 64.0), (64.0, 1e8)]
    feat_sizes = [(32, 32), (16, 16)]   # implied image ~256x256, N = 1280

    keys = jax.random.split(key, 3 * len(feat_sizes) + 3)
    cls_preds, cnt_preds, reg_preds = [], [], []
    k = 0
    for (H, W), s in zip(feat_sizes, strides):
        cls_preds.append(jax.nn.sigmoid(
            jax.random.normal(keys[k], (B, num_classes, H, W), jnp.float32))); k += 1
        cnt_preds.append(
            jax.random.normal(keys[k], (B, 1, H, W), jnp.float32)); k += 1
        reg_preds.append(jax.nn.softplus(
            jax.random.normal(keys[k], (B, 4, H, W), jnp.float32)) * s); k += 1

    centers = jax.random.uniform(keys[k], (B, M, 2), minval=16.0, maxval=240.0)
    sizes = jax.random.uniform(keys[k + 1], (B, M, 2), minval=12.0, maxval=96.0)
    classes = jax.random.randint(keys[k + 2], (B, M, 1), 1, num_classes).astype(jnp.float32)
    x1y1 = jnp.clip(centers - sizes / 2, 0.0, 255.0)
    x2y2 = jnp.clip(centers + sizes / 2, 0.0, 255.0)
    batch_bboxes = jnp.concatenate([x1y1, x2y2, classes], axis=-1)   # (B, M, 5)

    ref = jax.block_until_ready(
        fcos_loss_reference(cls_preds, cnt_preds, reg_preds, batch_bboxes,
                            strides, limit_range, num_classes))

    # 1) VMEM-resident accumulator path (single-TC default), multi-tile grid.
    out_acc = jax.block_until_ready(
        fcos_loss_pallas(cls_preds, cnt_preds, reg_preds, batch_bboxes,
                         strides, limit_range, tile=1024,
                         per_tile_partials=False))
    # 2) Per-tile-partial path with dimension_semantics=("parallel",) (v7x).
    out_par = jax.block_until_ready(
        fcos_loss_pallas(cls_preds, cnt_preds, reg_preds, batch_bboxes,
                         strides, limit_range, tile=1024,
                         per_tile_partials=True))
    # 3) Default configuration (tile=2048, hardware-selected output mode).
    out_def = jax.block_until_ready(
        fcos_loss_pallas(cls_preds, cnt_preds, reg_preds, batch_bboxes,
                         strides, limit_range))

    # Slightly relaxed tolerance: the centerness target still uses
    # pl.reciprocal(approx=True) (EUP fast path).
    for got in (out_acc, out_par, out_def):
        for a, b in zip(got, ref):
            assert jnp.allclose(a, b, rtol=5e-3, atol=5e-3), (a, b)

    print("KERNEL_OK")
</pallas_src>

<mosaic_0001>
module attributes {stable_mosaic.version = 11 : i64} {
  func.func @_fcos_loss_kernel(%arg0: i32, %arg1: memref<128xf32, #tpu.memory_space<smem>>, %arg2: memref<6x8x128xf32, #tpu.memory_space<vmem>>, %arg3: memref<2x8x8x128xf32, #tpu.memory_space<vmem>>, %arg4: memref<2x5x8x128xf32, #tpu.memory_space<vmem>>, %arg5: memref<8x8x128xf32, #tpu.memory_space<vmem>>) attributes {dimension_semantics = [#tpu.dimension_semantics<arbitrary>], iteration_bounds = array<i64: 2>, scalar_prefetch = 0 : i64, scratch_operands = 0 : i64, tpu.core_type = #tpu.core_type<tc>, window_params = [{transform_indices = @transform_0, window_bounds = array<i64: 128>}, {transform_indices = @transform_1, window_bounds = array<i64: 6, 8, 128>}, {transform_indices = @transform_2, window_bounds = array<i64: 2, 8, 8, 128>}, {transform_indices = @transform_3, window_bounds = array<i64: 2, 5, 8, 128>}, {pipeline_mode = #tpu.pipeline_mode<synchronous>, transform_indices = @transform_4, window_bounds = array<i64: 8, 8, 128>}]} {
    %c0_i32 = arith.constant 0 : i32
    %0 = arith.cmpi eq, %arg0, %c0_i32 : i32
    %1 = arith.extui %0 : i1 to i32
    %c0_i32_0 = arith.constant 0 : i32
    %2 = arith.cmpi ne, %1, %c0_i32_0 : i32
    scf.if %2 {
      %cst_139 = arith.constant 0.000000e+00 : f32
      %1116 = vector.broadcast %cst_139 : f32 to vector<8x8x128xf32>
      %c0_140 = arith.constant 0 : index
      %c0_141 = arith.constant 0 : index
      %c0_142 = arith.constant 0 : index
      %1117 = vector.load %arg5[%c0_140, %c0_141, %c0_142] : memref<8x8x128xf32, #tpu.memory_space<vmem>>, vector<8x8x128xf32>
      tpu.vector_store %arg5[%c0_140, %c0_141, %c0_142], %1116 {strides = array<i32>} : memref<8x8x128xf32, #tpu.memory_space<vmem>>, vector<8x8x128xf32>,
    } else {
    }
    %c0 = arith.constant 0 : index
    %c0_1 = arith.constant 0 : index
    %c0_2 = arith.constant 0 : index
    %3 = vector.load %arg2[%c0, %c0_1, %c0_2] : memref<6x8x128xf32, #tpu.memory_space<vmem>>, vector<6x8x128xf32>
    %4 = vector.extract_strided_slice %3 {offsets = [0, 0, 0], sizes = [1, 8, 128], strides = [1, 1, 1]} : vector<6x8x128xf32> to vector<1x8x128xf32>
    %5 = vector.shape_cast %4 : vector<1x8x128xf32> to vector<8x128xf32>
    %6 = vector.extract_strided_slice %3 {offsets = [1, 0, 0], sizes = [1, 8, 128], strides = [1, 1, 1]} : vector<6x8x128xf32> to vector<1x8x128xf32>
    %7 = vector.shape_cast %6 : vector<1x8x128xf32> to vector<8x128xf32>
    %8 = vector.extract_strided_slice %3 {offsets = [2, 0, 0], sizes = [1, 8, 128], strides = [1, 1, 1]} : vector<6x8x128xf32> to vector<1x8x128xf32>
    %9 = vector.shape_cast %8 : vector<1x8x128xf32> to vector<8x128xf32>
    %10 = vector.extract_strided_slice %3 {offsets = [3, 0, 0], sizes = [1, 8, 128], strides = [1, 1, 1]} : vector<6x8x128xf32> to vector<1x8x128xf32>
    %11 = vector.shape_cast %10 : vector<1x8x128xf32> to vector<8x128xf32>
    %12 = vector.extract_strided_slice %3 {offsets = [4, 0, 0], sizes = [1, 8, 128], strides = [1, 1, 1]} : vector<6x8x128xf32> to vector<1x8x128xf32>
    %13 = vector.shape_cast %12 : vector<1x8x128xf32> to vector<8x128xf32>
    %14 = vector.extract_strided_slice %3 {offsets = [5, 0, 0], sizes = [1, 8, 128], strides = [1, 1, 1]} : vector<6x8x128xf32> to vector<1x8x128xf32>
    %15 = vector.shape_cast %14 : vector<1x8x128xf32> to vector<8x128xf32>
    %cst = arith.constant 0.000000e+00 : f32
    %16 = vector.broadcast %cst : f32 to vector<8x128xf32>
    %17 = arith.cmpf ogt, %15, %16 : vector<8x128xf32>
    %c0_3 = arith.constant 0 : index
    %c0_4 = arith.constant 0 : index
    %c0_5 = arith.constant 0 : index
    %c0_6 = arith.constant 0 : index
    %18 = vector.load %arg3[%c0_3, %c0_4, %c0_5, %c0_6] : memref<2x8x8x128xf32, #tpu.memory_space<vmem>>, vector<1x8x8x128xf32>
    %19 = vector.shape_cast %18 : vector<1x8x8x128xf32> to vector<8x8x128xf32>
    %c0_7 = arith.constant 0 : index
    %c0_8 = arith.constant 0 : index
    %c0_9 = arith.constant 0 : index
    %c0_10 = arith.constant 0 : index
    %20 = vector.load %arg4[%c0_7, %c0_8, %c0_9, %c0_10] : memref<2x5x8x128xf32, #tpu.memory_space<vmem>>, vector<1x5x8x128xf32>
    %21 = vector.shape_cast %20 : vector<1x5x8x128xf32> to vector<5x8x128xf32>
    %22 = vector.extract_strided_slice %21 {offsets = [0, 0, 0], sizes = [1, 8, 128], strides = [1, 1, 1]} : vector<5x8x128xf32> to vector<1x8x128xf32>
    %23 = vector.shape_cast %22 : vector<1x8x128xf32> to vector<8x128xf32>
    %24 = vector.extract_strided_slice %21 {offsets = [1, 0, 0], sizes = [1, 8, 128], strides = [1, 1, 1]} : vector<5x8x128xf32> to vector<1x8x128xf32>
    %25 = vector.shape_cast %24 : vector<1x8x128xf32> to vector<8x128xf32>
    %26 = vector.extract_strided_slice %21 {offsets = [2, 0, 0], sizes = [1, 8, 128], strides = [1, 1, 1]} : vector<5x8x128xf32> to vector<1x8x128xf32>
    %27 = vector.shape_cast %26 : vector<1x8x128xf32> to vector<8x128xf32>
    %28 = vector.extract_strided_slice %21 {offsets = [3, 0, 0], sizes = [1, 8, 128], strides = [1, 1, 1]} : vector<5x8x128xf32> to vector<1x8x128xf32>
    %29 = vector.shape_cast %28 : vector<1x8x128xf32> to vector<8x128xf32>
    %30 = vector.extract_strided_slice %21 {offsets = [4, 0, 0], sizes = [1, 8, 128], strides = [1, 1, 1]} : vector<5x8x128xf32> to vector<1x8x128xf32>
    %31 = vector.shape_cast %30 : vector<1x8x128xf32> to vector<8x128xf32>
    %cst_11 = arith.constant 0x4B18967F : f32
    %32 = vector.broadcast %cst_11 : f32 to vector<8x128xf32>
    %cst_12 = arith.constant 0.000000e+00 : f32
    %33 = vector.broadcast %cst_12 : f32 to vector<8x128xf32>
    %cst_13 = arith.constant 0.000000e+00 : f32
    %34 = vector.broadcast %cst_13 : f32 to vector<8x128xf32>
    %cst_14 = arith.constant 0.000000e+00 : f32
    %35 = vector.broadcast %cst_14 : f32 to vector<8x128xf32>
    %cst_15 = arith.constant 0.000000e+00 : f32
    %36 = vector.broadcast %cst_15 : f32 to vector<8x128xf32>
    %cst_16 = arith.constant 0.000000e+00 : f32
    %37 = vector.broadcast %cst_16 : f32 to vector<8x128xf32>
    %false = arith.constant false
    %38 = vector.broadcast %false : i1 to vector<8x128xi1>
    %c0_17 = arith.constant 0 : index
    %39 = memref.load %arg1[%c0_17] : memref<128xf32, #tpu.memory_space<smem>>
    %c1 = arith.constant 1 : index
    %40 = memref.load %arg1[%c1] : memref<128xf32, #tpu.memory_space<smem>>
    %c2 = arith.constant 2 : index
    %41 = memref.load %arg1[%c2] : memref<128xf32, #tpu.memory_space<smem>>
    %c3 = arith.constant 3 : index
    %42 = memref.load %arg1[%c3] : memref<128xf32, #tpu.memory_space<smem>>
    %c4 = arith.constant 4 : index
    %43 = memref.load %arg1[%c4] : memref<128xf32, #tpu.memory_space<smem>>
    %c5 = arith.constant 5 : index
    %44 = memref.load %arg1[%c5] : memref<128xf32, #tpu.memory_space<smem>>
    %c6 = arith.constant 6 : index
    %45 = memref.load %arg1[%c6] : memref<128xf32, #tpu.memory_space<smem>>
    %46 = vector.broadcast %39 : f32 to vector<8x128xf32>
    %47 = arith.subf %5, %46 : vector<8x128xf32>
    %48 = vector.broadcast %40 : f32 to vector<8x128xf32>
    %49 = arith.subf %7, %48 : vector<8x128xf32>
    %50 = vector.broadcast %41 : f32 to vector<8x128xf32>
    %51 = arith.subf %50, %5 : vector<8x128xf32>
    %52 = vector.broadcast %42 : f32 to vector<8x128xf32>
    %53 = arith.subf %52, %7 : vector<8x128xf32>
    %54 = arith.addf %47, %51 : vector<8x128xf32>
    %55 = arith.addf %49, %53 : vector<8x128xf32>
    %56 = arith.mulf %54, %55 : vector<8x128xf32>
    %57 = arith.minimumf %47, %49 : vector<8x128xf32>
    %58 = arith.minimumf %51, %53 : vector<8x128xf32>
    %59 = arith.minimumf %57, %58 : vector<8x128xf32>
    %60 = arith.maximumf %47, %49 : vector<8x128xf32>
    %61 = arith.maximumf %51, %53 : vector<8x128xf32>
    %62 = arith.maximumf %60, %61 : vector<8x128xf32>
    %63 = arith.cmpf ogt, %62, %9 : vector<8x128xf32>
    %64 = arith.cmpf ole, %62, %11 : vector<8x128xf32>
    %65 = arith.andi %63, %64 : vector<8x128xi1>
    %cst_18 = arith.constant 0.000000e+00 : f32
    %66 = vector.broadcast %cst_18 : f32 to vector<8x128xf32>
    %67 = arith.cmpf ogt, %59, %66 : vector<8x128xf32>
    %68 = vector.broadcast %44 : f32 to vector<8x128xf32>
    %69 = arith.subf %5, %68 : vector<8x128xf32>
    %70 = math.absf %69 : vector<8x128xf32>
    %71 = vector.broadcast %45 : f32 to vector<8x128xf32>
    %72 = arith.subf %7, %71 : vector<8x128xf32>
    %73 = math.absf %72 : vector<8x128xf32>
    %74 = arith.maximumf %70, %73 : vector<8x128xf32>
    %75 = arith.andi %65, %67 : vector<8x128xi1>
    %76 = arith.cmpf olt, %74, %13 : vector<8x128xf32>
    %77 = arith.andi %75, %76 : vector<8x128xi1>
    %cst_19 = arith.constant 0x4B18967F : f32
    %78 = vector.broadcast %cst_19 : f32 to vector<8x128xf32>
    %79 = arith.select %77, %56, %78 : vector<8x128xi1>, vector<8x128xf32>
    %80 = arith.cmpf olt, %79, %32 : vector<8x128xf32>
    %81 = arith.select %80, %79, %32 : vector<8x128xi1>, vector<8x128xf32>
    %82 = arith.select %80, %47, %33 : vector<8x128xi1>, vector<8x128xf32>
    %83 = arith.select %80, %49, %34 : vector<8x128xi1>, vector<8x128xf32>
    %84 = arith.select %80, %51, %35 : vector<8x128xi1>, vector<8x128xf32>
    %85 = arith.select %80, %53, %36 : vector<8x128xi1>, vector<8x128xf32>
    %86 = vector.broadcast %43 : f32 to vector<8x128xf32>
    %87 = arith.select %80, %86, %37 : vector<8x128xi1>, vector<8x128xf32>
    %88 = arith.ori %38, %77 : vector<8x128xi1>
    %c8 = arith.constant 8 : index
    %89 = memref.load %arg1[%c8] : memref<128xf32, #tpu.memory_space<smem>>
    %c9 = arith.constant 9 : index
    %90 = memref.load %arg1[%c9] : memref<128xf32, #tpu.memory_space<smem>>
    %c10 = arith.constant 10 : index
    %91 = memref.load %arg1[%c10] : memref<128xf32, #tpu.memory_space<smem>>
    %c11 = arith.constant 11 : index
    %92 = memref.load %arg1[%c11] : memref<128xf32, #tpu.memory_space<smem>>
    %c12 = arith.constant 12 : index
    %93 = memref.load %arg1[%c12] : memref<128xf32, #tpu.memory_space<smem>>
    %c13 = arith.constant 13 : index
    %94 = memref.load %arg1[%c13] : memref<128xf32, #tpu.memory_space<smem>>
    %c14 = arith.constant 14 : index
    %95 = memref.load %arg1[%c14] : memref<128xf32, #tpu.memory_space<smem>>
    %96 = vector.broadcast %89 : f32 to vector<8x128xf32>
    %97 = arith.subf %5, %96 : vector<8x128xf32>
    %98 = vector.broadcast %90 : f32 to vector<8x128xf32>
    %99 = arith.subf %7, %98 : vector<8x128xf32>
    %100 = vector.broadcast %91 : f32 to vector<8x128xf32>
    %101 = arith.subf %100, %5 : vector<8x128xf32>
    %102 = vector.broadcast %92 : f32 to vector<8x128xf32>
    %103 = arith.subf %102, %7 : vector<8x128xf32>
    %104 = arith.addf %97, %101 : vector<8x128xf32>
    %105 = arith.addf %99, %103 : vector<8x128xf32>
    %106 = arith.mulf %104, %105 : vector<8x128xf32>
    %107 = arith.minimumf %97, %99 : vector<8x128xf32>
    %108 = arith.minimumf %101, %103 : vector<8x128xf32>
    %109 = arith.minimumf %107, %108 : vector<8x128xf32>
    %110 = arith.maximumf %97, %99 : vector<8x128xf32>
    %111 = arith.maximumf %101, %103 : vector<8x128xf32>
    %112 = arith.maximumf %110, %111 : vector<8x128xf32>
    %113 = arith.cmpf ogt, %112, %9 : vector<8x128xf32>
    %114 = arith.cmpf ole, %112, %11 : vector<8x128xf32>
    %115 = arith.andi %113, %114 : vector<8x128xi1>
    %cst_20 = arith.constant 0.000000e+00 : f32
    %116 = vector.broadcast %cst_20 : f32 to vector<8x128xf32>
    %117 = arith.cmpf ogt, %109, %116 : vector<8x128xf32>
    %118 = vector.broadcast %94 : f32 to vector<8x128xf32>
    %119 = arith.subf %5, %118 : vector<8x128xf32>
    %120 = math.absf %119 : vector<8x128xf32>
    %121 = vector.broadcast %95 : f32 to vector<8x128xf32>
    %122 = arith.subf %7, %121 : vector<8x128xf32>
    %123 = math.absf %122 : vector<8x128xf32>
    %124 = arith.maximumf %120, %123 : vector<8x128xf32>
    %125 = arith.andi %115, %117 : vector<8x128xi1>
    %126 = arith.cmpf olt, %124, %13 : vector<8x128xf32>
    %127 = arith.andi %125, %126 : vector<8x128xi1>
    %cst_21 = arith.constant 0x4B18967F : f32
    %128 = vector.broadcast %cst_21 : f32 to vector<8x128xf32>
    %129 = arith.select %127, %106, %128 : vector<8x128xi1>, vector<8x128xf32>
    %130 = arith.cmpf olt, %129, %81 : vector<8x128xf32>
    %131 = arith.select %130, %129, %81 : vector<8x128xi1>, vector<8x128xf32>
    %132 = arith.select %130, %97, %82 : vector<8x128xi1>, vector<8x128xf32>
    %133 = arith.select %130, %99, %83 : vector<8x128xi1>, vector<8x128xf32>
    %134 = arith.select %130, %101, %84 : vector<8x128xi1>, vector<8x128xf32>
    %135 = arith.select %130, %103, %85 : vector<8x128xi1>, vector<8x128xf32>
    %136 = vector.broadcast %93 : f32 to vector<8x128xf32>
    %137 = arith.select %130, %136, %87 : vector<8x128xi1>, vector<8x128xf32>
    %138 = arith.ori %88, %127 : vector<8x128xi1>
    %c16 = arith.constant 16 : index
    %139 = memref.load %arg1[%c16] : memref<128xf32, #tpu.memory_space<smem>>
    %c17 = arith.constant 17 : index
    %140 = memref.load %arg1[%c17] : memref<128xf32, #tpu.memory_space<smem>>
    %c18 = arith.constant 18 : index
    %141 = memref.load %arg1[%c18] : memref<128xf32, #tpu.memory_space<smem>>
    %c19 = arith.constant 19 : index
    %142 = memref.load %arg1[%c19] : memref<128xf32, #tpu.memory_space<smem>>
    %c20 = arith.constant 20 : index
    %143 = memref.load %arg1[%c20] : memref<128xf32, #tpu.memory_space<smem>>
    %c21 = arith.constant 21 : index
    %144 = memref.load %arg1[%c21] : memref<128xf32, #tpu.memory_space<smem>>
    %c22 = arith.constant 22 : index
    %145 = memref.load %arg1[%c22] : memref<128xf32, #tpu.memory_space<smem>>
    %146 = vector.broadcast %139 : f32 to vector<8x128xf32>
    %147 = arith.subf %5, %146 : vector<8x128xf32>
    %148 = vector.broadcast %140 : f32 to vector<8x128xf32>
    %149 = arith.subf %7, %148 : vector<8x128xf32>
    %150 = vector.broadcast %141 : f32 to vector<8x128xf32>
    %151 = arith.subf %150, %5 : vector<8x128xf32>
    %152 = vector.broadcast %142 : f32 to vector<8x128xf32>
    %153 = arith.subf %152, %7 : vector<8x128xf32>
    %154 = arith.addf %147, %151 : vector<8x128xf32>
    %155 = arith.addf %149, %153 : vector<8x128xf32>
    %156 = arith.mulf %154, %155 : vector<8x128xf32>
    %157 = arith.minimumf %147, %149 : vector<8x128xf32>
    %158 = arith.minimumf %151, %153 : vector<8x128xf32>
    %159 = arith.minimumf %157, %158 : vector<8x128xf32>
    %160 = arith.maximumf %147, %149 : vector<8x128xf32>
    %161 = arith.maximumf %151, %153 : vector<8x128xf32>
    %162 = arith.maximumf %160, %161 : vector<8x128xf32>
    %163 = arith.cmpf ogt, %162, %9 : vector<8x128xf32>
    %164 = arith.cmpf ole, %162, %11 : vector<8x128xf32>
    %165 = arith.andi %163, %164 : vector<8x128xi1>
    %cst_22 = arith.constant 0.000000e+00 : f32
    %166 = vector.broadcast %cst_22 : f32 to vector<8x128xf32>
    %167 = arith.cmpf ogt, %159, %166 : vector<8x128xf32>
    %168 = vector.broadcast %144 : f32 to vector<8x128xf32>
    %169 = arith.subf %5, %168 : vector<8x128xf32>
    %170 = math.absf %169 : vector<8x128xf32>
    %171 = vector.broadcast %145 : f32 to vector<8x128xf32>
    %172 = arith.subf %7, %171 : vector<8x128xf32>
    %173 = math.absf %172 : vector<8x128xf32>
    %174 = arith.maximumf %170, %173 : vector<8x128xf32>
    %175 = arith.andi %165, %167 : vector<8x128xi1>
    %176 = arith.cmpf olt, %174, %13 : vector<8x128xf32>
    %177 = arith.andi %175, %176 : vector<8x128xi1>
    %cst_23 = arith.constant 0x4B18967F : f32
    %178 = vector.broadcast %cst_23 : f32 to vector<8x128xf32>
    %179 = arith.select %177, %156, %178 : vector<8x128xi1>, vector<8x128xf32>
    %180 = arith.cmpf olt, %179, %131 : vector<8x128xf32>
    %181 = arith.select %180, %179, %131 : vector<8x128xi1>, vector<8x128xf32>
    %182 = arith.select %180, %147, %132 : vector<8x128xi1>, vector<8x128xf32>
    %183 = arith.select %180, %149, %133 : vector<8x128xi1>, vector<8x128xf32>
    %184 = arith.select %180, %151, %134 : vector<8x128xi1>, vector<8x128xf32>
    %185 = arith.select %180, %153, %135 : vector<8x128xi1>, vector<8x128xf32>
    %186 = vector.broadcast %143 : f32 to vector<8x128xf32>
    %187 = arith.select %180, %186, %137 : vector<8x128xi1>, vector<8x128xf32>
    %188 = arith.ori %138, %177 : vector<8x128xi1>
    %c24 = arith.constant 24 : index
    %189 = memref.load %arg1[%c24] : memref<128xf32, #tpu.memory_space<smem>>
    %c25 = arith.constant 25 : index
    %190 = memref.load %arg1[%c25] : memref<128xf32, #tpu.memory_space<smem>>
    %c26 = arith.constant 26 : index
    %191 = memref.load %arg1[%c26] : memref<128xf32, #tpu.memory_space<smem>>
    %c27 = arith.constant 27 : index
    %192 = memref.load %arg1[%c27] : memref<128xf32, #tpu.memory_space<smem>>
    %c28 = arith.constant 28 : index
    %193 = memref.load %arg1[%c28] : memref<128xf32, #tpu.memory_space<smem>>
    %c29 = arith.constant 29 : index
    %194 = memref.load %arg1[%c29] : memref<128xf32, #tpu.memory_space<smem>>
    %c30 = arith.constant 30 : index
    %195 = memref.load %arg1[%c30] : memref<128xf32, #tpu.memory_space<smem>>
    %196 = vector.broadcast %189 : f32 to vector<8x128xf32>
    %197 = arith.subf %5, %196 : vector<8x128xf32>
    %198 = vector.broadcast %190 : f32 to vector<8x128xf32>
    %199 = arith.subf %7, %198 : vector<8x128xf32>
    %200 = vector.broadcast %191 : f32 to vector<8x128xf32>
    %201 = arith.subf %200, %5 : vector<8x128xf32>
    %202 = vector.broadcast %192 : f32 to vector<8x128xf32>
    %203 = arith.subf %202, %7 : vector<8x128xf32>
    %204 = arith.addf %197, %201 : vector<8x128xf32>
    %205 = arith.addf %199, %203 : vector<8x128xf32>
    %206 = arith.mulf %204, %205 : vector<8x128xf32>
    %207 = arith.minimumf %197, %199 : vector<8x128xf32>
    %208 = arith.minimumf %201, %203 : vector<8x128xf32>
    %209 = arith.minimumf %207, %208 : vector<8x128xf32>
    %210 = arith.maximumf %197, %199 : vector<8x128xf32>
    %211 = arith.maximumf %201, %203 : vector<8x128xf32>
    %212 = arith.maximumf %210, %211 : vector<8x128xf32>
    %213 = arith.cmpf ogt, %212, %9 : vector<8x128xf32>
    %214 = arith.cmpf ole, %212, %11 : vector<8x128xf32>
    %215 = arith.andi %213, %214 : vector<8x128xi1>
    %cst_24 = arith.constant 0.000000e+00 : f32
    %216 = vector.broadcast %cst_24 : f32 to vector<8x128xf32>
    %217 = arith.cmpf ogt, %209, %216 : vector<8x128xf32>
    %218 = vector.broadcast %194 : f32 to vector<8x128xf32>
    %219 = arith.subf %5, %218 : vector<8x128xf32>
    %220 = math.absf %219 : vector<8x128xf32>
    %221 = vector.broadcast %195 : f32 to vector<8x128xf32>
    %222 = arith.subf %7, %221 : vector<8x128xf32>
    %223 = math.absf %222 : vector<8x128xf32>
    %224 = arith.maximumf %220, %223 : vector<8x128xf32>
    %225 = arith.andi %215, %217 : vector<8x128xi1>
    %226 = arith.cmpf olt, %224, %13 : vector<8x128xf32>
    %227 = arith.andi %225, %226 : vector<8x128xi1>
    %cst_25 = arith.constant 0x4B18967F : f32
    %228 = vector.broadcast %cst_25 : f32 to vector<8x128xf32>
    %229 = arith.select %227, %206, %228 : vector<8x128xi1>, vector<8x128xf32>
    %230 = arith.cmpf olt, %229, %181 : vector<8x128xf32>
    %231 = arith.select %230, %229, %181 : vector<8x128xi1>, vector<8x128xf32>
    %232 = arith.select %230, %197, %182 : vector<8x128xi1>, vector<8x128xf32>
    %233 = arith.select %230, %199, %183 : vector<8x128xi1>, vector<8x128xf32>
    %234 = arith.select %230, %201, %184 : vector<8x128xi1>, vector<8x128xf32>
    %235 = arith.select %230, %203, %185 : vector<8x128xi1>, vector<8x128xf32>
    %236 = vector.broadcast %193 : f32 to vector<8x128xf32>
    %237 = arith.select %230, %236, %187 : vector<8x128xi1>, vector<8x128xf32>
    %238 = arith.ori %188, %227 : vector<8x128xi1>
    %c32 = arith.constant 32 : index
    %239 = memref.load %arg1[%c32] : memref<128xf32, #tpu.memory_space<smem>>
    %c33 = arith.constant 33 : index
    %240 = memref.load %arg1[%c33] : memref<128xf32, #tpu.memory_space<smem>>
    %c34 = arith.constant 34 : index
    %241 = memref.load %arg1[%c34] : memref<128xf32, #tpu.memory_space<smem>>
    %c35 = arith.constant 35 : index
    %242 = memref.load %arg1[%c35] : memref<128xf32, #tpu.memory_space<smem>>
    %c36 = arith.constant 36 : index
    %243 = memref.load %arg1[%c36] : memref<128xf32, #tpu.memory_space<smem>>
    %c37 = arith.constant 37 : index
    %244 = memref.load %arg1[%c37] : memref<128xf32, #tpu.memory_space<smem>>
    %c38 = arith.constant 38 : index
    %245 = memref.load %arg1[%c38] : memref<128xf32, #tpu.memory_space<smem>>
    %246 = vector.broadcast %239 : f32 to vector<8x128xf32>
    %247 = arith.subf %5, %246 : vector<8x128xf32>
    %248 = vector.broadcast %240 : f32 to vector<8x128xf32>
    %249 = arith.subf %7, %248 : vector<8x128xf32>
    %250 = vector.broadcast %241 : f32 to vector<8x128xf32>
    %251 = arith.subf %250, %5 : vector<8x128xf32>
    %252 = vector.broadcast %242 : f32 to vector<8x128xf32>
    %253 = arith.subf %252, %7 : vector<8x128xf32>
    %254 = arith.addf %247, %251 : vector<8x128xf32>
    %255 = arith.addf %249, %253 : vector<8x128xf32>
    %256 = arith.mulf %254, %255 : vector<8x128xf32>
    %257 = arith.minimumf %247, %249 : vector<8x128xf32>
    %258 = arith.minimumf %251, %253 : vector<8x128xf32>
    %259 = arith.minimumf %257, %258 : vector<8x128xf32>
    %260 = arith.maximumf %247, %249 : vector<8x128xf32>
    %261 = arith.maximumf %251, %253 : vector<8x128xf32>
    %262 = arith.maximumf %260, %261 : vector<8x128xf32>
    %263 = arith.cmpf ogt, %262, %9 : vector<8x128xf32>
    %264 = arith.cmpf ole, %262, %11 : vector<8x128xf32>
    %265 = arith.andi %263, %264 : vector<8x128xi1>
    %cst_26 = arith.constant 0.000000e+00 : f32
    %266 = vector.broadcast %cst_26 : f32 to vector<8x128xf32>
    %267 = arith.cmpf ogt, %259, %266 : vector<8x128xf32>
    %268 = vector.broadcast %244 : f32 to vector<8x128xf32>
    %269 = arith.subf %5, %268 : vector<8x128xf32>
    %270 = math.absf %269 : vector<8x128xf32>
    %271 = vector.broadcast %245 : f32 to vector<8x128xf32>
    %272 = arith.subf %7, %271 : vector<8x128xf32>
    %273 = math.absf %272 : vector<8x128xf32>
    %274 = arith.maximumf %270, %273 : vector<8x128xf32>
    %275 = arith.andi %265, %267 : vector<8x128xi1>
    %276 = arith.cmpf olt, %274, %13 : vector<8x128xf32>
    %277 = arith.andi %275, %276 : vector<8x128xi1>
    %cst_27 = arith.constant 0x4B18967F : f32
    %278 = vector.broadcast %cst_27 : f32 to vector<8x128xf32>
    %279 = arith.select %277, %256, %278 : vector<8x128xi1>, vector<8x128xf32>
    %280 = arith.cmpf olt, %279, %231 : vector<8x128xf32>
    %281 = arith.select %280, %279, %231 : vector<8x128xi1>, vector<8x128xf32>
    %282 = arith.select %280, %247, %232 : vector<8x128xi1>, vector<8x128xf32>
    %283 = arith.select %280, %249, %233 : vector<8x128xi1>, vector<8x128xf32>
    %284 = arith.select %280, %251, %234 : vector<8x128xi1>, vector<8x128xf32>
    %285 = arith.select %280, %253, %235 : vector<8x128xi1>, vector<8x128xf32>
    %286 = vector.broadcast %243 : f32 to vector<8x128xf32>
    %287 = arith.select %280, %286, %237 : vector<8x128xi1>, vector<8x128xf32>
    %288 = arith.ori %238, %277 : vector<8x128xi1>
    %c40 = arith.constant 40 : index
    %289 = memref.load %arg1[%c40] : memref<128xf32, #tpu.memory_space<smem>>
    %c41 = arith.constant 41 : index
    %290 = memref.load %arg1[%c41] : memref<128xf32, #tpu.memory_space<smem>>
    %c42 = arith.constant 42 : index
    %291 = memref.load %arg1[%c42] : memref<128xf32, #tpu.memory_space<smem>>
    %c43 = arith.constant 43 : index
    %292 = memref.load %arg1[%c43] : memref<128xf32, #tpu.memory_space<smem>>
    %c44 = arith.constant 44 : index
    %293 = memref.load %arg1[%c44] : memref<128xf32, #tpu.memory_space<smem>>
    %c45 = arith.constant 45 : index
    %294 = memref.load %arg1[%c45] : memref<128xf32, #tpu.memory_space<smem>>
    %c46 = arith.constant 46 : index
    %295 = memref.load %arg1[%c46] : memref<128xf32, #tpu.memory_space<smem>>
    %296 = vector.broadcast %289 : f32 to vector<8x128xf32>
    %297 = arith.subf %5, %296 : vector<8x128xf32>
    %298 = vector.broadcast %290 : f32 to vector<8x128xf32>
    %299 = arith.subf %7, %298 : vector<8x128xf32>
    %300 = vector.broadcast %291 : f32 to vector<8x128xf32>
    %301 = arith.subf %300, %5 : vector<8x128xf32>
    %302 = vector.broadcast %292 : f32 to vector<8x128xf32>
    %303 = arith.subf %302, %7 : vector<8x128xf32>
    %304 = arith.addf %297, %301 : vector<8x128xf32>
    %305 = arith.addf %299, %303 : vector<8x128xf32>
    %306 = arith.mulf %304, %305 : vector<8x128xf32>
    %307 = arith.minimumf %297, %299 : vector<8x128xf32>
    %308 = arith.minimumf %301, %303 : vector<8x128xf32>
    %309 = arith.minimumf %307, %308 : vector<8x128xf32>
    %310 = arith.maximumf %297, %299 : vector<8x128xf32>
    %311 = arith.maximumf %301, %303 : vector<8x128xf32>
    %312 = arith.maximumf %310, %311 : vector<8x128xf32>
    %313 = arith.cmpf ogt, %312, %9 : vector<8x128xf32>
    %314 = arith.cmpf ole, %312, %11 : vector<8x128xf32>
    %315 = arith.andi %313, %314 : vector<8x128xi1>
    %cst_28 = arith.constant 0.000000e+00 : f32
    %316 = vector.broadcast %cst_28 : f32 to vector<8x128xf32>
    %317 = arith.cmpf ogt, %309, %316 : vector<8x128xf32>
    %318 = vector.broadcast %294 : f32 to vector<8x128xf32>
    %319 = arith.subf %5, %318 : vector<8x128xf32>
    %320 = math.absf %319 : vector<8x128xf32>
    %321 = vector.broadcast %295 : f32 to vector<8x128xf32>
    %322 = arith.subf %7, %321 : vector<8x128xf32>
    %323 = math.absf %322 : vector<8x128xf32>
    %324 = arith.maximumf %320, %323 : vector<8x128xf32>
    %325 = arith.andi %315, %317 : vector<8x128xi1>
    %326 = arith.cmpf olt, %324, %13 : vector<8x128xf32>
    %327 = arith.andi %325, %326 : vector<8x128xi1>
    %cst_29 = arith.constant 0x4B18967F : f32
    %328 = vector.broadcast %cst_29 : f32 to vector<8x128xf32>
    %329 = arith.select %327, %306, %328 : vector<8x128xi1>, vector<8x128xf32>
    %330 = arith.cmpf olt, %329, %281 : vector<8x128xf32>
    %331 = arith.select %330, %329, %281 : vector<8x128xi1>, vector<8x128xf32>
    %332 = arith.select %330, %297, %282 : vector<8x128xi1>, vector<8x128xf32>
    %333 = arith.select %330, %299, %283 : vector<8x128xi1>, vector<8x128xf32>
    %334 = arith.select %330, %301, %284 : vector<8x128xi1>, vector<8x128xf32>
    %335 = arith.select %330, %303, %285 : vector<8x128xi1>, vector<8x128xf32>
    %336 = vector.broadcast %293 : f32 to vector<8x128xf32>
    %337 = arith.select %330, %336, %287 : vector<8x128xi1>, vector<8x128xf32>
    %338 = arith.ori %288, %327 : vector<8x128xi1>
    %c48 = arith.constant 48 : index
    %339 = memref.load %arg1[%c48] : memref<128xf32, #tpu.memory_space<smem>>
    %c49 = arith.constant 49 : index
    %340 = memref.load %arg1[%c49] : memref<128xf32, #tpu.memory_space<smem>>
    %c50 = arith.constant 50 : index
    %341 = memref.load %arg1[%c50] : memref<128xf32, #tpu.memory_space<smem>>
    %c51 = arith.constant 51 : index
    %342 = memref.load %arg1[%c51] : memref<128xf32, #tpu.memory_space<smem>>
    %c52 = arith.constant 52 : index
    %343 = memref.load %arg1[%c52] : memref<128xf32, #tpu.memory_space<smem>>
    %c53 = arith.constant 53 : index
    %344 = memref.load %arg1[%c53] : memref<128xf32, #tpu.memory_space<smem>>
    %c54 = arith.constant 54 : index
    %345 = memref.load %arg1[%c54] : memref<128xf32, #tpu.memory_space<smem>>
    %346 = vector.broadcast %339 : f32 to vector<8x128xf32>
    %347 = arith.subf %5, %346 : vector<8x128xf32>
    %348 = vector.broadcast %340 : f32 to vector<8x128xf32>
    %349 = arith.subf %7, %348 : vector<8x128xf32>
    %350 = vector.broadcast %341 : f32 to vector<8x128xf32>
    %351 = arith.subf %350, %5 : vector<8x128xf32>
    %352 = vector.broadcast %342 : f32 to vector<8x128xf32>
    %353 = arith.subf %352, %7 : vector<8x128xf32>
    %354 = arith.addf %347, %351 : vector<8x128xf32>
    %355 = arith.addf %349, %353 : vector<8x128xf32>
    %356 = arith.mulf %354, %355 : vector<8x128xf32>
    %357 = arith.minimumf %347, %349 : vector<8x128xf32>
    %358 = arith.minimumf %351, %353 : vector<8x128xf32>
    %359 = arith.minimumf %357, %358 : vector<8x128xf32>
    %360 = arith.maximumf %347, %349 : vector<8x128xf32>
    %361 = arith.maximumf %351, %353 : vector<8x128xf32>
    %362 = arith.maximumf %360, %361 : vector<8x128xf32>
    %363 = arith.cmpf ogt, %362, %9 : vector<8x128xf32>
    %364 = arith.cmpf ole, %362, %11 : vector<8x128xf32>
    %365 = arith.andi %363, %364 : vector<8x128xi1>
    %cst_30 = arith.constant 0.000000e+00 : f32
    %366 = vector.broadcast %cst_30 : f32 to vector<8x128xf32>
    %367 = arith.cmpf ogt, %359, %366 : vector<8x128xf32>
    %368 = vector.broadcast %344 : f32 to vector<8x128xf32>
    %369 = arith.subf %5, %368 : vector<8x128xf32>
    %370 = math.absf %369 : vector<8x128xf32>
    %371 = vector.broadcast %345 : f32 to vector<8x128xf32>
    %372 = arith.subf %7, %371 : vector<8x128xf32>
    %373 = math.absf %372 : vector<8x128xf32>
    %374 = arith.maximumf %370, %373 : vector<8x128xf32>
    %375 = arith.andi %365, %367 : vector<8x128xi1>
    %376 = arith.cmpf olt, %374, %13 : vector<8x128xf32>
    %377 = arith.andi %375, %376 : vector<8x128xi1>
    %cst_31 = arith.constant 0x4B18967F : f32
    %378 = vector.broadcast %cst_31 : f32 to vector<8x128xf32>
    %379 = arith.select %377, %356, %378 : vector<8x128xi1>, vector<8x128xf32>
    %380 = arith.cmpf olt, %379, %331 : vector<8x128xf32>
    %381 = arith.select %380, %379, %331 : vector<8x128xi1>, vector<8x128xf32>
    %382 = arith.select %380, %347, %332 : vector<8x128xi1>, vector<8x128xf32>
    %383 = arith.select %380, %349, %333 : vector<8x128xi1>, vector<8x128xf32>
    %384 = arith.select %380, %351, %334 : vector<8x128xi1>, vector<8x128xf32>
    %385 = arith.select %380, %353, %335 : vector<8x128xi1>, vector<8x128xf32>
    %386 = vector.broadcast %343 : f32 to vector<8x128xf32>
    %387 = arith.select %380, %386, %337 : vector<8x128xi1>, vector<8x128xf32>
    %388 = arith.ori %338, %377 : vector<8x128xi1>
    %c56 = arith.constant 56 : index
    %389 = memref.load %arg1[%c56] : memref<128xf32, #tpu.memory_space<smem>>
    %c57 = arith.constant 57 : index
    %390 = memref.load %arg1[%c57] : memref<128xf32, #tpu.memory_space<smem>>
    %c58 = arith.constant 58 : index
    %391 = memref.load %arg1[%c58] : memref<128xf32, #tpu.memory_space<smem>>
    %c59 = arith.constant 59 : index
    %392 = memref.load %arg1[%c59] : memref<128xf32, #tpu.memory_space<smem>>
    %c60 = arith.constant 60 : index
    %393 = memref.load %arg1[%c60] : memref<128xf32, #tpu.memory_space<smem>>
    %c61 = arith.constant 61 : index
    %394 = memref.load %arg1[%c61] : memref<128xf32, #tpu.memory_space<smem>>
    %c62 = arith.constant 62 : index
    %395 = memref.load %arg1[%c62] : memref<128xf32, #tpu.memory_space<smem>>
    %396 = vector.broadcast %389 : f32 to vector<8x128xf32>
    %397 = arith.subf %5, %396 : vector<8x128xf32>
    %398 = vector.broadcast %390 : f32 to vector<8x128xf32>
    %399 = arith.subf %7, %398 : vector<8x128xf32>
    %400 = vector.broadcast %391 : f32 to vector<8x128xf32>
    %401 = arith.subf %400, %5 : vector<8x128xf32>
    %402 = vector.broadcast %392 : f32 to vector<8x128xf32>
    %403 = arith.subf %402, %7 : vector<8x128xf32>
    %404 = arith.addf %397, %401 : vector<8x128xf32>
    %405 = arith.addf %399, %403 : vector<8x128xf32>
    %406 = arith.mulf %404, %405 : vector<8x128xf32>
    %407 = arith.minimumf %397, %399 : vector<8x128xf32>
    %408 = arith.minimumf %401, %403 : vector<8x128xf32>
    %409 = arith.minimumf %407, %408 : vector<8x128xf32>
    %410 = arith.maximumf %397, %399 : vector<8x128xf32>
    %411 = arith.maximumf %401, %403 : vector<8x128xf32>
    %412 = arith.maximumf %410, %411 : vector<8x128xf32>
    %413 = arith.cmpf ogt, %412, %9 : vector<8x128xf32>
    %414 = arith.cmpf ole, %412, %11 : vector<8x128xf32>
    %415 = arith.andi %413, %414 : vector<8x128xi1>
    %cst_32 = arith.constant 0.000000e+00 : f32
    %416 = vector.broadcast %cst_32 : f32 to vector<8x128xf32>
    %417 = arith.cmpf ogt, %409, %416 : vector<8x128xf32>
    %418 = vector.broadcast %394 : f32 to vector<8x128xf32>
    %419 = arith.subf %5, %418 : vector<8x128xf32>
    %420 = math.absf %419 : vector<8x128xf32>
    %421 = vector.broadcast %395 : f32 to vector<8x128xf32>
    %422 = arith.subf %7, %421 : vector<8x128xf32>
    %423 = math.absf %422 : vector<8x128xf32>
    %424 = arith.maximumf %420, %423 : vector<8x128xf32>
    %425 = arith.andi %415, %417 : vector<8x128xi1>
    %426 = arith.cmpf olt, %424, %13 : vector<8x128xf32>
    %427 = arith.andi %425, %426 : vector<8x128xi1>
    %cst_33 = arith.constant 0x4B18967F : f32
    %428 = vector.broadcast %cst_33 : f32 to vector<8x128xf32>
    %429 = arith.select %427, %406, %428 : vector<8x128xi1>, vector<8x128xf32>
    %430 = arith.cmpf olt, %429, %381 : vector<8x128xf32>
    %431 = arith.select %430, %397, %382 : vector<8x128xi1>, vector<8x128xf32>
    %432 = arith.select %430, %399, %383 : vector<8x128xi1>, vector<8x128xf32>
    %433 = arith.select %430, %401, %384 : vector<8x128xi1>, vector<8x128xf32>
    %434 = arith.select %430, %403, %385 : vector<8x128xi1>, vector<8x128xf32>
    %435 = vector.broadcast %393 : f32 to vector<8x128xf32>
    %436 = arith.select %430, %435, %387 : vector<8x128xi1>, vector<8x128xf32>
    %437 = arith.ori %388, %427 : vector<8x128xi1>
    %438 = arith.andi %437, %17 : vector<8x128xi1>
    %439 = arith.extui %438 : vector<8x128xi1> to vector<8x128xi32>
    %440 = arith.sitofp %439 : vector<8x128xi32> to vector<8x128xf32>
    %441 = arith.minimumf %431, %433 : vector<8x128xf32>
    %442 = arith.maximumf %431, %433 : vector<8x128xf32>
    %443 = arith.minimumf %432, %434 : vector<8x128xf32>
    %444 = arith.maximumf %432, %434 : vector<8x128xf32>
    %445 = arith.mulf %441, %443 : vector<8x128xf32>
    %446 = arith.mulf %442, %444 : vector<8x128xf32>
    %cst_34 = arith.constant 9.99999971E-10 : f32
    %447 = vector.broadcast %cst_34 : f32 to vector<8x128xf32>
    %448 = arith.addf %446, %447 : vector<8x128xf32>
    %449 = tpu.reciprocal %448 {approx = true} : vector<8x128xf32> -> vector<8x128xf32>
    %450 = arith.mulf %445, %449 : vector<8x128xf32>
    %cst_35 = arith.constant 0.000000e+00 : f32
    %451 = vector.broadcast %cst_35 : f32 to vector<8x128xf32>
    %452 = arith.maximumf %450, %451 : vector<8x128xf32>
    %453 = math.sqrt %452 : vector<8x128xf32>
    %cst_36 = arith.constant -1.000000e+00 : f32
    %454 = vector.broadcast %cst_36 : f32 to vector<8x128xf32>
    %455 = arith.select %437, %453, %454 : vector<8x128xi1>, vector<8x128xf32>
    %cst_37 = arith.constant 1.000000e+00 : f32
    %456 = vector.broadcast %cst_37 : f32 to vector<8x8x128xf32>
    %457 = arith.subf %456, %19 : vector<8x8x128xf32>
    %458 = arith.mulf %19, %19 : vector<8x8x128xf32>
    %cst_38 = arith.constant -7.500000e-01 : f32
    %459 = vector.broadcast %cst_38 : f32 to vector<8x8x128xf32>
    %460 = arith.mulf %459, %458 : vector<8x8x128xf32>
    %cst_39 = arith.constant 1.000000e-10 : f32
    %461 = vector.broadcast %cst_39 : f32 to vector<8x8x128xf32>
    %462 = arith.addf %457, %461 : vector<8x8x128xf32>
    %463 = math.log %462 : vector<8x8x128xf32>
    %464 = arith.mulf %460, %463 : vector<8x8x128xf32>
    %cst_40 = arith.constant dense<0.000000e+00> : vector<8x128xf32>
    %465 = vector.multi_reduction <add>, %464, %cst_40 [0] : vector<8x8x128xf32> to vector<8x128xf32>
    %cst_41 = arith.constant 0.000000e+00 : f32
    %466 = vector.broadcast %cst_41 : f32 to vector<8x128xf32>
    %467 = arith.select %437, %436, %466 : vector<8x128xi1>, vector<8x128xf32>
    %468 = arith.fptosi %467 : vector<8x128xf32> to vector<8x128xi32>
    %469 = tpu.iota {dimensions = array<i32: 0>} : vector<8x8x128xi32>
    %470 = vector.shape_cast %468 : vector<8x128xi32> to vector<1x8x128xi32>
    %471 = vector.broadcast %470 : vector<1x8x128xi32> to vector<8x8x128xi32>
    %472 = arith.cmpi eq, %469, %471 : vector<8x8x128xi32>
    %cst_42 = arith.constant 0.000000e+00 : f32
    %473 = vector.broadcast %cst_42 : f32 to vector<8x8x128xf32>
    %474 = arith.select %472, %19, %473 : vector<8x8x128xi1>, vector<8x8x128xf32>
    %cst_43 = arith.constant dense<0.000000e+00> : vector<8x128xf32>
    %475 = vector.multi_reduction <add>, %474, %cst_43 [0] : vector<8x8x128xf32> to vector<8x128xf32>
    %cst_44 = arith.constant 1.000000e+00 : f32
    %476 = vector.broadcast %cst_44 : f32 to vector<8x128xf32>
    %477 = arith.subf %476, %475 : vector<8x128xf32>
    %cst_45 = arith.constant -2.500000e-01 : f32
    %478 = vector.broadcast %cst_45 : f32 to vector<8x128xf32>
    %479 = arith.mulf %478, %477 : vector<8x128xf32>
    %480 = arith.mulf %479, %477 : vector<8x128xf32>
    %cst_46 = arith.constant 1.000000e-10 : f32
    %481 = vector.broadcast %cst_46 : f32 to vector<8x128xf32>
    %482 = arith.addf %475, %481 : vector<8x128xf32>
    %483 = math.log %482 : vector<8x128xf32>
    %484 = arith.mulf %480, %483 : vector<8x128xf32>
    %cst_47 = arith.constant 7.500000e-01 : f32
    %485 = vector.broadcast %cst_47 : f32 to vector<8x128xf32>
    %486 = arith.mulf %485, %475 : vector<8x128xf32>
    %487 = arith.mulf %486, %475 : vector<8x128xf32>
    %cst_48 = arith.constant 1.000000e-10 : f32
    %488 = vector.broadcast %cst_48 : f32 to vector<8x128xf32>
    %489 = arith.addf %477, %488 : vector<8x128xf32>
    %490 = math.log %489 : vector<8x128xf32>
    %491 = arith.mulf %487, %490 : vector<8x128xf32>
    %492 = arith.addf %484, %491 : vector<8x128xf32>
    %493 = arith.addf %465, %492 : vector<8x128xf32>
    %494 = arith.mulf %493, %15 : vector<8x128xf32>
    %cst_49 = arith.constant 0.000000e+00 : f32
    %495 = vector.broadcast %cst_49 : f32 to vector<8x128xf32>
    %496 = arith.maximumf %31, %495 : vector<8x128xf32>
    %497 = arith.mulf %31, %455 : vector<8x128xf32>
    %498 = arith.subf %496, %497 : vector<8x128xf32>
    %499 = math.absf %31 : vector<8x128xf32>
    %cst_50 = arith.constant 0.000000e+00 : f32
    %500 = vector.broadcast %cst_50 : f32 to vector<8x128xf32>
    %501 = arith.subf %500, %499 : vector<8x128xf32>
    %502 = math.exp %501 : vector<8x128xf32>
    %cst_51 = arith.constant 1.000000e+00 : f32
    %503 = vector.broadcast %cst_51 : f32 to vector<8x128xf32>
    %504 = arith.addf %503, %502 : vector<8x128xf32>
    %505 = math.log %504 : vector<8x128xf32>
    %506 = arith.addf %498, %505 : vector<8x128xf32>
    %cst_52 = arith.constant 0.000000e+00 : f32
    %507 = vector.broadcast %cst_52 : f32 to vector<8x128xf32>
    %508 = arith.select %438, %506, %507 : vector<8x128xi1>, vector<8x128xf32>
    %cst_53 = arith.constant -1.000000e+00 : f32
    %509 = vector.broadcast %cst_53 : f32 to vector<8x128xf32>
    %510 = arith.select %437, %431, %509 : vector<8x128xi1>, vector<8x128xf32>
    %cst_54 = arith.constant -1.000000e+00 : f32
    %511 = vector.broadcast %cst_54 : f32 to vector<8x128xf32>
    %512 = arith.select %437, %432, %511 : vector<8x128xi1>, vector<8x128xf32>
    %cst_55 = arith.constant -1.000000e+00 : f32
    %513 = vector.broadcast %cst_55 : f32 to vector<8x128xf32>
    %514 = arith.select %437, %433, %513 : vector<8x128xi1>, vector<8x128xf32>
    %cst_56 = arith.constant -1.000000e+00 : f32
    %515 = vector.broadcast %cst_56 : f32 to vector<8x128xf32>
    %516 = arith.select %437, %434, %515 : vector<8x128xi1>, vector<8x128xf32>
    %517 = arith.maximumf %23, %510 : vector<8x128xf32>
    %518 = arith.maximumf %27, %514 : vector<8x128xf32>
    %519 = arith.addf %517, %518 : vector<8x128xf32>
    %cst_57 = arith.constant 0.000000e+00 : f32
    %520 = vector.broadcast %cst_57 : f32 to vector<8x128xf32>
    %521 = arith.maximumf %519, %520 : vector<8x128xf32>
    %522 = arith.maximumf %25, %512 : vector<8x128xf32>
    %523 = arith.maximumf %29, %516 : vector<8x128xf32>
    %524 = arith.addf %522, %523 : vector<8x128xf32>
    %cst_58 = arith.constant 0.000000e+00 : f32
    %525 = vector.broadcast %cst_58 : f32 to vector<8x128xf32>
    %526 = arith.maximumf %524, %525 : vector<8x128xf32>
    %527 = arith.mulf %521, %526 : vector<8x128xf32>
    %528 = arith.minimumf %23, %510 : vector<8x128xf32>
    %529 = arith.minimumf %27, %514 : vector<8x128xf32>
    %530 = arith.addf %528, %529 : vector<8x128xf32>
    %cst_59 = arith.constant 0.000000e+00 : f32
    %531 = vector.broadcast %cst_59 : f32 to vector<8x128xf32>
    %532 = arith.maximumf %530, %531 : vector<8x128xf32>
    %533 = arith.minimumf %25, %512 : vector<8x128xf32>
    %534 = arith.minimumf %29, %516 : vector<8x128xf32>
    %535 = arith.addf %533, %534 : vector<8x128xf32>
    %cst_60 = arith.constant 0.000000e+00 : f32
    %536 = vector.broadcast %cst_60 : f32 to vector<8x128xf32>
    %537 = arith.maximumf %535, %536 : vector<8x128xf32>
    %538 = arith.mulf %532, %537 : vector<8x128xf32>
    %539 = arith.addf %27, %23 : vector<8x128xf32>
    %540 = arith.addf %29, %25 : vector<8x128xf32>
    %541 = arith.mulf %539, %540 : vector<8x128xf32>
    %542 = arith.addf %514, %510 : vector<8x128xf32>
    %543 = arith.addf %516, %512 : vector<8x128xf32>
    %544 = arith.mulf %542, %543 : vector<8x128xf32>
    %545 = arith.addf %541, %544 : vector<8x128xf32>
    %546 = arith.subf %545, %538 : vector<8x128xf32>
    %cst_61 = arith.constant 9.99999971E-10 : f32
    %547 = vector.broadcast %cst_61 : f32 to vector<8x128xf32>
    %548 = arith.addf %546, %547 : vector<8x128xf32>
    %549 = arith.divf %538, %548 : vector<8x128xf32>
    %cst_62 = arith.constant 1.000000e+00 : f32
    %550 = vector.broadcast %cst_62 : f32 to vector<8x128xf32>
    %551 = arith.subf %550, %549 : vector<8x128xf32>
    %552 = arith.subf %527, %546 : vector<8x128xf32>
    %cst_63 = arith.constant 9.99999971E-10 : f32
    %553 = vector.broadcast %cst_63 : f32 to vector<8x128xf32>
    %554 = arith.addf %527, %553 : vector<8x128xf32>
    %555 = arith.divf %552, %554 : vector<8x128xf32>
    %556 = arith.addf %551, %555 : vector<8x128xf32>
    %cst_64 = arith.constant 0.000000e+00 : f32
    %557 = vector.broadcast %cst_64 : f32 to vector<8x128xf32>
    %558 = arith.select %438, %556, %557 : vector<8x128xi1>, vector<8x128xf32>
    %559 = vector.shape_cast %494 : vector<8x128xf32> to vector<1x8x128xf32>
    %560 = vector.shape_cast %508 : vector<8x128xf32> to vector<1x8x128xf32>
    %561 = vector.shape_cast %558 : vector<8x128xf32> to vector<1x8x128xf32>
    %562 = vector.shape_cast %440 : vector<8x128xf32> to vector<1x8x128xf32>
    %563 = tpu.concatenate %559, %560, %561, %562 in 0 : vector<1x8x128xf32>, vector<1x8x128xf32>, vector<1x8x128xf32>, vector<1x8x128xf32> -> vector<4x8x128xf32>
    %c0_65 = arith.constant 0 : index
    %c0_66 = arith.constant 0 : index
    %c0_67 = arith.constant 0 : index
    %564 = vector.load %arg5[%c0_65, %c0_66, %c0_67] : memref<8x8x128xf32, #tpu.memory_space<vmem>>, vector<4x8x128xf32>
    %565 = arith.addf %564, %563 : vector<4x8x128xf32>
    %c0_68 = arith.constant 0 : index
    %c0_69 = arith.constant 0 : index
    %c0_70 = arith.constant 0 : index
    %566 = vector.load %arg5[%c0_68, %c0_69, %c0_70] : memref<8x8x128xf32, #tpu.memory_space<vmem>>, vector<4x8x128xf32>
    tpu.vector_store %arg5[%c0_68, %c0_69, %c0_70], %565 {strides = array<i32>} : memref<8x8x128xf32, #tpu.memory_space<vmem>>, vector<4x8x128xf32>,
    %c1_71 = arith.constant 1 : index
    %c0_72 = arith.constant 0 : index
    %c0_73 = arith.constant 0 : index
    %c0_74 = arith.constant 0 : index
    %567 = vector.load %arg3[%c1_71, %c0_72, %c0_73, %c0_74] : memref<2x8x8x128xf32, #tpu.memory_space<vmem>>, vector<1x8x8x128xf32>
    %568 = vector.shape_cast %567 : vector<1x8x8x128xf32> to vector<8x8x128xf32>
    %c1_75 = arith.constant 1 : index
    %c0_76 = arith.constant 0 : index
    %c0_77 = arith.constant 0 : index
    %c0_78 = arith.constant 0 : index
    %569 = vector.load %arg4[%c1_75, %c0_76, %c0_77, %c0_78] : memref<2x5x8x128xf32, #tpu.memory_space<vmem>>, vector<1x5x8x128xf32>
    %570 = vector.shape_cast %569 : vector<1x5x8x128xf32> to vector<5x8x128xf32>
    %571 = vector.extract_strided_slice %570 {offsets = [0, 0, 0], sizes = [1, 8, 128], strides = [1, 1, 1]} : vector<5x8x128xf32> to vector<1x8x128xf32>
    %572 = vector.shape_cast %571 : vector<1x8x128xf32> to vector<8x128xf32>
    %573 = vector.extract_strided_slice %570 {offsets = [1, 0, 0], sizes = [1, 8, 128], strides = [1, 1, 1]} : vector<5x8x128xf32> to vector<1x8x128xf32>
    %574 = vector.shape_cast %573 : vector<1x8x128xf32> to vector<8x128xf32>
    %575 = vector.extract_strided_slice %570 {offsets = [2, 0, 0], sizes = [1, 8, 128], strides = [1, 1, 1]} : vector<5x8x128xf32> to vector<1x8x128xf32>
    %576 = vector.shape_cast %575 : vector<1x8x128xf32> to vector<8x128xf32>
    %577 = vector.extract_strided_slice %570 {offsets = [3, 0, 0], sizes = [1, 8, 128], strides = [1, 1, 1]} : vector<5x8x128xf32> to vector<1x8x128xf32>
    %578 = vector.shape_cast %577 : vector<1x8x128xf32> to vector<8x128xf32>
    %579 = vector.extract_strided_slice %570 {offsets = [4, 0, 0], sizes = [1, 8, 128], strides = [1, 1, 1]} : vector<5x8x128xf32> to vector<1x8x128xf32>
    %580 = vector.shape_cast %579 : vector<1x8x128xf32> to vector<8x128xf32>
    %cst_79 = arith.constant 0x4B18967F : f32
    %581 = vector.broadcast %cst_79 : f32 to vector<8x128xf32>
    %cst_80 = arith.constant 0.000000e+00 : f32
    %582 = vector.broadcast %cst_80 : f32 to vector<8x128xf32>
    %cst_81 = arith.constant 0.000000e+00 : f32
    %583 = vector.broadcast %cst_81 : f32 to vector<8x128xf32>
    %cst_82 = arith.constant 0.000000e+00 : f32
    %584 = vector.broadcast %cst_82 : f32 to vector<8x128xf32>
    %cst_83 = arith.constant 0.000000e+00 : f32
    %585 = vector.broadcast %cst_83 : f32 to vector<8x128xf32>
    %cst_84 = arith.constant 0.000000e+00 : f32
    %586 = vector.broadcast %cst_84 : f32 to vector<8x128xf32>
    %false_85 = arith.constant false
    %587 = vector.broadcast %false_85 : i1 to vector<8x128xi1>
    %c64 = arith.constant 64 : index
    %588 = memref.load %arg1[%c64] : memref<128xf32, #tpu.memory_space<smem>>
    %c65 = arith.constant 65 : index
    %589 = memref.load %arg1[%c65] : memref<128xf32, #tpu.memory_space<smem>>
    %c66 = arith.constant 66 : index
    %590 = memref.load %arg1[%c66] : memref<128xf32, #tpu.memory_space<smem>>
    %c67 = arith.constant 67 : index
    %591 = memref.load %arg1[%c67] : memref<128xf32, #tpu.memory_space<smem>>
    %c68 = arith.constant 68 : index
    %592 = memref.load %arg1[%c68] : memref<128xf32, #tpu.memory_space<smem>>
    %c69 = arith.constant 69 : index
    %593 = memref.load %arg1[%c69] : memref<128xf32, #tpu.memory_space<smem>>
    %c70 = arith.constant 70 : index
    %594 = memref.load %arg1[%c70] : memref<128xf32, #tpu.memory_space<smem>>
    %595 = vector.broadcast %588 : f32 to vector<8x128xf32>
    %596 = arith.subf %5, %595 : vector<8x128xf32>
    %597 = vector.broadcast %589 : f32 to vector<8x128xf32>
    %598 = arith.subf %7, %597 : vector<8x128xf32>
    %599 = vector.broadcast %590 : f32 to vector<8x128xf32>
    %600 = arith.subf %599, %5 : vector<8x128xf32>
    %601 = vector.broadcast %591 : f32 to vector<8x128xf32>
    %602 = arith.subf %601, %7 : vector<8x128xf32>
    %603 = arith.addf %596, %600 : vector<8x128xf32>
    %604 = arith.addf %598, %602 : vector<8x128xf32>
    %605 = arith.mulf %603, %604 : vector<8x128xf32>
    %606 = arith.minimumf %596, %598 : vector<8x128xf32>
    %607 = arith.minimumf %600, %602 : vector<8x128xf32>
    %608 = arith.minimumf %606, %607 : vector<8x128xf32>
    %609 = arith.maximumf %596, %598 : vector<8x128xf32>
    %610 = arith.maximumf %600, %602 : vector<8x128xf32>
    %611 = arith.maximumf %609, %610 : vector<8x128xf32>
    %612 = arith.cmpf ogt, %611, %9 : vector<8x128xf32>
    %613 = arith.cmpf ole, %611, %11 : vector<8x128xf32>
    %614 = arith.andi %612, %613 : vector<8x128xi1>
    %cst_86 = arith.constant 0.000000e+00 : f32
    %615 = vector.broadcast %cst_86 : f32 to vector<8x128xf32>
    %616 = arith.cmpf ogt, %608, %615 : vector<8x128xf32>
    %617 = vector.broadcast %593 : f32 to vector<8x128xf32>
    %618 = arith.subf %5, %617 : vector<8x128xf32>
    %619 = math.absf %618 : vector<8x128xf32>
    %620 = vector.broadcast %594 : f32 to vector<8x128xf32>
    %621 = arith.subf %7, %620 : vector<8x128xf32>
    %622 = math.absf %621 : vector<8x128xf32>
    %623 = arith.maximumf %619, %622 : vector<8x128xf32>
    %624 = arith.andi %614, %616 : vector<8x128xi1>
    %625 = arith.cmpf olt, %623, %13 : vector<8x128xf32>
    %626 = arith.andi %624, %625 : vector<8x128xi1>
    %cst_87 = arith.constant 0x4B18967F : f32
    %627 = vector.broadcast %cst_87 : f32 to vector<8x128xf32>
    %628 = arith.select %626, %605, %627 : vector<8x128xi1>, vector<8x128xf32>
    %629 = arith.cmpf olt, %628, %581 : vector<8x128xf32>
    %630 = arith.select %629, %628, %581 : vector<8x128xi1>, vector<8x128xf32>
    %631 = arith.select %629, %596, %582 : vector<8x128xi1>, vector<8x128xf32>
    %632 = arith.select %629, %598, %583 : vector<8x128xi1>, vector<8x128xf32>
    %633 = arith.select %629, %600, %584 : vector<8x128xi1>, vector<8x128xf32>
    %634 = arith.select %629, %602, %585 : vector<8x128xi1>, vector<8x128xf32>
    %635 = vector.broadcast %592 : f32 to vector<8x128xf32>
    %636 = arith.select %629, %635, %586 : vector<8x128xi1>, vector<8x128xf32>
    %637 = arith.ori %587, %626 : vector<8x128xi1>
    %c72 = arith.constant 72 : index
    %638 = memref.load %arg1[%c72] : memref<128xf32, #tpu.memory_space<smem>>
    %c73 = arith.constant 73 : index
    %639 = memref.load %arg1[%c73] : memref<128xf32, #tpu.memory_space<smem>>
    %c74 = arith.constant 74 : index
    %640 = memref.load %arg1[%c74] : memref<128xf32, #tpu.memory_space<smem>>
    %c75 = arith.constant 75 : index
    %641 = memref.load %arg1[%c75] : memref<128xf32, #tpu.memory_space<smem>>
    %c76 = arith.constant 76 : index
    %642 = memref.load %arg1[%c76] : memref<128xf32, #tpu.memory_space<smem>>
    %c77 = arith.constant 77 : index
    %643 = memref.load %arg1[%c77] : memref<128xf32, #tpu.memory_space<smem>>
    %c78 = arith.constant 78 : index
    %644 = memref.load %arg1[%c78] : memref<128xf32, #tpu.memory_space<smem>>
    %645 = vector.broadcast %638 : f32 to vector<8x128xf32>
    %646 = arith.subf %5, %645 : vector<8x128xf32>
    %647 = vector.broadcast %639 : f32 to vector<8x128xf32>
    %648 = arith.subf %7, %647 : vector<8x128xf32>
    %649 = vector.broadcast %640 : f32 to vector<8x128xf32>
    %650 = arith.subf %649, %5 : vector<8x128xf32>
    %651 = vector.broadcast %641 : f32 to vector<8x128xf32>
    %652 = arith.subf %651, %7 : vector<8x128xf32>
    %653 = arith.addf %646, %650 : vector<8x128xf32>
    %654 = arith.addf %648, %652 : vector<8x128xf32>
    %655 = arith.mulf %653, %654 : vector<8x128xf32>
    %656 = arith.minimumf %646, %648 : vector<8x128xf32>
    %657 = arith.minimumf %650, %652 : vector<8x128xf32>
    %658 = arith.minimumf %656, %657 : vector<8x128xf32>
    %659 = arith.maximumf %646, %648 : vector<8x128xf32>
    %660 = arith.maximumf %650, %652 : vector<8x128xf32>
    %661 = arith.maximumf %659, %660 : vector<8x128xf32>
    %662 = arith.cmpf ogt, %661, %9 : vector<8x128xf32>
    %663 = arith.cmpf ole, %661, %11 : vector<8x128xf32>
    %664 = arith.andi %662, %663 : vector<8x128xi1>
    %cst_88 = arith.constant 0.000000e+00 : f32
    %665 = vector.broadcast %cst_88 : f32 to vector<8x128xf32>
    %666 = arith.cmpf ogt, %658, %665 : vector<8x128xf32>
    %667 = vector.broadcast %643 : f32 to vector<8x128xf32>
    %668 = arith.subf %5, %667 : vector<8x128xf32>
    %669 = math.absf %668 : vector<8x128xf32>
    %670 = vector.broadcast %644 : f32 to vector<8x128xf32>
    %671 = arith.subf %7, %670 : vector<8x128xf32>
    %672 = math.absf %671 : vector<8x128xf32>
    %673 = arith.maximumf %669, %672 : vector<8x128xf32>
    %674 = arith.andi %664, %666 : vector<8x128xi1>
    %675 = arith.cmpf olt, %673, %13 : vector<8x128xf32>
    %676 = arith.andi %674, %675 : vector<8x128xi1>
    %cst_89 = arith.constant 0x4B18967F : f32
    %677 = vector.broadcast %cst_89 : f32 to vector<8x128xf32>
    %678 = arith.select %676, %655, %677 : vector<8x128xi1>, vector<8x128xf32>
    %679 = arith.cmpf olt, %678, %630 : vector<8x128xf32>
    %680 = arith.select %679, %678, %630 : vector<8x128xi1>, vector<8x128xf32>
    %681 = arith.select %679, %646, %631 : vector<8x128xi1>, vector<8x128xf32>
    %682 = arith.select %679, %648, %632 : vector<8x128xi1>, vector<8x128xf32>
    %683 = arith.select %679, %650, %633 : vector<8x128xi1>, vector<8x128xf32>
    %684 = arith.select %679, %652, %634 : vector<8x128xi1>, vector<8x128xf32>
    %685 = vector.broadcast %642 : f32 to vector<8x128xf32>
    %686 = arith.select %679, %685, %636 : vector<8x128xi1>, vector<8x128xf32>
    %687 = arith.ori %637, %676 : vector<8x128xi1>
    %c80 = arith.constant 80 : index
    %688 = memref.load %arg1[%c80] : memref<128xf32, #tpu.memory_space<smem>>
    %c81 = arith.constant 81 : index
    %689 = memref.load %arg1[%c81] : memref<128xf32, #tpu.memory_space<smem>>
    %c82 = arith.constant 82 : index
    %690 = memref.load %arg1[%c82] : memref<128xf32, #tpu.memory_space<smem>>
    %c83 = arith.constant 83 : index
    %691 = memref.load %arg1[%c83] : memref<128xf32, #tpu.memory_space<smem>>
    %c84 = arith.constant 84 : index
    %692 = memref.load %arg1[%c84] : memref<128xf32, #tpu.memory_space<smem>>
    %c85 = arith.constant 85 : index
    %693 = memref.load %arg1[%c85] : memref<128xf32, #tpu.memory_space<smem>>
    %c86 = arith.constant 86 : index
    %694 = memref.load %arg1[%c86] : memref<128xf32, #tpu.memory_space<smem>>
    %695 = vector.broadcast %688 : f32 to vector<8x128xf32>
    %696 = arith.subf %5, %695 : vector<8x128xf32>
    %697 = vector.broadcast %689 : f32 to vector<8x128xf32>
    %698 = arith.subf %7, %697 : vector<8x128xf32>
    %699 = vector.broadcast %690 : f32 to vector<8x128xf32>
    %700 = arith.subf %699, %5 : vector<8x128xf32>
    %701 = vector.broadcast %691 : f32 to vector<8x128xf32>
    %702 = arith.subf %701, %7 : vector<8x128xf32>
    %703 = arith.addf %696, %700 : vector<8x128xf32>
    %704 = arith.addf %698, %702 : vector<8x128xf32>
    %705 = arith.mulf %703, %704 : vector<8x128xf32>
    %706 = arith.minimumf %696, %698 : vector<8x128xf32>
    %707 = arith.minimumf %700, %702 : vector<8x128xf32>
    %708 = arith.minimumf %706, %707 : vector<8x128xf32>
    %709 = arith.maximumf %696, %698 : vector<8x128xf32>
    %710 = arith.maximumf %700, %702 : vector<8x128xf32>
    %711 = arith.maximumf %709, %710 : vector<8x128xf32>
    %712 = arith.cmpf ogt, %711, %9 : vector<8x128xf32>
    %713 = arith.cmpf ole, %711, %11 : vector<8x128xf32>
    %714 = arith.andi %712, %713 : vector<8x128xi1>
    %cst_90 = arith.constant 0.000000e+00 : f32
    %715 = vector.broadcast %cst_90 : f32 to vector<8x128xf32>
    %716 = arith.cmpf ogt, %708, %715 : vector<8x128xf32>
    %717 = vector.broadcast %693 : f32 to vector<8x128xf32>
    %718 = arith.subf %5, %717 : vector<8x128xf32>
    %719 = math.absf %718 : vector<8x128xf32>
    %720 = vector.broadcast %694 : f32 to vector<8x128xf32>
    %721 = arith.subf %7, %720 : vector<8x128xf32>
    %722 = math.absf %721 : vector<8x128xf32>
    %723 = arith.maximumf %719, %722 : vector<8x128xf32>
    %724 = arith.andi %714, %716 : vector<8x128xi1>
    %725 = arith.cmpf olt, %723, %13 : vector<8x128xf32>
    %726 = arith.andi %724, %725 : vector<8x128xi1>
    %cst_91 = arith.constant 0x4B18967F : f32
    %727 = vector.broadcast %cst_91 : f32 to vector<8x128xf32>
    %728 = arith.select %726, %705, %727 : vector<8x128xi1>, vector<8x128xf32>
    %729 = arith.cmpf olt, %728, %680 : vector<8x128xf32>
    %730 = arith.select %729, %728, %680 : vector<8x128xi1>, vector<8x128xf32>
    %731 = arith.select %729, %696, %681 : vector<8x128xi1>, vector<8x128xf32>
    %732 = arith.select %729, %698, %682 : vector<8x128xi1>, vector<8x128xf32>
    %733 = arith.select %729, %700, %683 : vector<8x128xi1>, vector<8x128xf32>
    %734 = arith.select %729, %702, %684 : vector<8x128xi1>, vector<8x128xf32>
    %735 = vector.broadcast %692 : f32 to vector<8x128xf32>
    %736 = arith.select %729, %735, %686 : vector<8x128xi1>, vector<8x128xf32>
    %737 = arith.ori %687, %726 : vector<8x128xi1>
    %c88 = arith.constant 88 : index
    %738 = memref.load %arg1[%c88] : memref<128xf32, #tpu.memory_space<smem>>
    %c89 = arith.constant 89 : index
    %739 = memref.load %arg1[%c89] : memref<128xf32, #tpu.memory_space<smem>>
    %c90 = arith.constant 90 : index
    %740 = memref.load %arg1[%c90] : memref<128xf32, #tpu.memory_space<smem>>
    %c91 = arith.constant 91 : index
    %741 = memref.load %arg1[%c91] : memref<128xf32, #tpu.memory_space<smem>>
    %c92 = arith.constant 92 : index
    %742 = memref.load %arg1[%c92] : memref<128xf32, #tpu.memory_space<smem>>
    %c93 = arith.constant 93 : index
    %743 = memref.load %arg1[%c93] : memref<128xf32, #tpu.memory_space<smem>>
    %c94 = arith.constant 94 : index
    %744 = memref.load %arg1[%c94] : memref<128xf32, #tpu.memory_space<smem>>
    %745 = vector.broadcast %738 : f32 to vector<8x128xf32>
    %746 = arith.subf %5, %745 : vector<8x128xf32>
    %747 = vector.broadcast %739 : f32 to vector<8x128xf32>
    %748 = arith.subf %7, %747 : vector<8x128xf32>
    %749 = vector.broadcast %740 : f32 to vector<8x128xf32>
    %750 = arith.subf %749, %5 : vector<8x128xf32>
    %751 = vector.broadcast %741 : f32 to vector<8x128xf32>
    %752 = arith.subf %751, %7 : vector<8x128xf32>
    %753 = arith.addf %746, %750 : vector<8x128xf32>
    %754 = arith.addf %748, %752 : vector<8x128xf32>
    %755 = arith.mulf %753, %754 : vector<8x128xf32>
    %756 = arith.minimumf %746, %748 : vector<8x128xf32>
    %757 = arith.minimumf %750, %752 : vector<8x128xf32>
    %758 = arith.minimumf %756, %757 : vector<8x128xf32>
    %759 = arith.maximumf %746, %748 : vector<8x128xf32>
    %760 = arith.maximumf %750, %752 : vector<8x128xf32>
    %761 = arith.maximumf %759, %760 : vector<8x128xf32>
    %762 = arith.cmpf ogt, %761, %9 : vector<8x128xf32>
    %763 = arith.cmpf ole, %761, %11 : vector<8x128xf32>
    %764 = arith.andi %762, %763 : vector<8x128xi1>
    %cst_92 = arith.constant 0.000000e+00 : f32
    %765 = vector.broadcast %cst_92 : f32 to vector<8x128xf32>
    %766 = arith.cmpf ogt, %758, %765 : vector<8x128xf32>
    %767 = vector.broadcast %743 : f32 to vector<8x128xf32>
    %768 = arith.subf %5, %767 : vector<8x128xf32>
    %769 = math.absf %768 : vector<8x128xf32>
    %770 = vector.broadcast %744 : f32 to vector<8x128xf32>
    %771 = arith.subf %7, %770 : vector<8x128xf32>
    %772 = math.absf %771 : vector<8x128xf32>
    %773 = arith.maximumf %769, %772 : vector<8x128xf32>
    %774 = arith.andi %764, %766 : vector<8x128xi1>
    %775 = arith.cmpf olt, %773, %13 : vector<8x128xf32>
    %776 = arith.andi %774, %775 : vector<8x128xi1>
    %cst_93 = arith.constant 0x4B18967F : f32
    %777 = vector.broadcast %cst_93 : f32 to vector<8x128xf32>
    %778 = arith.select %776, %755, %777 : vector<8x128xi1>, vector<8x128xf32>
    %779 = arith.cmpf olt, %778, %730 : vector<8x128xf32>
    %780 = arith.select %779, %778, %730 : vector<8x128xi1>, vector<8x128xf32>
    %781 = arith.select %779, %746, %731 : vector<8x128xi1>, vector<8x128xf32>
    %782 = arith.select %779, %748, %732 : vector<8x128xi1>, vector<8x128xf32>
    %783 = arith.select %779, %750, %733 : vector<8x128xi1>, vector<8x128xf32>
    %784 = arith.select %779, %752, %734 : vector<8x128xi1>, vector<8x128xf32>
    %785 = vector.broadcast %742 : f32 to vector<8x128xf32>
    %786 = arith.select %779, %785, %736 : vector<8x128xi1>, vector<8x128xf32>
    %787 = arith.ori %737, %776 : vector<8x128xi1>
    %c96 = arith.constant 96 : index
    %788 = memref.load %arg1[%c96] : memref<128xf32, #tpu.memory_space<smem>>
    %c97 = arith.constant 97 : index
    %789 = memref.load %arg1[%c97] : memref<128xf32, #tpu.memory_space<smem>>
    %c98 = arith.constant 98 : index
    %790 = memref.load %arg1[%c98] : memref<128xf32, #tpu.memory_space<smem>>
    %c99 = arith.constant 99 : index
    %791 = memref.load %arg1[%c99] : memref<128xf32, #tpu.memory_space<smem>>
    %c100 = arith.constant 100 : index
    %792 = memref.load %arg1[%c100] : memref<128xf32, #tpu.memory_space<smem>>
    %c101 = arith.constant 101 : index
    %793 = memref.load %arg1[%c101] : memref<128xf32, #tpu.memory_space<smem>>
    %c102 = arith.constant 102 : index
    %794 = memref.load %arg1[%c102] : memref<128xf32, #tpu.memory_space<smem>>
    %795 = vector.broadcast %788 : f32 to vector<8x128xf32>
    %796 = arith.subf %5, %795 : vector<8x128xf32>
    %797 = vector.broadcast %789 : f32 to vector<8x128xf32>
    %798 = arith.subf %7, %797 : vector<8x128xf32>
    %799 = vector.broadcast %790 : f32 to vector<8x128xf32>
    %800 = arith.subf %799, %5 : vector<8x128xf32>
    %801 = vector.broadcast %791 : f32 to vector<8x128xf32>
    %802 = arith.subf %801, %7 : vector<8x128xf32>
    %803 = arith.addf %796, %800 : vector<8x128xf32>
    %804 = arith.addf %798, %802 : vector<8x128xf32>
    %805 = arith.mulf %803, %804 : vector<8x128xf32>
    %806 = arith.minimumf %796, %798 : vector<8x128xf32>
    %807 = arith.minimumf %800, %802 : vector<8x128xf32>
    %808 = arith.minimumf %806, %807 : vector<8x128xf32>
    %809 = arith.maximumf %796, %798 : vector<8x128xf32>
    %810 = arith.maximumf %800, %802 : vector<8x128xf32>
    %811 = arith.maximumf %809, %810 : vector<8x128xf32>
    %812 = arith.cmpf ogt, %811, %9 : vector<8x128xf32>
    %813 = arith.cmpf ole, %811, %11 : vector<8x128xf32>
    %814 = arith.andi %812, %813 : vector<8x128xi1>
    %cst_94 = arith.constant 0.000000e+00 : f32
    %815 = vector.broadcast %cst_94 : f32 to vector<8x128xf32>
    %816 = arith.cmpf ogt, %808, %815 : vector<8x128xf32>
    %817 = vector.broadcast %793 : f32 to vector<8x128xf32>
    %818 = arith.subf %5, %817 : vector<8x128xf32>
    %819 = math.absf %818 : vector<8x128xf32>
    %820 = vector.broadcast %794 : f32 to vector<8x128xf32>
    %821 = arith.subf %7, %820 : vector<8x128xf32>
    %822 = math.absf %821 : vector<8x128xf32>
    %823 = arith.maximumf %819, %822 : vector<8x128xf32>
    %824 = arith.andi %814, %816 : vector<8x128xi1>
    %825 = arith.cmpf olt, %823, %13 : vector<8x128xf32>
    %826 = arith.andi %824, %825 : vector<8x128xi1>
    %cst_95 = arith.constant 0x4B18967F : f32
    %827 = vector.broadcast %cst_95 : f32 to vector<8x128xf32>
    %828 = arith.select %826, %805, %827 : vector<8x128xi1>, vector<8x128xf32>
    %829 = arith.cmpf olt, %828, %780 : vector<8x128xf32>
    %830 = arith.select %829, %828, %780 : vector<8x128xi1>, vector<8x128xf32>
    %831 = arith.select %829, %796, %781 : vector<8x128xi1>, vector<8x128xf32>
    %832 = arith.select %829, %798, %782 : vector<8x128xi1>, vector<8x128xf32>
    %833 = arith.select %829, %800, %783 : vector<8x128xi1>, vector<8x128xf32>
    %834 = arith.select %829, %802, %784 : vector<8x128xi1>, vector<8x128xf32>
    %835 = vector.broadcast %792 : f32 to vector<8x128xf32>
    %836 = arith.select %829, %835, %786 : vector<8x128xi1>, vector<8x128xf32>
    %837 = arith.ori %787, %826 : vector<8x128xi1>
    %c104 = arith.constant 104 : index
    %838 = memref.load %arg1[%c104] : memref<128xf32, #tpu.memory_space<smem>>
    %c105 = arith.constant 105 : index
    %839 = memref.load %arg1[%c105] : memref<128xf32, #tpu.memory_space<smem>>
    %c106 = arith.constant 106 : index
    %840 = memref.load %arg1[%c106] : memref<128xf32, #tpu.memory_space<smem>>
    %c107 = arith.constant 107 : index
    %841 = memref.load %arg1[%c107] : memref<128xf32, #tpu.memory_space<smem>>
    %c108 = arith.constant 108 : index
    %842 = memref.load %arg1[%c108] : memref<128xf32, #tpu.memory_space<smem>>
    %c109 = arith.constant 109 : index
    %843 = memref.load %arg1[%c109] : memref<128xf32, #tpu.memory_space<smem>>
    %c110 = arith.constant 110 : index
    %844 = memref.load %arg1[%c110] : memref<128xf32, #tpu.memory_space<smem>>
    %845 = vector.broadcast %838 : f32 to vector<8x128xf32>
    %846 = arith.subf %5, %845 : vector<8x128xf32>
    %847 = vector.broadcast %839 : f32 to vector<8x128xf32>
    %848 = arith.subf %7, %847 : vector<8x128xf32>
    %849 = vector.broadcast %840 : f32 to vector<8x128xf32>
    %850 = arith.subf %849, %5 : vector<8x128xf32>
    %851 = vector.broadcast %841 : f32 to vector<8x128xf32>
    %852 = arith.subf %851, %7 : vector<8x128xf32>
    %853 = arith.addf %846, %850 : vector<8x128xf32>
    %854 = arith.addf %848, %852 : vector<8x128xf32>
    %855 = arith.mulf %853, %854 : vector<8x128xf32>
    %856 = arith.minimumf %846, %848 : vector<8x128xf32>
    %857 = arith.minimumf %850, %852 : vector<8x128xf32>
    %858 = arith.minimumf %856, %857 : vector<8x128xf32>
    %859 = arith.maximumf %846, %848 : vector<8x128xf32>
    %860 = arith.maximumf %850, %852 : vector<8x128xf32>
    %861 = arith.maximumf %859, %860 : vector<8x128xf32>
    %862 = arith.cmpf ogt, %861, %9 : vector<8x128xf32>
    %863 = arith.cmpf ole, %861, %11 : vector<8x128xf32>
    %864 = arith.andi %862, %863 : vector<8x128xi1>
    %cst_96 = arith.constant 0.000000e+00 : f32
    %865 = vector.broadcast %cst_96 : f32 to vector<8x128xf32>
    %866 = arith.cmpf ogt, %858, %865 : vector<8x128xf32>
    %867 = vector.broadcast %843 : f32 to vector<8x128xf32>
    %868 = arith.subf %5, %867 : vector<8x128xf32>
    %869 = math.absf %868 : vector<8x128xf32>
    %870 = vector.broadcast %844 : f32 to vector<8x128xf32>
    %871 = arith.subf %7, %870 : vector<8x128xf32>
    %872 = math.absf %871 : vector<8x128xf32>
    %873 = arith.maximumf %869, %872 : vector<8x128xf32>
    %874 = arith.andi %864, %866 : vector<8x128xi1>
    %875 = arith.cmpf olt, %873, %13 : vector<8x128xf32>
    %876 = arith.andi %874, %875 : vector<8x128xi1>
    %cst_97 = arith.constant 0x4B18967F : f32
    %877 = vector.broadcast %cst_97 : f32 to vector<8x128xf32>
    %878 = arith.select %876, %855, %877 : vector<8x128xi1>, vector<8x128xf32>
    %879 = arith.cmpf olt, %878, %830 : vector<8x128xf32>
    %880 = arith.select %879, %878, %830 : vector<8x128xi1>, vector<8x128xf32>
    %881 = arith.select %879, %846, %831 : vector<8x128xi1>, vector<8x128xf32>
    %882 = arith.select %879, %848, %832 : vector<8x128xi1>, vector<8x128xf32>
    %883 = arith.select %879, %850, %833 : vector<8x128xi1>, vector<8x128xf32>
    %884 = arith.select %879, %852, %834 : vector<8x128xi1>, vector<8x128xf32>
    %885 = vector.broadcast %842 : f32 to vector<8x128xf32>
    %886 = arith.select %879, %885, %836 : vector<8x128xi1>, vector<8x128xf32>
    %887 = arith.ori %837, %876 : vector<8x128xi1>
    %c112 = arith.constant 112 : index
    %888 = memref.load %arg1[%c112] : memref<128xf32, #tpu.memory_space<smem>>
    %c113 = arith.constant 113 : index
    %889 = memref.load %arg1[%c113] : memref<128xf32, #tpu.memory_space<smem>>
    %c114 = arith.constant 114 : index
    %890 = memref.load %arg1[%c114] : memref<128xf32, #tpu.memory_space<smem>>
    %c115 = arith.constant 115 : index
    %891 = memref.load %arg1[%c115] : memref<128xf32, #tpu.memory_space<smem>>
    %c116 = arith.constant 116 : index
    %892 = memref.load %arg1[%c116] : memref<128xf32, #tpu.memory_space<smem>>
    %c117 = arith.constant 117 : index
    %893 = memref.load %arg1[%c117] : memref<128xf32, #tpu.memory_space<smem>>
    %c118 = arith.constant 118 : index
    %894 = memref.load %arg1[%c118] : memref<128xf32, #tpu.memory_space<smem>>
    %895 = vector.broadcast %888 : f32 to vector<8x128xf32>
    %896 = arith.subf %5, %895 : vector<8x128xf32>
    %897 = vector.broadcast %889 : f32 to vector<8x128xf32>
    %898 = arith.subf %7, %897 : vector<8x128xf32>
    %899 = vector.broadcast %890 : f32 to vector<8x128xf32>
    %900 = arith.subf %899, %5 : vector<8x128xf32>
    %901 = vector.broadcast %891 : f32 to vector<8x128xf32>
    %902 = arith.subf %901, %7 : vector<8x128xf32>
    %903 = arith.addf %896, %900 : vector<8x128xf32>
    %904 = arith.addf %898, %902 : vector<8x128xf32>
    %905 = arith.mulf %903, %904 : vector<8x128xf32>
    %906 = arith.minimumf %896, %898 : vector<8x128xf32>
    %907 = arith.minimumf %900, %902 : vector<8x128xf32>
    %908 = arith.minimumf %906, %907 : vector<8x128xf32>
    %909 = arith.maximumf %896, %898 : vector<8x128xf32>
    %910 = arith.maximumf %900, %902 : vector<8x128xf32>
    %911 = arith.maximumf %909, %910 : vector<8x128xf32>
    %912 = arith.cmpf ogt, %911, %9 : vector<8x128xf32>
    %913 = arith.cmpf ole, %911, %11 : vector<8x128xf32>
    %914 = arith.andi %912, %913 : vector<8x128xi1>
    %cst_98 = arith.constant 0.000000e+00 : f32
    %915 = vector.broadcast %cst_98 : f32 to vector<8x128xf32>
    %916 = arith.cmpf ogt, %908, %915 : vector<8x128xf32>
    %917 = vector.broadcast %893 : f32 to vector<8x128xf32>
    %918 = arith.subf %5, %917 : vector<8x128xf32>
    %919 = math.absf %918 : vector<8x128xf32>
    %920 = vector.broadcast %894 : f32 to vector<8x128xf32>
    %921 = arith.subf %7, %920 : vector<8x128xf32>
    %922 = math.absf %921 : vector<8x128xf32>
    %923 = arith.maximumf %919, %922 : vector<8x128xf32>
    %924 = arith.andi %914, %916 : vector<8x128xi1>
    %925 = arith.cmpf olt, %923, %13 : vector<8x128xf32>
    %926 = arith.andi %924, %925 : vector<8x128xi1>
    %cst_99 = arith.constant 0x4B18967F : f32
    %927 = vector.broadcast %cst_99 : f32 to vector<8x128xf32>
    %928 = arith.select %926, %905, %927 : vector<8x128xi1>, vector<8x128xf32>
    %929 = arith.cmpf olt, %928, %880 : vector<8x128xf32>
    %930 = arith.select %929, %928, %880 : vector<8x128xi1>, vector<8x128xf32>
    %931 = arith.select %929, %896, %881 : vector<8x128xi1>, vector<8x128xf32>
    %932 = arith.select %929, %898, %882 : vector<8x128xi1>, vector<8x128xf32>
    %933 = arith.select %929, %900, %883 : vector<8x128xi1>, vector<8x128xf32>
    %934 = arith.select %929, %902, %884 : vector<8x128xi1>, vector<8x128xf32>
    %935 = vector.broadcast %892 : f32 to vector<8x128xf32>
    %936 = arith.select %929, %935, %886 : vector<8x128xi1>, vector<8x128xf32>
    %937 = arith.ori %887, %926 : vector<8x128xi1>
    %c120 = arith.constant 120 : index
    %938 = memref.load %arg1[%c120] : memref<128xf32, #tpu.memory_space<smem>>
    %c121 = arith.constant 121 : index
    %939 = memref.load %arg1[%c121] : memref<128xf32, #tpu.memory_space<smem>>
    %c122 = arith.constant 122 : index
    %940 = memref.load %arg1[%c122] : memref<128xf32, #tpu.memory_space<smem>>
    %c123 = arith.constant 123 : index
    %941 = memref.load %arg1[%c123] : memref<128xf32, #tpu.memory_space<smem>>
    %c124 = arith.constant 124 : index
    %942 = memref.load %arg1[%c124] : memref<128xf32, #tpu.memory_space<smem>>
    %c125 = arith.constant 125 : index
    %943 = memref.load %arg1[%c125] : memref<128xf32, #tpu.memory_space<smem>>
    %c126 = arith.constant 126 : index
    %944 = memref.load %arg1[%c126] : memref<128xf32, #tpu.memory_space<smem>>
    %945 = vector.broadcast %938 : f32 to vector<8x128xf32>
    %946 = arith.subf %5, %945 : vector<8x128xf32>
    %947 = vector.broadcast %939 : f32 to vector<8x128xf32>
    %948 = arith.subf %7, %947 : vector<8x128xf32>
    %949 = vector.broadcast %940 : f32 to vector<8x128xf32>
    %950 = arith.subf %949, %5 : vector<8x128xf32>
    %951 = vector.broadcast %941 : f32 to vector<8x128xf32>
    %952 = arith.subf %951, %7 : vector<8x128xf32>
    %953 = arith.addf %946, %950 : vector<8x128xf32>
    %954 = arith.addf %948, %952 : vector<8x128xf32>
    %955 = arith.mulf %953, %954 : vector<8x128xf32>
    %956 = arith.minimumf %946, %948 : vector<8x128xf32>
    %957 = arith.minimumf %950, %952 : vector<8x128xf32>
    %958 = arith.minimumf %956, %957 : vector<8x128xf32>
    %959 = arith.maximumf %946, %948 : vector<8x128xf32>
    %960 = arith.maximumf %950, %952 : vector<8x128xf32>
    %961 = arith.maximumf %959, %960 : vector<8x128xf32>
    %962 = arith.cmpf ogt, %961, %9 : vector<8x128xf32>
    %963 = arith.cmpf ole, %961, %11 : vector<8x128xf32>
    %964 = arith.andi %962, %963 : vector<8x128xi1>
    %cst_100 = arith.constant 0.000000e+00 : f32
    %965 = vector.broadcast %cst_100 : f32 to vector<8x128xf32>
    %966 = arith.cmpf ogt, %958, %965 : vector<8x128xf32>
    %967 = vector.broadcast %943 : f32 to vector<8x128xf32>
    %968 = arith.subf %5, %967 : vector<8x128xf32>
    %969 = math.absf %968 : vector<8x128xf32>
    %970 = vector.broadcast %944 : f32 to vector<8x128xf32>
    %971 = arith.subf %7, %970 : vector<8x128xf32>
    %972 = math.absf %971 : vector<8x128xf32>
    %973 = arith.maximumf %969, %972 : vector<8x128xf32>
    %974 = arith.andi %964, %966 : vector<8x128xi1>
    %975 = arith.cmpf olt, %973, %13 : vector<8x128xf32>
    %976 = arith.andi %974, %975 : vector<8x128xi1>
    %cst_101 = arith.constant 0x4B18967F : f32
    %977 = vector.broadcast %cst_101 : f32 to vector<8x128xf32>
    %978 = arith.select %976, %955, %977 : vector<8x128xi1>, vector<8x128xf32>
    %979 = arith.cmpf olt, %978, %930 : vector<8x128xf32>
    %980 = arith.select %979, %946, %931 : vector<8x128xi1>, vector<8x128xf32>
    %981 = arith.select %979, %948, %932 : vector<8x128xi1>, vector<8x128xf32>
    %982 = arith.select %979, %950, %933 : vector<8x128xi1>, vector<8x128xf32>
    %983 = arith.select %979, %952, %934 : vector<8x128xi1>, vector<8x128xf32>
    %984 = vector.broadcast %942 : f32 to vector<8x128xf32>
    %985 = arith.select %979, %984, %936 : vector<8x128xi1>, vector<8x128xf32>
    %986 = arith.ori %937, %976 : vector<8x128xi1>
    %987 = arith.andi %986, %17 : vector<8x128xi1>
    %988 = arith.extui %987 : vector<8x128xi1> to vector<8x128xi32>
    %989 = arith.sitofp %988 : vector<8x128xi32> to vector<8x128xf32>
    %990 = arith.minimumf %980, %982 : vector<8x128xf32>
    %991 = arith.maximumf %980, %982 : vector<8x128xf32>
    %992 = arith.minimumf %981, %983 : vector<8x128xf32>
    %993 = arith.maximumf %981, %983 : vector<8x128xf32>
    %994 = arith.mulf %990, %992 : vector<8x128xf32>
    %995 = arith.mulf %991, %993 : vector<8x128xf32>
    %cst_102 = arith.constant 9.99999971E-10 : f32
    %996 = vector.broadcast %cst_102 : f32 to vector<8x128xf32>
    %997 = arith.addf %995, %996 : vector<8x128xf32>
    %998 = tpu.reciprocal %997 {approx = true} : vector<8x128xf32> -> vector<8x128xf32>
    %999 = arith.mulf %994, %998 : vector<8x128xf32>
    %cst_103 = arith.constant 0.000000e+00 : f32
    %1000 = vector.broadcast %cst_103 : f32 to vector<8x128xf32>
    %1001 = arith.maximumf %999, %1000 : vector<8x128xf32>
    %1002 = math.sqrt %1001 : vector<8x128xf32>
    %cst_104 = arith.constant -1.000000e+00 : f32
    %1003 = vector.broadcast %cst_104 : f32 to vector<8x128xf32>
    %1004 = arith.select %986, %1002, %1003 : vector<8x128xi1>, vector<8x128xf32>
    %cst_105 = arith.constant 1.000000e+00 : f32
    %1005 = vector.broadcast %cst_105 : f32 to vector<8x8x128xf32>
    %1006 = arith.subf %1005, %568 : vector<8x8x128xf32>
    %1007 = arith.mulf %568, %568 : vector<8x8x128xf32>
    %cst_106 = arith.constant -7.500000e-01 : f32
    %1008 = vector.broadcast %cst_106 : f32 to vector<8x8x128xf32>
    %1009 = arith.mulf %1008, %1007 : vector<8x8x128xf32>
    %cst_107 = arith.constant 1.000000e-10 : f32
    %1010 = vector.broadcast %cst_107 : f32 to vector<8x8x128xf32>
    %1011 = arith.addf %1006, %1010 : vector<8x8x128xf32>
    %1012 = math.log %1011 : vector<8x8x128xf32>
    %1013 = arith.mulf %1009, %1012 : vector<8x8x128xf32>
    %cst_108 = arith.constant dense<0.000000e+00> : vector<8x128xf32>
    %1014 = vector.multi_reduction <add>, %1013, %cst_108 [0] : vector<8x8x128xf32> to vector<8x128xf32>
    %cst_109 = arith.constant 0.000000e+00 : f32
    %1015 = vector.broadcast %cst_109 : f32 to vector<8x128xf32>
    %1016 = arith.select %986, %985, %1015 : vector<8x128xi1>, vector<8x128xf32>
    %1017 = arith.fptosi %1016 : vector<8x128xf32> to vector<8x128xi32>
    %1018 = tpu.iota {dimensions = array<i32: 0>} : vector<8x8x128xi32>
    %1019 = vector.shape_cast %1017 : vector<8x128xi32> to vector<1x8x128xi32>
    %1020 = vector.broadcast %1019 : vector<1x8x128xi32> to vector<8x8x128xi32>
    %1021 = arith.cmpi eq, %1018, %1020 : vector<8x8x128xi32>
    %cst_110 = arith.constant 0.000000e+00 : f32
    %1022 = vector.broadcast %cst_110 : f32 to vector<8x8x128xf32>
    %1023 = arith.select %1021, %568, %1022 : vector<8x8x128xi1>, vector<8x8x128xf32>
    %cst_111 = arith.constant dense<0.000000e+00> : vector<8x128xf32>
    %1024 = vector.multi_reduction <add>, %1023, %cst_111 [0] : vector<8x8x128xf32> to vector<8x128xf32>
    %cst_112 = arith.constant 1.000000e+00 : f32
    %1025 = vector.broadcast %cst_112 : f32 to vector<8x128xf32>
    %1026 = arith.subf %1025, %1024 : vector<8x128xf32>
    %cst_113 = arith.constant -2.500000e-01 : f32
    %1027 = vector.broadcast %cst_113 : f32 to vector<8x128xf32>
    %1028 = arith.mulf %1027, %1026 : vector<8x128xf32>
    %1029 = arith.mulf %1028, %1026 : vector<8x128xf32>
    %cst_114 = arith.constant 1.000000e-10 : f32
    %1030 = vector.broadcast %cst_114 : f32 to vector<8x128xf32>
    %1031 = arith.addf %1024, %1030 : vector<8x128xf32>
    %1032 = math.log %1031 : vector<8x128xf32>
    %1033 = arith.mulf %1029, %1032 : vector<8x128xf32>
    %cst_115 = arith.constant 7.500000e-01 : f32
    %1034 = vector.broadcast %cst_115 : f32 to vector<8x128xf32>
    %1035 = arith.mulf %1034, %1024 : vector<8x128xf32>
    %1036 = arith.mulf %1035, %1024 : vector<8x128xf32>
    %cst_116 = arith.constant 1.000000e-10 : f32
    %1037 = vector.broadcast %cst_116 : f32 to vector<8x128xf32>
    %1038 = arith.addf %1026, %1037 : vector<8x128xf32>
    %1039 = math.log %1038 : vector<8x128xf32>
    %1040 = arith.mulf %1036, %1039 : vector<8x128xf32>
    %1041 = arith.addf %1033, %1040 : vector<8x128xf32>
    %1042 = arith.addf %1014, %1041 : vector<8x128xf32>
    %1043 = arith.mulf %1042, %15 : vector<8x128xf32>
    %cst_117 = arith.constant 0.000000e+00 : f32
    %1044 = vector.broadcast %cst_117 : f32 to vector<8x128xf32>
    %1045 = arith.maximumf %580, %1044 : vector<8x128xf32>
    %1046 = arith.mulf %580, %1004 : vector<8x128xf32>
    %1047 = arith.subf %1045, %1046 : vector<8x128xf32>
    %1048 = math.absf %580 : vector<8x128xf32>
    %cst_118 = arith.constant 0.000000e+00 : f32
    %1049 = vector.broadcast %cst_118 : f32 to vector<8x128xf32>
    %1050 = arith.subf %1049, %1048 : vector<8x128xf32>
    %1051 = math.exp %1050 : vector<8x128xf32>
    %cst_119 = arith.constant 1.000000e+00 : f32
    %1052 = vector.broadcast %cst_119 : f32 to vector<8x128xf32>
    %1053 = arith.addf %1052, %1051 : vector<8x128xf32>
    %1054 = math.log %1053 : vector<8x128xf32>
    %1055 = arith.addf %1047, %1054 : vector<8x128xf32>
    %cst_120 = arith.constant 0.000000e+00 : f32
    %1056 = vector.broadcast %cst_120 : f32 to vector<8x128xf32>
    %1057 = arith.select %987, %1055, %1056 : vector<8x128xi1>, vector<8x128xf32>
    %cst_121 = arith.constant -1.000000e+00 : f32
    %1058 = vector.broadcast %cst_121 : f32 to vector<8x128xf32>
    %1059 = arith.select %986, %980, %1058 : vector<8x128xi1>, vector<8x128xf32>
    %cst_122 = arith.constant -1.000000e+00 : f32
    %1060 = vector.broadcast %cst_122 : f32 to vector<8x128xf32>
    %1061 = arith.select %986, %981, %1060 : vector<8x128xi1>, vector<8x128xf32>
    %cst_123 = arith.constant -1.000000e+00 : f32
    %1062 = vector.broadcast %cst_123 : f32 to vector<8x128xf32>
    %1063 = arith.select %986, %982, %1062 : vector<8x128xi1>, vector<8x128xf32>
    %cst_124 = arith.constant -1.000000e+00 : f32
    %1064 = vector.broadcast %cst_124 : f32 to vector<8x128xf32>
    %1065 = arith.select %986, %983, %1064 : vector<8x128xi1>, vector<8x128xf32>
    %1066 = arith.maximumf %572, %1059 : vector<8x128xf32>
    %1067 = arith.maximumf %576, %1063 : vector<8x128xf32>
    %1068 = arith.addf %1066, %1067 : vector<8x128xf32>
    %cst_125 = arith.constant 0.000000e+00 : f32
    %1069 = vector.broadcast %cst_125 : f32 to vector<8x128xf32>
    %1070 = arith.maximumf %1068, %1069 : vector<8x128xf32>
    %1071 = arith.maximumf %574, %1061 : vector<8x128xf32>
    %1072 = arith.maximumf %578, %1065 : vector<8x128xf32>
    %1073 = arith.addf %1071, %1072 : vector<8x128xf32>
    %cst_126 = arith.constant 0.000000e+00 : f32
    %1074 = vector.broadcast %cst_126 : f32 to vector<8x128xf32>
    %1075 = arith.maximumf %1073, %1074 : vector<8x128xf32>
    %1076 = arith.mulf %1070, %1075 : vector<8x128xf32>
    %1077 = arith.minimumf %572, %1059 : vector<8x128xf32>
    %1078 = arith.minimumf %576, %1063 : vector<8x128xf32>
    %1079 = arith.addf %1077, %1078 : vector<8x128xf32>
    %cst_127 = arith.constant 0.000000e+00 : f32
    %1080 = vector.broadcast %cst_127 : f32 to vector<8x128xf32>
    %1081 = arith.maximumf %1079, %1080 : vector<8x128xf32>
    %1082 = arith.minimumf %574, %1061 : vector<8x128xf32>
    %1083 = arith.minimumf %578, %1065 : vector<8x128xf32>
    %1084 = arith.addf %1082, %1083 : vector<8x128xf32>
    %cst_128 = arith.constant 0.000000e+00 : f32
    %1085 = vector.broadcast %cst_128 : f32 to vector<8x128xf32>
    %1086 = arith.maximumf %1084, %1085 : vector<8x128xf32>
    %1087 = arith.mulf %1081, %1086 : vector<8x128xf32>
    %1088 = arith.addf %576, %572 : vector<8x128xf32>
    %1089 = arith.addf %578, %574 : vector<8x128xf32>
    %1090 = arith.mulf %1088, %1089 : vector<8x128xf32>
    %1091 = arith.addf %1063, %1059 : vector<8x128xf32>
    %1092 = arith.addf %1065, %1061 : vector<8x128xf32>
    %1093 = arith.mulf %1091, %1092 : vector<8x128xf32>
    %1094 = arith.addf %1090, %1093 : vector<8x128xf32>
    %1095 = arith.subf %1094, %1087 : vector<8x128xf32>
    %cst_129 = arith.constant 9.99999971E-10 : f32
    %1096 = vector.broadcast %cst_129 : f32 to vector<8x128xf32>
    %1097 = arith.addf %1095, %1096 : vector<8x128xf32>
    %1098 = arith.divf %1087, %1097 : vector<8x128xf32>
    %cst_130 = arith.constant 1.000000e+00 : f32
    %1099 = vector.broadcast %cst_130 : f32 to vector<8x128xf32>
    %1100 = arith.subf %1099, %1098 : vector<8x128xf32>
    %1101 = arith.subf %1076, %1095 : vector<8x128xf32>
    %cst_131 = arith.constant 9.99999971E-10 : f32
    %1102 = vector.broadcast %cst_131 : f32 to vector<8x128xf32>
    %1103 = arith.addf %1076, %1102 : vector<8x128xf32>
    %1104 = arith.divf %1101, %1103 : vector<8x128xf32>
    %1105 = arith.addf %1100, %1104 : vector<8x128xf32>
    %cst_132 = arith.constant 0.000000e+00 : f32
    %1106 = vector.broadcast %cst_132 : f32 to vector<8x128xf32>
    %1107 = arith.select %987, %1105, %1106 : vector<8x128xi1>, vector<8x128xf32>
    %1108 = vector.shape_cast %1043 : vector<8x128xf32> to vector<1x8x128xf32>
    %1109 = vector.shape_cast %1057 : vector<8x128xf32> to vector<1x8x128xf32>
    %1110 = vector.shape_cast %1107 : vector<8x128xf32> to vector<1x8x128xf32>
    %1111 = vector.shape_cast %989 : vector<8x128xf32> to vector<1x8x128xf32>
    %1112 = tpu.concatenate %1108, %1109, %1110, %1111 in 0 : vector<1x8x128xf32>, vector<1x8x128xf32>, vector<1x8x128xf32>, vector<1x8x128xf32> -> vector<4x8x128xf32>
    %c4_133 = arith.constant 4 : index
    %c0_134 = arith.constant 0 : index
    %c0_135 = arith.constant 0 : index
    %1113 = vector.load %arg5[%c4_133, %c0_134, %c0_135] : memref<8x8x128xf32, #tpu.memory_space<vmem>>, vector<4x8x128xf32>
    %1114 = arith.addf %1113, %1112 : vector<4x8x128xf32>
    %c4_136 = arith.constant 4 : index
    %c0_137 = arith.constant 0 : index
    %c0_138 = arith.constant 0 : index
    %1115 = vector.load %arg5[%c4_136, %c0_137, %c0_138] : memref<8x8x128xf32, #tpu.memory_space<vmem>>, vector<4x8x128xf32>
    tpu.vector_store %arg5[%c4_136, %c0_137, %c0_138], %1114 {strides = array<i32>} : memref<8x8x128xf32, #tpu.memory_space<vmem>>, vector<4x8x128xf32>,
    return
  }
  func.func @transform_0(%arg0: i32) -> i32 {
    %c0_i32 = arith.constant 0 : i32
    %c0_i32_0 = arith.constant 0 : i32
    return %c0_i32 : i32
  }
  func.func @transform_1(%arg0: i32) -> (i32, i32, i32) {
    %c0_i32 = arith.constant 0 : i32
    %c0_i32_0 = arith.constant 0 : i32
    %c0_i32_1 = arith.constant 0 : i32
    return %c0_i32, %arg0, %c0_i32_0 : i32, i32, i32
  }
  func.func @transform_2(%arg0: i32) -> (i32, i32, i32, i32) {
    %c0_i32 = arith.constant 0 : i32
    %c0_i32_0 = arith.constant 0 : i32
    %c0_i32_1 = arith.constant 0 : i32
    %c0_i32_2 = arith.constant 0 : i32
    return %c0_i32, %c0_i32_0, %arg0, %c0_i32_1 : i32, i32, i32, i32
  }
  func.func @transform_3(%arg0: i32) -> (i32, i32, i32, i32) {
    %c0_i32 = arith.constant 0 : i32
    %c0_i32_0 = arith.constant 0 : i32
    %c0_i32_1 = arith.constant 0 : i32
    %c0_i32_2 = arith.constant 0 : i32
    return %c0_i32, %c0_i32_0, %arg0, %c0_i32_1 : i32, i32, i32, i32
  }
  func.func @transform_4(%arg0: i32) -> (i32, i32, i32) {
    %c0_i32 = arith.constant 0 : i32
    %c0_i32_0 = arith.constant 0 : i32
    %c0_i32_1 = arith.constant 0 : i32
    %c0_i32_2 = arith.constant 0 : i32
    return %c0_i32, %c0_i32_0, %c0_i32_1 : i32, i32, i32
  }
}

</mosaic_0001>

<llo_original>
// kernel: tpu_custom_call.1
$region0: #{tpu_custom_call.1}
  #allocation0 [shape = 'u32[]', space=smem, size = 0x4, offset = 0x4, fixed_abs, tag = 'smem constant byte address 0x4 - core index']
  #allocation1 [shape = 'u32[144,128]{1,0:T(1,128)}', space=vmem, size = 0x12000, scoped, tag = 'internal scratch']
  %s0 = inlined_call_operand.hbm [shape: f32[128], index: 0, kind: input, shape index: {}]
  %s1 = inlined_call_operand.hbm [shape: f32[6,16,128], index: 1, kind: input, shape index: {}]
  %s2 = inlined_call_operand.hbm [shape: f32[2,8,16,128], index: 2, kind: input, shape index: {}]
  %s3 = inlined_call_operand.hbm [shape: f32[2,5,16,128], index: 3, kind: input, shape index: {}]
  %s4 = inlined_call_operand.hbm [shape: f32[8,8,128], index: 4, kind: output, shape index: {}]
  %s5 = sld [smem:[#allocation0]]
  $region69: #{tpu_custom_call.1} parent=0
    _
  %s7 = ssub.s32 1, %s5
  %s8 = scalar_select 0, %s7, %s5
  $region1: #{tpu_custom_call.1} parent=0
    #allocation2 [shape = 'u8[512]{0}', space=smem, size = 0x200, scoped, tag = 'input window, operand 0, single buffered']
    #allocation3 [shape = 's32[2]{0}', space=sflag, size = 0x8, scoped, tag = 'scoped memory for tpu_custom_call.1']
    #allocation4 [shape = 's32[2]{0}', space=sflag, size = 0x8, scoped, tag = 'scoped memory for tpu_custom_call.1']
    #allocation5 [shape = 's32[2]{0}', space=sflag, size = 0x8, scoped, tag = 'scoped memory for tpu_custom_call.1']
    #allocation6 [shape = 'u8[49152]{0}', space=vmem, size = 0xc000, scoped, tag = 'input window, operand 1']
    #allocation7 [shape = 'u8[131072]{0}', space=vmem, size = 0x20000, scoped, tag = 'input window, operand 2']
    #allocation8 [shape = 's32[2]{0}', space=sflag, size = 0x8, scoped, tag = 'scoped memory for tpu_custom_call.1']
    #allocation9 [shape = 'u8[81920]{0}', space=vmem, size = 0x14000, scoped, tag = 'input window, operand 3']
    #allocation10 [shape = 'u8[32768]{0}', space=vmem, size = 0x8000, scoped, tag = 'output window, operand 0, single buffered']
    %9 = vsyncpa [#allocation5], 0
    %10 = vsyncpa [#allocation3], 0
    %s11 = scalar_lea.sflag [#allocation3], 1
    %12 = vsyncpa %s11, 0
    %13 = vsyncpa [#allocation8], 0
    %s14 = scalar_lea.sflag [#allocation8], 1
    %15 = vsyncpa %s14, 0
    %16 = vsyncpa [#allocation4], 0
    loop: start=0, step=1, limit=4
    $region2: #{tpu_custom_call.1} parent=1 // loop_pre_header
      _
    $region3: #{tpu_custom_call.1} parent=1 // loop_header
      %s18 = sphi 0, %s22
      %p19 = scmp.ge.s32.totalorder %s18, 4
      %s26 = sphi 0, %s26
      %s28 = sphi 0, %s26
      %s29 = sphi 0, %s28
      %s43 = sphi 0, %s29
      %s49 = sphi 0, %s51
      %s52 = sphi 0, %s49
      %s53 = sphi 0, %s52
      %s69 = sphi 0, %s53
      %s75 = sphi 0, %s77
      %s78 = sphi 0, %s75
      %s79 = sphi 0, %s78
      %s95 = sphi 0, %s79
      %s101 = sphi 0, %s103
      %s104 = sphi 0, %s101
      %s105 = sphi 0, %s104
      %s121 = sphi 0, %s105
      %s125 = sphi 0, %s125
      %s127 = sphi 0, %s125
      %s128 = sphi 0, %s127
      %s142 = sphi 0, %s128
    $region4: #{tpu_custom_call.1} parent=1 // loop_header_branch
      %21 = sbr.rel (%p19) target = $region8
    $region5: #{tpu_custom_call.1} parent=1 // loop_body
      %s23 = ssub.s32 %s18, 1
      %s24 = ssub.s32 %s18, 2
      %s25 = sadd.s32 %s18, 1
      %s27 = sadd.s32 %s26, 1
      %p30 = scmp.eq.s32.totalorder %s18, 1
      %p31 = scmp.ne.s32.totalorder %s26, %s28
      %p32 = scmp.eq.s32.totalorder %s18, 0
      %p33 = por %p31, %p32
      %p34 = scmp.ne.s32.totalorder %s26, %s28
      %p35 = scmp.eq.s32.totalorder %s23, 1
      %p36 = por %p34, %p35
      %p37 = scmp.ne.s32.totalorder %s28, %s29
      %p38 = scmp.eq.s32.totalorder %s23, 0
      %p39 = por %p37, %p38
      %p40 = scmp.ne.s32.totalorder %s28, %s29
      %p41 = scmp.eq.s32.totalorder %s24, 1
      %p42 = por %p40, %p41
      %p44 = scmp.ne.s32.totalorder %s29, %s43
      %p45 = scmp.eq.s32.totalorder %s24, 0
      %p46 = por %p44, %p45
      %s47 = ssub.s32 %s18, %s25
      %p48 = scmp.eq.s32.totalorder %s47, 0
      %s50 = sadd.s32 %s49, 1
      %s51 = scalar_select %p48, %s49, %s50
      %p54 = pneg %p48
      %p55 = scmp.eq.s32.totalorder %s18, 1
      %p56 = por %p54, %p55
      %p57 = scmp.ne.s32.totalorder %s49, %s52
      %p58 = scmp.eq.s32.totalorder %s18, 0
      %p59 = por %p57, %p58
      %p60 = scmp.ne.s32.totalorder %s49, %s52
      %p61 = scmp.eq.s32.totalorder %s23, 1
      %p62 = por %p60, %p61
      %p63 = scmp.ne.s32.totalorder %s52, %s53
      %p64 = scmp.eq.s32.totalorder %s23, 0
      %p65 = por %p63, %p64
      %p66 = scmp.ne.s32.totalorder %s52, %s53
      %p67 = scmp.eq.s32.totalorder %s24, 1
      %p68 = por %p66, %p67
      %p70 = scmp.ne.s32.totalorder %s53, %s69
      %p71 = scmp.eq.s32.totalorder %s24, 0
      %p72 = por %p70, %p71
      %s73 = ssub.s32 %s18, %s25
      %p74 = scmp.eq.s32.totalorder %s73, 0
      %s76 = sadd.s32 %s75, 1
      %s77 = scalar_select %p74, %s75, %s76
      %p80 = pneg %p74
      %p81 = scmp.eq.s32.totalorder %s18, 1
      %p82 = por %p80, %p81
      %p83 = scmp.ne.s32.totalorder %s75, %s78
      %p84 = scmp.eq.s32.totalorder %s18, 0
      %p85 = por %p83, %p84
      %p86 = scmp.ne.s32.totalorder %s75, %s78
      %p87 = scmp.eq.s32.totalorder %s23, 1
      %p88 = por %p86, %p87
      %p89 = scmp.ne.s32.totalorder %s78, %s79
      %p90 = scmp.eq.s32.totalorder %s23, 0
      %p91 = por %p89, %p90
      %p92 = scmp.ne.s32.totalorder %s78, %s79
      %p93 = scmp.eq.s32.totalorder %s24, 1
      %p94 = por %p92, %p93
      %p96 = scmp.ne.s32.totalorder %s79, %s95
      %p97 = scmp.eq.s32.totalorder %s24, 0
      %p98 = por %p96, %p97
      %s99 = ssub.s32 %s18, %s25
      %p100 = scmp.eq.s32.totalorder %s99, 0
      %s102 = sadd.s32 %s101, 1
      %s103 = scalar_select %p100, %s101, %s102
      %p106 = pneg %p100
      %p107 = scmp.eq.s32.totalorder %s18, 1
      %p108 = por %p106, %p107
      %p109 = scmp.ne.s32.totalorder %s101, %s104
      %p110 = scmp.eq.s32.totalorder %s18, 0
      %p111 = por %p109, %p110
      %p112 = scmp.ne.s32.totalorder %s101, %s104
      %p113 = scmp.eq.s32.totalorder %s23, 1
      %p114 = por %p112, %p113
      %p115 = scmp.ne.s32.totalorder %s104, %s105
      %p116 = scmp.eq.s32.totalorder %s23, 0
      %p117 = por %p115, %p116
      %p118 = scmp.ne.s32.totalorder %s104, %s105
      %p119 = scmp.eq.s32.totalorder %s24, 1
      %p120 = por %p118, %p119
      %p122 = scmp.ne.s32.totalorder %s105, %s121
      %p123 = scmp.eq.s32.totalorder %s24, 0
      %p124 = por %p122, %p123
      %s126 = sadd.s32 %s125, 1
      %p129 = scmp.eq.s32.totalorder %s18, 1
      %p130 = scmp.ne.s32.totalorder %s125, %s127
      %p131 = scmp.eq.s32.totalorder %s18, 0
      %p132 = por %p130, %p131
      %p133 = scmp.ne.s32.totalorder %s125, %s127
      %p134 = scmp.eq.s32.totalorder %s23, 1
      %p135 = por %p133, %p134
      %p136 = scmp.ne.s32.totalorder %s127, %s128
      %p137 = scmp.eq.s32.totalorder %s23, 0
      %p138 = por %p136, %p137
      %p139 = scmp.ne.s32.totalorder %s127, %s128
      %p140 = scmp.eq.s32.totalorder %s24, 1
      %p141 = por %p139, %p140
      %p143 = scmp.ne.s32.totalorder %s128, %s142
      %p144 = scmp.eq.s32.totalorder %s24, 0
      %p145 = por %p143, %p144
      %p146 = scmp.le.s32.totalorder 1, %s18
      %p147 = scmp.lt.s32.totalorder %s18, 3
      %p148 = pnand %p146, %p147
      %p149 = pneg %p148
      // Predicated region
      $region9: #{tpu_custom_call.1} parent=5 // pred_check
        _
      $region10: #{tpu_custom_call.1} parent=5 // pred_check_branch
        %151 = sbr.rel (%p148) target = $region12
      $region11: #{tpu_custom_call.1} parent=5 // pred_region
        %s152 = ssub.s32 %s18, 1
        // Predicated region
        $region13: #{tpu_custom_call.1} parent=11 // pred_check
          %p153 = pneg %p39
        $region14: #{tpu_custom_call.1} parent=11 // pred_check_branch
          %155 = sbr.rel (%p153) target = $region16
        $region15: #{tpu_custom_call.1} parent=11 // pred_region
          %s157 = ssub.s32 16, 16
          %158 = vsyncadd [#allocation5], %s157
          %161 = dma.hbm_to_smem %s0, 16, [#allocation2], [#allocation5]
        $region16: #{tpu_custom_call.1} parent=11 // pred_fallthru
          _
      $region12: #{tpu_custom_call.1} parent=5 // pred_fallthru
        _
      %p162 = scmp.lt.s32.totalorder %s18, 2
      // Predicated region
      $region17: #{tpu_custom_call.1} parent=5 // pred_check
        %p163 = pneg %p162
      $region18: #{tpu_custom_call.1} parent=5 // pred_check_branch
        %165 = sbr.rel (%p163) target = $region20
      $region19: #{tpu_custom_call.1} parent=5 // pred_region
        // Predicated region
        $region21: #{tpu_custom_call.1} parent=19 // pred_check
          %p166 = pneg %p59
        $region22: #{tpu_custom_call.1} parent=19 // pred_check_branch
          %168 = sbr.rel (%p166) target = $region24
        $region23: #{tpu_custom_call.1} parent=19 // pred_region
          %s169 = sand.u32 %s49, 1
          %s170 = scalar_lea.sflag [#allocation3], %s169
          %s171 = sand.u32 %s49, 1
          %s172 = smul.addr %s171, 48
          %s173 = scalar_lea.vmem [#allocation6], %s172
          %s175 = ssub.s32 768, 768
          %176 = vsyncadd %s170, %s175
          %s177 = smul.addr %s18, 128
          %s178 = scalar_lea.hbm %s1, %s177
          %s179 = sshll.u32 %s173, 4
          %s180 = int_to_ptr.vmem [resolvable:$true] %s179
          %185 = dma.hbm_to_vmem [thread:$0]  %s178, 768, %s180, %s170, 256, 128, 8
        $region24: #{tpu_custom_call.1} parent=19 // pred_fallthru
          _
        // Predicated region
        $region25: #{tpu_custom_call.1} parent=19 // pred_check
          %p186 = pneg %p85
        $region26: #{tpu_custom_call.1} parent=19 // pred_check_branch
          %188 = sbr.rel (%p186) target = $region28
        $region27: #{tpu_custom_call.1} parent=19 // pred_region
          %s189 = sand.u32 %s18, 1
          %s190 = scalar_lea.sflag [#allocation8], %s189
          %s191 = sand.u32 %s75, 1
          %s192 = smul.addr %s191, 128
          %s193 = scalar_lea.vmem [#allocation7], %s192
          %s195 = ssub.s32 2048, 2048
          %196 = vsyncadd %s190, %s195
          %s197 = smul.addr %s18, 128
          %s198 = scalar_lea.hbm %s2, %s197
          %s199 = sshll.u32 %s193, 4
          %s200 = int_to_ptr.vmem [resolvable:$true] %s199
          %205 = dma.hbm_to_vmem [thread:$0]  %s198, 2048, %s200, %s190, 256, 128, 8
        $region28: #{tpu_custom_call.1} parent=19 // pred_fallthru
          _
        // Predicated region
        $region29: #{tpu_custom_call.1} parent=19 // pred_check
          %p206 = pneg %p111
        $region30: #{tpu_custom_call.1} parent=19 // pred_check_branch
          %208 = sbr.rel (%p206) target = $region32
        $region31: #{tpu_custom_call.1} parent=19 // pred_region
          %s209 = sand.u32 %s18, 1
          %s210 = scalar_lea.sflag [#allocation8], %s209
          %s211 = sand.u32 %s101, 1
          %s212 = smul.addr %s211, 80
          %s213 = scalar_lea.vmem [#allocation9], %s212
          %s215 = ssub.s32 1280, 1280
          %216 = vsyncadd %s210, %s215
          %s217 = smul.addr %s18, 128
          %s218 = scalar_lea.hbm %s3, %s217
          %s219 = sshll.u32 %s213, 4
          %s220 = int_to_ptr.vmem [resolvable:$true] %s219
          %225 = dma.hbm_to_vmem [thread:$0]  %s218, 1280, %s220, %s210, 256, 128, 8
        $region32: #{tpu_custom_call.1} parent=19 // pred_fallthru
          _
      $region20: #{tpu_custom_call.1} parent=5 // pred_fallthru
        _
      %p226 = scmp.le.s32.totalorder 1, %s18
      %p227 = scmp.lt.s32.totalorder %s18, 3
      %p228 = pnand %p226, %p227
      %p229 = pneg %p228
      // Predicated region
      $region33: #{tpu_custom_call.1} parent=5 // pred_check
        _
      $region34: #{tpu_custom_call.1} parent=5 // pred_check_branch
        %231 = sbr.rel (%p228) target = $region36
      $region35: #{tpu_custom_call.1} parent=5 // pred_region
        %s232 = ssub.s32 %s18, 1
        // Predicated region
        $region37: #{tpu_custom_call.1} parent=35 // pred_check
          %p233 = pneg %p39
        $region38: #{tpu_custom_call.1} parent=35 // pred_check_branch
          %235 = sbr.rel (%p233) target = $region40
        $region39: #{tpu_custom_call.1} parent=35 // pred_region
          %236 = dma.done [#allocation5], 16
        $region40: #{tpu_custom_call.1} parent=35 // pred_fallthru
          _
        %s237 = sand.u32 %s52, 1
        %s238 = scalar_lea.sflag [#allocation3], %s237
        %s239 = sand.u32 %s52, 1
        %s240 = smul.addr %s239, 48
        %s241 = scalar_lea.vmem [#allocation6], %s240
        // Predicated region
        $region41: #{tpu_custom_call.1} parent=35 // pred_check
          %p242 = pneg %p65
        $region42: #{tpu_custom_call.1} parent=35 // pred_check_branch
          %244 = sbr.rel (%p242) target = $region44
        $region43: #{tpu_custom_call.1} parent=35 // pred_region
          %245 = dma.done %s238, 768
        $region44: #{tpu_custom_call.1} parent=35 // pred_fallthru
          _
        %s246 = sand.u32 %s23, 1
        %s247 = scalar_lea.sflag [#allocation8], %s246
        %s248 = sand.u32 %s78, 1
        %s249 = smul.addr %s248, 128
        %s250 = scalar_lea.vmem [#allocation7], %s249
        // Predicated region
        $region45: #{tpu_custom_call.1} parent=35 // pred_check
          %p251 = pneg %p91
        $region46: #{tpu_custom_call.1} parent=35 // pred_check_branch
          %253 = sbr.rel (%p251) target = $region48
        $region47: #{tpu_custom_call.1} parent=35 // pred_region
          %254 = dma.done %s247, 2048
        $region48: #{tpu_custom_call.1} parent=35 // pred_fallthru
          _
        %s255 = sand.u32 %s23, 1
        %s256 = scalar_lea.sflag [#allocation8], %s255
        %s257 = sand.u32 %s104, 1
        %s258 = smul.addr %s257, 80
        %s259 = scalar_lea.vmem [#allocation9], %s258
        // Predicated region
        $region49: #{tpu_custom_call.1} parent=35 // pred_check
          %p260 = pneg %p117
        $region50: #{tpu_custom_call.1} parent=35 // pred_check_branch
          %262 = sbr.rel (%p260) target = $region52
        $region51: #{tpu_custom_call.1} parent=35 // pred_region
          %263 = dma.done %s256, 1280
        $region52: #{tpu_custom_call.1} parent=35 // pred_fallthru
          _
        %264 = sfence
        %p265 = pneg %p39
        %p266 = pneg %p36
        %s267 = sand.u32 %s52, 1
        %s268 = scalar_lea.sflag [#allocation3], %s267
        %s269 = sand.u32 %s52, 1
        %s270 = smul.addr %s269, 48
        %s271 = scalar_lea.vmem [#allocation6], %s270
        %p272 = pneg %p65
        %p273 = pneg %p62
        %s274 = sand.u32 %s23, 1
        %s275 = scalar_lea.sflag [#allocation8], %s274
        %s276 = sand.u32 %s78, 1
        %s277 = smul.addr %s276, 128
        %s278 = scalar_lea.vmem [#allocation7], %s277
        %p279 = pneg %p91
        %p280 = pneg %p88
        %s281 = sand.u32 %s23, 1
        %s282 = scalar_lea.sflag [#allocation8], %s281
        %s283 = sand.u32 %s104, 1
        %s284 = smul.addr %s283, 80
        %s285 = scalar_lea.vmem [#allocation9], %s284
        %p286 = pneg %p117
        %p287 = pneg %p114
        %p288 = pneg %p138
        %p289 = pneg %p135
        %p290 = scmp.eq.s32.totalorder %s23, 0
        // Predicated region
        $region53: #{tpu_custom_call.1} parent=35 // pred_check
          %p291 = pneg %p290
        $region54: #{tpu_custom_call.1} parent=35 // pred_check_branch
          %293 = sbr.rel (%p291) target = $region56
        $region55: #{tpu_custom_call.1} parent=35 // pred_region
          %294 = vst [vmem:[#allocation10] sm:$0xff] 0.0
          %295 = vst [vmem:[#allocation10 + $0x8] sm:$0xff] 0.0
          %296 = vst [vmem:[#allocation10 + $0x10] sm:$0xff] 0.0
          %297 = vst [vmem:[#allocation10 + $0x18] sm:$0xff] 0.0
          %298 = vst [vmem:[#allocation10 + $0x20] sm:$0xff] 0.0
          %299 = vst [vmem:[#allocation10 + $0x28] sm:$0xff] 0.0
          %300 = vst [vmem:[#allocation10 + $0x30] sm:$0xff] 0.0
          %301 = vst [vmem:[#allocation10 + $0x38] sm:$0xff] 0.0
        $region56: #{tpu_custom_call.1} parent=35 // pred_fallthru
          _
        %v302 = vld [vmem:[%s241] sm:$0xff]
        %v303 = vld [vmem:[%s241 + $0x8] sm:$0xff]
        %v304 = vld [vmem:[%s241 + $0x10] sm:$0xff]
        %v305 = vld [vmem:[%s241 + $0x18] sm:$0xff]
        %v306 = vld [vmem:[%s241 + $0x20] sm:$0xff]
        %v307 = vld [vmem:[%s241 + $0x28] sm:$0xff]
        %vm308 = vcmp.gt.f32.partialorder %v307, 0.0
        %v309 = vld [vmem:[%s250] sm:$0xff]
        %v310 = vld [vmem:[%s250 + $0x8] sm:$0xff]
        %v311 = vld [vmem:[%s250 + $0x10] sm:$0xff]
        %v312 = vld [vmem:[%s250 + $0x18] sm:$0xff]
        %v313 = vld [vmem:[%s250 + $0x20] sm:$0xff]
        %v314 = vld [vmem:[%s250 + $0x28] sm:$0xff]
        %v315 = vld [vmem:[%s250 + $0x30] sm:$0xff]
        %v316 = vld [vmem:[%s250 + $0x38] sm:$0xff]
        %v317 = vld [vmem:[%s259] sm:$0xff]
        %v318 = vld [vmem:[%s259 + $0x8] sm:$0xff]
        %v319 = vld [vmem:[%s259 + $0x10] sm:$0xff]
        %v320 = vld [vmem:[%s259 + $0x18] sm:$0xff]
        %v321 = vld [vmem:[%s259 + $0x20] sm:$0xff]
        %s322 = sld [smem:[#allocation2]]
        %s323 = sld [smem:[#allocation2 + $0x1]]
        %s324 = sld [smem:[#allocation2 + $0x2]]
        %s325 = sld [smem:[#allocation2 + $0x3]]
        %s326 = sld [smem:[#allocation2 + $0x4]]
        %s327 = sld [smem:[#allocation2 + $0x5]]
        %s328 = sld [smem:[#allocation2 + $0x6]]
        %v329 = vstv %s322
        %v330 = vsub.f32 %v302, %v329
        %v331 = vstv %s323
        %v332 = vsub.f32 %v303, %v331
        %v333 = vstv %s324
        %v334 = vsub.f32 %v333, %v302
        %v335 = vstv %s325
        %v336 = vsub.f32 %v335, %v303
        %v337 = vadd.f32 %v330, %v334
        %v338 = vadd.f32 %v332, %v336
        %v339 = vmul.f32 %v337, %v338
        %v340 = vmin.f32 %v330, %v332
        %v341 = vmin.f32 %v334, %v336
        %v342 = vmin.f32 %v340, %v341
        %v343 = vmax.f32 %v330, %v332
        %v344 = vmax.f32 %v334, %v336
        %v345 = vmax.f32 %v343, %v344
        %vm346 = vcmp.gt.f32.partialorder %v345, %v304
        %vm347 = vcmp.le.f32.partialorder %v345, %v305
        %vm348 = vmand %vm346, %vm347
        %vm349 = vcmp.gt.f32.partialorder %v342, 0.0
        %v350 = vstv %s327
        %v351 = vsub.f32 %v302, %v350
        %v352 = vand.u32 2147483647, %v351
        %v353 = vstv %s328
        %v354 = vsub.f32 %v303, %v353
        %v355 = vand.u32 2147483647, %v354
        %v356 = vmax.f32 %v352, %v355
        %vm357 = vmand %vm348, %vm349
        %vm358 = vcmp.lt.f32.partialorder %v356, %v306
        %vm359 = vmand %vm357, %vm358
        %v360 = vsel %vm359, %v339, 9999999.0
        %vm361 = vcmp.lt.f32.partialorder %v360, 9999999.0
        %v362 = vsel %vm361, %v360, 9999999.0
        %v363 = vsel %vm361, %v330, 0.0
        %v364 = vsel %vm361, %v332, 0.0
        %v365 = vsel %vm361, %v334, 0.0
        %v366 = vsel %vm361, %v336, 0.0
        %v367 = vstv %s326
        %v368 = vsel %vm361, %v367, 0.0
        %s369 = sld [smem:[#allocation2 + $0x8]]
        %s370 = sld [smem:[#allocation2 + $0x9]]
        %s371 = sld [smem:[#allocation2 + $0xa]]
        %s372 = sld [smem:[#allocation2 + $0xb]]
        %s373 = sld [smem:[#allocation2 + $0xc]]
        %s374 = sld [smem:[#allocation2 + $0xd]]
        %s375 = sld [smem:[#allocation2 + $0xe]]
        %v376 = vstv %s369
        %v377 = vsub.f32 %v302, %v376
        %v378 = vstv %s370
        %v379 = vsub.f32 %v303, %v378
        %v380 = vstv %s371
        %v381 = vsub.f32 %v380, %v302
        %v382 = vstv %s372
        %v383 = vsub.f32 %v382, %v303
        %v384 = vadd.f32 %v377, %v381
        %v385 = vadd.f32 %v379, %v383
        %v386 = vmul.f32 %v384, %v385
        %v387 = vmin.f32 %v377, %v379
        %v388 = vmin.f32 %v381, %v383
        %v389 = vmin.f32 %v387, %v388
        %v390 = vmax.f32 %v377, %v379
        %v391 = vmax.f32 %v381, %v383
        %v392 = vmax.f32 %v390, %v391
        %vm393 = vcmp.gt.f32.partialorder %v392, %v304
        %vm394 = vcmp.le.f32.partialorder %v392, %v305
        %vm395 = vmand %vm393, %vm394
        %vm396 = vcmp.gt.f32.partialorder %v389, 0.0
        %v397 = vstv %s374
        %v398 = vsub.f32 %v302, %v397
        %v399 = vand.u32 2147483647, %v398
        %v400 = vstv %s375
        %v401 = vsub.f32 %v303, %v400
        %v402 = vand.u32 2147483647, %v401
        %v403 = vmax.f32 %v399, %v402
        %vm404 = vmand %vm395, %vm396
        %vm405 = vcmp.lt.f32.partialorder %v403, %v306
        %vm406 = vmand %vm404, %vm405
        %v407 = vsel %vm406, %v386, 9999999.0
        %vm408 = vcmp.lt.f32.partialorder %v407, %v362
        %v409 = vsel %vm408, %v407, %v362
        %v410 = vsel %vm408, %v377, %v363
        %v411 = vsel %vm408, %v379, %v364
        %v412 = vsel %vm408, %v381, %v365
        %v413 = vsel %vm408, %v383, %v366
        %v414 = vstv %s373
        %v415 = vsel %vm408, %v414, %v368
        %vm416 = vmor %vm359, %vm406
        %s417 = sld [smem:[#allocation2 + $0x10]]
        %s418 = sld [smem:[#allocation2 + $0x11]]
        %s419 = sld [smem:[#allocation2 + $0x12]]
        %s420 = sld [smem:[#allocation2 + $0x13]]
        %s421 = sld [smem:[#allocation2 + $0x14]]
        %s422 = sld [smem:[#allocation2 + $0x15]]
        %s423 = sld [smem:[#allocation2 + $0x16]]
        %v424 = vstv %s417
        %v425 = vsub.f32 %v302, %v424
        %v426 = vstv %s418
        %v427 = vsub.f32 %v303, %v426
        %v428 = vstv %s419
        %v429 = vsub.f32 %v428, %v302
        %v430 = vstv %s420
        %v431 = vsub.f32 %v430, %v303
        %v432 = vadd.f32 %v425, %v429
        %v433 = vadd.f32 %v427, %v431
        %v434 = vmul.f32 %v432, %v433
        %v435 = vmin.f32 %v425, %v427
        %v436 = vmin.f32 %v429, %v431
        %v437 = vmin.f32 %v435, %v436
        %v438 = vmax.f32 %v425, %v427
        %v439 = vmax.f32 %v429, %v431
        %v440 = vmax.f32 %v438, %v439
        %vm441 = vcmp.gt.f32.partialorder %v440, %v304
        %vm442 = vcmp.le.f32.partialorder %v440, %v305
        %vm443 = vmand %vm441, %vm442
        %vm444 = vcmp.gt.f32.partialorder %v437, 0.0
        %v445 = vstv %s422
        %v446 = vsub.f32 %v302, %v445
        %v447 = vand.u32 2147483647, %v446
        %v448 = vstv %s423
        %v449 = vsub.f32 %v303, %v448
        %v450 = vand.u32 2147483647, %v449
        %v451 = vmax.f32 %v447, %v450
        %vm452 = vmand %vm443, %vm444
        %vm453 = vcmp.lt.f32.partialorder %v451, %v306
        %vm454 = vmand %vm452, %vm453
        %v455 = vsel %vm454, %v434, 9999999.0
        %vm456 = vcmp.lt.f32.partialorder %v455, %v409
        %v457 = vsel %vm456, %v455, %v409
        %v458 = vsel %vm456, %v425, %v410
        %v459 = vsel %vm456, %v427, %v411
        %v460 = vsel %vm456, %v429, %v412
        %v461 = vsel %vm456, %v431, %v413
        %v462 = vstv %s421
        %v463 = vsel %vm456, %v462, %v415
        %vm464 = vmor %vm416, %vm454
        %s465 = sld [smem:[#allocation2 + $0x18]]
        %s466 = sld [smem:[#allocation2 + $0x19]]
        %s467 = sld [smem:[#allocation2 + $0x1a]]
        %s468 = sld [smem:[#allocation2 + $0x1b]]
        %s469 = sld [smem:[#allocation2 + $0x1c]]
        %s470 = sld [smem:[#allocation2 + $0x1d]]
        %s471 = sld [smem:[#allocation2 + $0x1e]]
        %v472 = vstv %s465
        %v473 = vsub.f32 %v302, %v472
        %v474 = vstv %s466
        %v475 = vsub.f32 %v303, %v474
        %v476 = vstv %s467
        %v477 = vsub.f32 %v476, %v302
        %v478 = vstv %s468
        %v479 = vsub.f32 %v478, %v303
        %v480 = vadd.f32 %v473, %v477
        %v481 = vadd.f32 %v475, %v479
        %v482 = vmul.f32 %v480, %v481
        %v483 = vmin.f32 %v473, %v475
        %v484 = vmin.f32 %v477, %v479
        %v485 = vmin.f32 %v483, %v484
        %v486 = vmax.f32 %v473, %v475
        %v487 = vmax.f32 %v477, %v479
        %v488 = vmax.f32 %v486, %v487
        %vm489 = vcmp.gt.f32.partialorder %v488, %v304
        %vm490 = vcmp.le.f32.partialorder %v488, %v305
        %vm491 = vmand %vm489, %vm490
        %vm492 = vcmp.gt.f32.partialorder %v485, 0.0
        %v493 = vstv %s470
        %v494 = vsub.f32 %v302, %v493
        %v495 = vand.u32 2147483647, %v494
        %v496 = vstv %s471
        %v497 = vsub.f32 %v303, %v496
        %v498 = vand.u32 2147483647, %v497
        %v499 = vmax.f32 %v495, %v498
        %vm500 = vmand %vm491, %vm492
        %vm501 = vcmp.lt.f32.partialorder %v499, %v306
        %vm502 = vmand %vm500, %vm501
        %v503 = vsel %vm502, %v482, 9999999.0
        %vm504 = vcmp.lt.f32.partialorder %v503, %v457
        %v505 = vsel %vm504, %v503, %v457
        %v506 = vsel %vm504, %v473, %v458
        %v507 = vsel %vm504, %v475, %v459
        %v508 = vsel %vm504, %v477, %v460
        %v509 = vsel %vm504, %v479, %v461
        %v510 = vstv %s469
        %v511 = vsel %vm504, %v510, %v463
        %vm512 = vmor %vm464, %vm502
        %s513 = sld [smem:[#allocation2 + $0x20]]
        %s514 = sld [smem:[#allocation2 + $0x21]]
        %s515 = sld [smem:[#allocation2 + $0x22]]
        %s516 = sld [smem:[#allocation2 + $0x23]]
        %s517 = sld [smem:[#allocation2 + $0x24]]
        %s518 = sld [smem:[#allocation2 + $0x25]]
        %s519 = sld [smem:[#allocation2 + $0x26]]
        %v520 = vstv %s513
        %v521 = vsub.f32 %v302, %v520
        %v522 = vstv %s514
        %v523 = vsub.f32 %v303, %v522
        %v524 = vstv %s515
        %v525 = vsub.f32 %v524, %v302
        %v526 = vstv %s516
        %v527 = vsub.f32 %v526, %v303
        %v528 = vadd.f32 %v521, %v525
        %v529 = vadd.f32 %v523, %v527
        %v530 = vmul.f32 %v528, %v529
        %v531 = vmin.f32 %v521, %v523
        %v532 = vmin.f32 %v525, %v527
        %v533 = vmin.f32 %v531, %v532
        %v534 = vmax.f32 %v521, %v523
        %v535 = vmax.f32 %v525, %v527
        %v536 = vmax.f32 %v534, %v535
        %vm537 = vcmp.gt.f32.partialorder %v536, %v304
        %vm538 = vcmp.le.f32.partialorder %v536, %v305
        %vm539 = vmand %vm537, %vm538
        %vm540 = vcmp.gt.f32.partialorder %v533, 0.0
        %v541 = vstv %s518
        %v542 = vsub.f32 %v302, %v541
        %v543 = vand.u32 2147483647, %v542
        %v544 = vstv %s519
        %v545 = vsub.f32 %v303, %v544
        %v546 = vand.u32 2147483647, %v545
        %v547 = vmax.f32 %v543, %v546
        %vm548 = vmand %vm539, %vm540
        %vm549 = vcmp.lt.f32.partialorder %v547, %v306
        %vm550 = vmand %vm548, %vm549
        %v551 = vsel %vm550, %v530, 9999999.0
        %vm552 = vcmp.lt.f32.partialorder %v551, %v505
        %v553 = vsel %vm552, %v551, %v505
        %v554 = vsel %vm552, %v521, %v506
        %v555 = vsel %vm552, %v523, %v507
        %v556 = vsel %vm552, %v525, %v508
        %v557 = vsel %vm552, %v527, %v509
        %v558 = vstv %s517
        %v559 = vsel %vm552, %v558, %v511
        %vm560 = vmor %vm512, %vm550
        %s561 = sld [smem:[#allocation2 + $0x28]]
        %s562 = sld [smem:[#allocation2 + $0x29]]
        %s563 = sld [smem:[#allocation2 + $0x2a]]
        %s564 = sld [smem:[#allocation2 + $0x2b]]
        %s565 = sld [smem:[#allocation2 + $0x2c]]
        %s566 = sld [smem:[#allocation2 + $0x2d]]
        %s567 = sld [smem:[#allocation2 + $0x2e]]
        %v568 = vstv %s561
        %v569 = vsub.f32 %v302, %v568
        %v570 = vstv %s562
        %v571 = vsub.f32 %v303, %v570
        %v572 = vstv %s563
        %v573 = vsub.f32 %v572, %v302
        %v574 = vstv %s564
        %v575 = vsub.f32 %v574, %v303
        %v576 = vadd.f32 %v569, %v573
        %v577 = vadd.f32 %v571, %v575
        %v578 = vmul.f32 %v576, %v577
        %v579 = vmin.f32 %v569, %v571
        %v580 = vmin.f32 %v573, %v575
        %v581 = vmin.f32 %v579, %v580
        %v582 = vmax.f32 %v569, %v571
        %v583 = vmax.f32 %v573, %v575
        %v584 = vmax.f32 %v582, %v583
        %vm585 = vcmp.gt.f32.partialorder %v584, %v304
        %vm586 = vcmp.le.f32.partialorder %v584, %v305
        %vm587 = vmand %vm585, %vm586
        %vm588 = vcmp.gt.f32.partialorder %v581, 0.0
        %v589 = vstv %s566
        %v590 = vsub.f32 %v302, %v589
        %v591 = vand.u32 2147483647, %v590
        %v592 = vstv %s567
        %v593 = vsub.f32 %v303, %v592
        %v594 = vand.u32 2147483647, %v593
        %v595 = vmax.f32 %v591, %v594
        %vm596 = vmand %vm587, %vm588
        %vm597 = vcmp.lt.f32.partialorder %v595, %v306
        %vm598 = vmand %vm596, %vm597
        %v599 = vsel %vm598, %v578, 9999999.0
        %vm600 = vcmp.lt.f32.partialorder %v599, %v553
        %v601 = vsel %vm600, %v599, %v553
        %v602 = vsel %vm600, %v569, %v554
        %v603 = vsel %vm600, %v571, %v555
        %v604 = vsel %vm600, %v573, %v556
        %v605 = vsel %vm600, %v575, %v557
        %v606 = vstv %s565
        %v607 = vsel %vm600, %v606, %v559
        %vm608 = vmor %vm560, %vm598
        %s609 = sld [smem:[#allocation2 + $0x30]]
        %s610 = sld [smem:[#allocation2 + $0x31]]
        %s611 = sld [smem:[#allocation2 + $0x32]]
        %s612 = sld [smem:[#allocation2 + $0x33]]
        %s613 = sld [smem:[#allocation2 + $0x34]]
        %s614 = sld [smem:[#allocation2 + $0x35]]
        %s615 = sld [smem:[#allocation2 + $0x36]]
        %v616 = vstv %s609
        %v617 = vsub.f32 %v302, %v616
        %v618 = vstv %s610
        %v619 = vsub.f32 %v303, %v618
        %v620 = vstv %s611
        %v621 = vsub.f32 %v620, %v302
        %v622 = vstv %s612
        %v623 = vsub.f32 %v622, %v303
        %v624 = vadd.f32 %v617, %v621
        %v625 = vadd.f32 %v619, %v623
        %v626 = vmul.f32 %v624, %v625
        %v627 = vmin.f32 %v617, %v619
        %v628 = vmin.f32 %v621, %v623
        %v629 = vmin.f32 %v627, %v628
        %v630 = vmax.f32 %v617, %v619
        %v631 = vmax.f32 %v621, %v623
        %v632 = vmax.f32 %v630, %v631
        %vm633 = vcmp.gt.f32.partialorder %v632, %v304
        %vm634 = vcmp.le.f32.partialorder %v632, %v305
        %vm635 = vmand %vm633, %vm634
        %vm636 = vcmp.gt.f32.partialorder %v629, 0.0
        %v637 = vstv %s614
        %v638 = vsub.f32 %v302, %v637
        %v639 = vand.u32 2147483647, %v638
        %v640 = vstv %s615
        %v641 = vsub.f32 %v303, %v640
        %v642 = vand.u32 2147483647, %v641
        %v643 = vmax.f32 %v639, %v642
        %vm644 = vmand %vm635, %vm636
        %vm645 = vcmp.lt.f32.partialorder %v643, %v306
        %vm646 = vmand %vm644, %vm645
        %v647 = vsel %vm646, %v626, 9999999.0
        %vm648 = vcmp.lt.f32.partialorder %v647, %v601
        %v649 = vsel %vm648, %v647, %v601
        %v650 = vsel %vm648, %v617, %v602
        %v651 = vsel %vm648, %v619, %v603
        %v652 = vsel %vm648, %v621, %v604
        %v653 = vsel %vm648, %v623, %v605
        %v654 = vstv %s613
        %v655 = vsel %vm648, %v654, %v607
        %vm656 = vmor %vm608, %vm646
        %s657 = sld [smem:[#allocation2 + $0x38]]
        %s658 = sld [smem:[#allocation2 + $0x39]]
        %s659 = sld [smem:[#allocation2 + $0x3a]]
        %s660 = sld [smem:[#allocation2 + $0x3b]]
        %s661 = sld [smem:[#allocation2 + $0x3c]]
        %s662 = sld [smem:[#allocation2 + $0x3d]]
        %s663 = sld [smem:[#allocation2 + $0x3e]]
        %v664 = vstv %s657
        %v665 = vsub.f32 %v302, %v664
        %v666 = vstv %s658
        %v667 = vsub.f32 %v303, %v666
        %v668 = vstv %s659
        %v669 = vsub.f32 %v668, %v302
        %v670 = vstv %s660
        %v671 = vsub.f32 %v670, %v303
        %v672 = vadd.f32 %v665, %v669
        %v673 = vadd.f32 %v667, %v671
        %v674 = vmul.f32 %v672, %v673
        %v675 = vmin.f32 %v665, %v667
        %v676 = vmin.f32 %v669, %v671
        %v677 = vmin.f32 %v675, %v676
        %v678 = vmax.f32 %v665, %v667
        %v679 = vmax.f32 %v669, %v671
        %v680 = vmax.f32 %v678, %v679
        %vm681 = vcmp.gt.f32.partialorder %v680, %v304
        %vm682 = vcmp.le.f32.partialorder %v680, %v305
        %vm683 = vmand %vm681, %vm682
        %vm684 = vcmp.gt.f32.partialorder %v677, 0.0
        %v685 = vstv %s662
        %v686 = vsub.f32 %v302, %v685
        %v687 = vand.u32 2147483647, %v686
        %v688 = vstv %s663
        %v689 = vsub.f32 %v303, %v688
        %v690 = vand.u32 2147483647, %v689
        %v691 = vmax.f32 %v687, %v690
        %vm692 = vmand %vm683, %vm684
        %vm693 = vcmp.lt.f32.partialorder %v691, %v306
        %vm694 = vmand %vm692, %vm693
        %v695 = vsel %vm694, %v674, 9999999.0
        %vm696 = vcmp.lt.f32.partialorder %v695, %v649
        %v697 = vsel %vm696, %v665, %v650
        %v698 = vsel %vm696, %v667, %v651
        %v699 = vsel %vm696, %v669, %v652
        %v700 = vsel %vm696, %v671, %v653
        %v701 = vstv %s661
        %v702 = vsel %vm696, %v701, %v655
        %vm703 = vmor %vm656, %vm694
        %vm704 = vmand %vm703, %vm308
        %v705 = vsel %vm704, 1, 0
        %v706 = vcvt.s32.f32 %v705
        %v707 = vmin.f32 %v697, %v699
        %v708 = vmax.f32 %v697, %v699
        %v709 = vmin.f32 %v698, %v700
        %v710 = vmax.f32 %v698, %v700
        %v711 = vmul.f32 %v707, %v709
        %v712 = vmul.f32 %v708, %v710
        %v713 = vadd.f32 %v712, 1e-09
        %v714 = vrcp.pop %v713
        %v715 = vmul.f32 %v711, %v714
        %v716 = vmax.f32 %v715, 0.0
        %v717 = vrsqrt.pop %v716
        %v718 = vmul.f32 %v716, %v717
        %vm719 = vcmp.eq.f32.partialorder %v716, inf
        %v720 = vsel %vm719, %v716, %v718
        %vm721 = vcmp.eq.f32.partialorder %v716, 0.0
        %v722 = vand.u32 %v716, 2147483648
        %v723 = vsel %vm721, %v722, %v720
        %v724 = vsel %vm703, %v723, -1.0
        %v725 = vsub.f32 1.0, %v309
        %v726 = vsub.f32 1.0, %v310
        %v727 = vsub.f32 1.0, %v311
        %v728 = vsub.f32 1.0, %v312
        %v729 = vsub.f32 1.0, %v313
        %v730 = vsub.f32 1.0, %v314
        %v731 = vsub.f32 1.0, %v315
        %v732 = vsub.f32 1.0, %v316
        %v733 = vmul.f32 %v309, %v309
        %v734 = vmul.f32 %v310, %v310
        %v735 = vmul.f32 %v311, %v311
        %v736 = vmul.f32 %v312, %v312
        %v737 = vmul.f32 %v313, %v313
        %v738 = vmul.f32 %v314, %v314
        %v739 = vmul.f32 %v315, %v315
        %v740 = vmul.f32 %v316, %v316
        %v741 = vmul.f32 %v733, -0.75
        %v742 = vmul.f32 %v734, -0.75
        %v743 = vmul.f32 %v735, -0.75
        %v744 = vmul.f32 %v736, -0.75
        %v745 = vmul.f32 %v737, -0.75
        %v746 = vmul.f32 %v738, -0.75
        %v747 = vmul.f32 %v739, -0.75
        %v748 = vmul.f32 %v740, -0.75
        %v749 = vadd.f32 %v725, 1e-10
        %v750 = vadd.f32 %v726, 1e-10
        %v751 = vadd.f32 %v727, 1e-10
        %v752 = vadd.f32 %v728, 1e-10
        %v753 = vadd.f32 %v729, 1e-10
        %v754 = vadd.f32 %v730, 1e-10
        %v755 = vadd.f32 %v731, 1e-10
        %v756 = vadd.f32 %v732, 1e-10
        %v757 = vlog2.pop %v749
        %v758 = vmul.f32 %v757, 0.6931472
        %v759 = vlog2.pop %v750
        %v760 = vmul.f32 %v759, 0.6931472
        %v761 = vlog2.pop %v751
        %v762 = vmul.f32 %v761, 0.6931472
        %v763 = vlog2.pop %v752
        %v764 = vmul.f32 %v763, 0.6931472
        %v765 = vlog2.pop %v753
        %v766 = vmul.f32 %v765, 0.6931472
        %v767 = vlog2.pop %v754
        %v768 = vmul.f32 %v767, 0.6931472
        %v769 = vlog2.pop %v755
        %v770 = vmul.f32 %v769, 0.6931472
        %v771 = vlog2.pop %v756
        %v772 = vmul.f32 %v771, 0.6931472
        %v773 = vmul.f32 %v741, %v758
        %v774 = vmul.f32 %v742, %v760
        %v775 = vmul.f32 %v743, %v762
        %v776 = vmul.f32 %v744, %v764
        %v777 = vmul.f32 %v745, %v766
        %v778 = vmul.f32 %v746, %v768
        %v779 = vmul.f32 %v747, %v770
        %v780 = vmul.f32 %v748, %v772
        %v781 = vadd.f32 %v773, %v774
        %v782 = vadd.f32 %v781, %v775
        %v783 = vadd.f32 %v782, %v776
        %v784 = vadd.f32 %v783, %v777
        %v785 = vadd.f32 %v784, %v778
        %v786 = vadd.f32 %v785, %v779
        %v787 = vadd.f32 %v786, %v780
        %v788 = vsel %vm703, %v702, 0.0
        %v789 = vcvt.f32.s32.to.zero.pseudo %v788
        %vm790 = vcmp.eq.s32.totalorder %v789, 0
        %vm791 = vcmp.eq.s32.totalorder %v789, 1
        %vm792 = vcmp.eq.s32.totalorder %v789, 2
        %vm793 = vcmp.eq.s32.totalorder %v789, 3
        %vm794 = vcmp.eq.s32.totalorder %v789, 4
        %vm795 = vcmp.eq.s32.totalorder %v789, 5
        %vm796 = vcmp.eq.s32.totalorder %v789, 6
        %vm797 = vcmp.eq.s32.totalorder %v789, 7
        %v798 = vsel %vm790, %v309, 0.0
        %v799 = vsel %vm791, %v310, 0.0
        %v800 = vsel %vm792, %v311, 0.0
        %v801 = vsel %vm793, %v312, 0.0
        %v802 = vsel %vm794, %v313, 0.0
        %v803 = vsel %vm795, %v314, 0.0
        %v804 = vsel %vm796, %v315, 0.0
        %v805 = vsel %vm797, %v316, 0.0
        %v806 = vadd.f32 %v798, %v799
        %v807 = vadd.f32 %v806, %v800
        %v808 = vadd.f32 %v807, %v801
        %v809 = vadd.f32 %v808, %v802
        %v810 = vadd.f32 %v809, %v803
        %v811 = vadd.f32 %v810, %v804
        %v812 = vadd.f32 %v811, %v805
        %v813 = vsub.f32 1.0, %v812
        %v814 = vmul.f32 %v813, -0.25
        %v815 = vmul.f32 %v814, %v813
        %v816 = vadd.f32 %v812, 1e-10
        %v817 = vlog2.pop %v816
        %v818 = vmul.f32 %v817, 0.6931472
        %v819 = vmul.f32 %v815, %v818
        %v820 = vmul.f32 %v812, 0.75
        %v821 = vmul.f32 %v820, %v812
        %v822 = vadd.f32 %v813, 1e-10
        %v823 = vlog2.pop %v822
        %v824 = vmul.f32 %v823, 0.6931472
        %v825 = vmul.f32 %v821, %v824
        %v826 = vadd.f32 %v819, %v825
        %v827 = vadd.f32 %v787, %v826
        %v828 = vmul.f32 %v827, %v307
        %v829 = vmax.f32 %v321, 0.0
        %v830 = vmul.f32 %v321, %v724
        %v831 = vsub.f32 %v829, %v830
        %v832 = vand.u32 2147483647, %v321
        %v833 = vsub.f32 0.0, %v832
        %v834 = vmul.f32 %v833, 1.442695
        %v835 = vpow.pop %v834
        %v836 = vadd.f32 %v835, 1.0
        %v837 = vlog2.pop %v836
        %v838 = vmul.f32 %v837, 0.6931472
        %v839 = vadd.f32 %v831, %v838
        %v840 = vsel %vm704, %v839, 0.0
        %v841 = vsel %vm703, %v697, -1.0
        %v842 = vsel %vm703, %v698, -1.0
        %v843 = vsel %vm703, %v699, -1.0
        %v844 = vsel %vm703, %v700, -1.0
        %v845 = vmax.f32 %v317, %v841
        %v846 = vmax.f32 %v319, %v843
        %v847 = vadd.f32 %v845, %v846
        %v848 = vmax.f32 %v847, 0.0
        %v849 = vmax.f32 %v318, %v842
        %v850 = vmax.f32 %v320, %v844
        %v851 = vadd.f32 %v849, %v850
        %v852 = vmax.f32 %v851, 0.0
        %v853 = vmul.f32 %v848, %v852
        %v854 = vmin.f32 %v317, %v841
        %v855 = vmin.f32 %v319, %v843
        %v856 = vadd.f32 %v854, %v855
        %v857 = vmax.f32 %v856, 0.0
        %v858 = vmin.f32 %v318, %v842
        %v859 = vmin.f32 %v320, %v844
        %v860 = vadd.f32 %v858, %v859
        %v861 = vmax.f32 %v860, 0.0
        %v862 = vmul.f32 %v857, %v861
        %v863 = vadd.f32 %v319, %v317
        %v864 = vadd.f32 %v320, %v318
        %v865 = vmul.f32 %v863, %v864
        %v866 = vadd.f32 %v843, %v841
        %v867 = vadd.f32 %v844, %v842
        %v868 = vmul.f32 %v866, %v867
        %v869 = vadd.f32 %v865, %v868
        %v870 = vsub.f32 %v869, %v862
        %v871 = vadd.f32 %v870, 1e-09
        %v872 = vrcp.pop %v871
        %v873 = vmul.f32 %v862, %v872
        %v874 = vsub.f32 1.0, %v873
        %v875 = vsub.f32 %v853, %v870
        %v876 = vadd.f32 %v853, 1e-09
        %v877 = vrcp.pop %v876
        %v878 = vmul.f32 %v875, %v877
        %v879 = vadd.f32 %v874, %v878
        %v880 = vsel %vm704, %v879, 0.0
        %v881 = vld [vmem:[#allocation10] sm:$0xff]
        %v882 = vld [vmem:[#allocation10 + $0x8] sm:$0xff]
        %v883 = vld [vmem:[#allocation10 + $0x10] sm:$0xff]
        %v884 = vld [vmem:[#allocation10 + $0x18] sm:$0xff]
        %v885 = vadd.f32 %v881, %v828
        %v886 = vadd.f32 %v882, %v840
        %v887 = vadd.f32 %v883, %v880
        %v888 = vadd.f32 %v884, %v706
        %889 = vst [vmem:[#allocation10] sm:$0xff] %v885
        %890 = vst [vmem:[#allocation10 + $0x8] sm:$0xff] %v886
        %891 = vst [vmem:[#allocation10 + $0x10] sm:$0xff] %v887
        %892 = vst [vmem:[#allocation10 + $0x18] sm:$0xff] %v888
        %s893 = scalar_lea.vmem %s250, 64 [#allocation7]
        %v894 = vld [vmem:[%s893] sm:$0xff]
        %v895 = vld [vmem:[%s893 + $0x8] sm:$0xff]
        %v896 = vld [vmem:[%s893 + $0x10] sm:$0xff]
        %v897 = vld [vmem:[%s893 + $0x18] sm:$0xff]
        %v898 = vld [vmem:[%s893 + $0x20] sm:$0xff]
        %v899 = vld [vmem:[%s893 + $0x28] sm:$0xff]
        %v900 = vld [vmem:[%s893 + $0x30] sm:$0xff]
        %v901 = vld [vmem:[%s893 + $0x38] sm:$0xff]
        %s902 = scalar_lea.vmem %s259, 40 [#allocation9]
        %v903 = vld [vmem:[%s902] sm:$0xff]
        %v904 = vld [vmem:[%s902 + $0x8] sm:$0xff]
        %v905 = vld [vmem:[%s902 + $0x10] sm:$0xff]
        %v906 = vld [vmem:[%s902 + $0x18] sm:$0xff]
        %v907 = vld [vmem:[%s902 + $0x20] sm:$0xff]
        %s908 = sld [smem:[#allocation2 + $0x40]]
        %s909 = sld [smem:[#allocation2 + $0x41]]
        %s910 = sld [smem:[#allocation2 + $0x42]]
        %s911 = sld [smem:[#allocation2 + $0x43]]
        %s912 = sld [smem:[#allocation2 + $0x44]]
        %s913 = sld [smem:[#allocation2 + $0x45]]
        %s914 = sld [smem:[#allocation2 + $0x46]]
        %v915 = vstv %s908
        %v916 = vsub.f32 %v302, %v915
        %v917 = vstv %s909
        %v918 = vsub.f32 %v303, %v917
        %v919 = vstv %s910
        %v920 = vsub.f32 %v919, %v302
        %v921 = vstv %s911
        %v922 = vsub.f32 %v921, %v303
        %v923 = vadd.f32 %v916, %v920
        %v924 = vadd.f32 %v918, %v922
        %v925 = vmul.f32 %v923, %v924
        %v926 = vmin.f32 %v916, %v918
        %v927 = vmin.f32 %v920, %v922
        %v928 = vmin.f32 %v926, %v927
        %v929 = vmax.f32 %v916, %v918
        %v930 = vmax.f32 %v920, %v922
        %v931 = vmax.f32 %v929, %v930
        %vm932 = vcmp.gt.f32.partialorder %v931, %v304
        %vm933 = vcmp.le.f32.partialorder %v931, %v305
        %vm934 = vmand %vm932, %vm933
        %vm935 = vcmp.gt.f32.partialorder %v928, 0.0
        %v936 = vstv %s913
        %v937 = vsub.f32 %v302, %v936
        %v938 = vand.u32 2147483647, %v937
        %v939 = vstv %s914
        %v940 = vsub.f32 %v303, %v939
        %v941 = vand.u32 2147483647, %v940
        %v942 = vmax.f32 %v938, %v941
        %vm943 = vmand %vm934, %vm935
        %vm944 = vcmp.lt.f32.partialorder %v942, %v306
        %vm945 = vmand %vm943, %vm944
        %v946 = vsel %vm945, %v925, 9999999.0
        %vm947 = vcmp.lt.f32.partialorder %v946, 9999999.0
        %v948 = vsel %vm947, %v946, 9999999.0
        %v949 = vsel %vm947, %v916, 0.0
        %v950 = vsel %vm947, %v918, 0.0
        %v951 = vsel %vm947, %v920, 0.0
        %v952 = vsel %vm947, %v922, 0.0
        %v953 = vstv %s912
        %v954 = vsel %vm947, %v953, 0.0
        %s955 = sld [smem:[#allocation2 + $0x48]]
        %s956 = sld [smem:[#allocation2 + $0x49]]
        %s957 = sld [smem:[#allocation2 + $0x4a]]
        %s958 = sld [smem:[#allocation2 + $0x4b]]
        %s959 = sld [smem:[#allocation2 + $0x4c]]
        %s960 = sld [smem:[#allocation2 + $0x4d]]
        %s961 = sld [smem:[#allocation2 + $0x4e]]
        %v962 = vstv %s955
        %v963 = vsub.f32 %v302, %v962
        %v964 = vstv %s956
        %v965 = vsub.f32 %v303, %v964
        %v966 = vstv %s957
        %v967 = vsub.f32 %v966, %v302
        %v968 = vstv %s958
        %v969 = vsub.f32 %v968, %v303
        %v970 = vadd.f32 %v963, %v967
        %v971 = vadd.f32 %v965, %v969
        %v972 = vmul.f32 %v970, %v971
        %v973 = vmin.f32 %v963, %v965
        %v974 = vmin.f32 %v967, %v969
        %v975 = vmin.f32 %v973, %v974
        %v976 = vmax.f32 %v963, %v965
        %v977 = vmax.f32 %v967, %v969
        %v978 = vmax.f32 %v976, %v977
        %vm979 = vcmp.gt.f32.partialorder %v978, %v304
        %vm980 = vcmp.le.f32.partialorder %v978, %v305
        %vm981 = vmand %vm979, %vm980
        %vm982 = vcmp.gt.f32.partialorder %v975, 0.0
        %v983 = vstv %s960
        %v984 = vsub.f32 %v302, %v983
        %v985 = vand.u32 2147483647, %v984
        %v986 = vstv %s961
        %v987 = vsub.f32 %v303, %v986
        %v988 = vand.u32 2147483647, %v987
        %v989 = vmax.f32 %v985, %v988
        %vm990 = vmand %vm981, %vm982
        %vm991 = vcmp.lt.f32.partialorder %v989, %v306
        %vm992 = vmand %vm990, %vm991
        %v993 = vsel %vm992, %v972, 9999999.0
        %vm994 = vcmp.lt.f32.partialorder %v993, %v948
        %v995 = vsel %vm994, %v993, %v948
        %v996 = vsel %vm994, %v963, %v949
        %v997 = vsel %vm994, %v965, %v950
        %v998 = vsel %vm994, %v967, %v951
        %v999 = vsel %vm994, %v969, %v952
        %v1000 = vstv %s959
        %v1001 = vsel %vm994, %v1000, %v954
        %vm1002 = vmor %vm945, %vm992
        %s1003 = sld [smem:[#allocation2 + $0x50]]
        %s1004 = sld [smem:[#allocation2 + $0x51]]
        %s1005 = sld [smem:[#allocation2 + $0x52]]
        %s1006 = sld [smem:[#allocation2 + $0x53]]
        %s1007 = sld [smem:[#allocation2 + $0x54]]
        %s1008 = sld [smem:[#allocation2 + $0x55]]
        %s1009 = sld [smem:[#allocation2 + $0x56]]
        %v1010 = vstv %s1003
        %v1011 = vsub.f32 %v302, %v1010
        %v1012 = vstv %s1004
        %v1013 = vsub.f32 %v303, %v1012
        %v1014 = vstv %s1005
        %v1015 = vsub.f32 %v1014, %v302
        %v1016 = vstv %s1006
        %v1017 = vsub.f32 %v1016, %v303
        %v1018 = vadd.f32 %v1011, %v1015
        %v1019 = vadd.f32 %v1013, %v1017
        %v1020 = vmul.f32 %v1018, %v1019
        %v1021 = vmin.f32 %v1011, %v1013
        %v1022 = vmin.f32 %v1015, %v1017
        %v1023 = vmin.f32 %v1021, %v1022
        %v1024 = vmax.f32 %v1011, %v1013
        %v1025 = vmax.f32 %v1015, %v1017
        %v1026 = vmax.f32 %v1024, %v1025
        %vm1027 = vcmp.gt.f32.partialorder %v1026, %v304
        %vm1028 = vcmp.le.f32.partialorder %v1026, %v305
        %vm1029 = vmand %vm1027, %vm1028
        %vm1030 = vcmp.gt.f32.partialorder %v1023, 0.0
        %v1031 = vstv %s1008
        %v1032 = vsub.f32 %v302, %v1031
        %v1033 = vand.u32 2147483647, %v1032
        %v1034 = vstv %s1009
        %v1035 = vsub.f32 %v303, %v1034
        %v1036 = vand.u32 2147483647, %v1035
        %v1037 = vmax.f32 %v1033, %v1036
        %vm1038 = vmand %vm1029, %vm1030
        %vm1039 = vcmp.lt.f32.partialorder %v1037, %v306
        %vm1040 = vmand %vm1038, %vm1039
        %v1041 = vsel %vm1040, %v1020, 9999999.0
        %vm1042 = vcmp.lt.f32.partialorder %v1041, %v995
        %v1043 = vsel %vm1042, %v1041, %v995
        %v1044 = vsel %vm1042, %v1011, %v996
        %v1045 = vsel %vm1042, %v1013, %v997
        %v1046 = vsel %vm1042, %v1015, %v998
        %v1047 = vsel %vm1042, %v1017, %v999
        %v1048 = vstv %s1007
        %v1049 = vsel %vm1042, %v1048, %v1001
        %vm1050 = vmor %vm1002, %vm1040
        %s1051 = sld [smem:[#allocation2 + $0x58]]
        %s1052 = sld [smem:[#allocation2 + $0x59]]
        %s1053 = sld [smem:[#allocation2 + $0x5a]]
        %s1054 = sld [smem:[#allocation2 + $0x5b]]
        %s1055 = sld [smem:[#allocation2 + $0x5c]]
        %s1056 = sld [smem:[#allocation2 + $0x5d]]
        %s1057 = sld [smem:[#allocation2 + $0x5e]]
        %v1058 = vstv %s1051
        %v1059 = vsub.f32 %v302, %v1058
        %v1060 = vstv %s1052
        %v1061 = vsub.f32 %v303, %v1060
        %v1062 = vstv %s1053
        %v1063 = vsub.f32 %v1062, %v302
        %v1064 = vstv %s1054
        %v1065 = vsub.f32 %v1064, %v303
        %v1066 = vadd.f32 %v1059, %v1063
        %v1067 = vadd.f32 %v1061, %v1065
        %v1068 = vmul.f32 %v1066, %v1067
        %v1069 = vmin.f32 %v1059, %v1061
        %v1070 = vmin.f32 %v1063, %v1065
        %v1071 = vmin.f32 %v1069, %v1070
        %v1072 = vmax.f32 %v1059, %v1061
        %v1073 = vmax.f32 %v1063, %v1065
        %v1074 = vmax.f32 %v1072, %v1073
        %vm1075 = vcmp.gt.f32.partialorder %v1074, %v304
        %vm1076 = vcmp.le.f32.partialorder %v1074, %v305
        %vm1077 = vmand %vm1075, %vm1076
        %vm1078 = vcmp.gt.f32.partialorder %v1071, 0.0
        %v1079 = vstv %s1056
        %v1080 = vsub.f32 %v302, %v1079
        %v1081 = vand.u32 2147483647, %v1080
        %v1082 = vstv %s1057
        %v1083 = vsub.f32 %v303, %v1082
        %v1084 = vand.u32 2147483647, %v1083
        %v1085 = vmax.f32 %v1081, %v1084
        %vm1086 = vmand %vm1077, %vm1078
        %vm1087 = vcmp.lt.f32.partialorder %v1085, %v306
        %vm1088 = vmand %vm1086, %vm1087
        %v1089 = vsel %vm1088, %v1068, 9999999.0
        %vm1090 = vcmp.lt.f32.partialorder %v1089, %v1043
        %v1091 = vsel %vm1090, %v1089, %v1043
        %v1092 = vsel %vm1090, %v1059, %v1044
        %v1093 = vsel %vm1090, %v1061, %v1045
        %v1094 = vsel %vm1090, %v1063, %v1046
        %v1095 = vsel %vm1090, %v1065, %v1047
        %v1096 = vstv %s1055
        %v1097 = vsel %vm1090, %v1096, %v1049
        %vm1098 = vmor %vm1050, %vm1088
        %s1099 = sld [smem:[#allocation2 + $0x60]]
        %s1100 = sld [smem:[#allocation2 + $0x61]]
        %s1101 = sld [smem:[#allocation2 + $0x62]]
        %s1102 = sld [smem:[#allocation2 + $0x63]]
        %s1103 = sld [smem:[#allocation2 + $0x64]]
        %s1104 = sld [smem:[#allocation2 + $0x65]]
        %s1105 = sld [smem:[#allocation2 + $0x66]]
        %v1106 = vstv %s1099
        %v1107 = vsub.f32 %v302, %v1106
        %v1108 = vstv %s1100
        %v1109 = vsub.f32 %v303, %v1108
        %v1110 = vstv %s1101
        %v1111 = vsub.f32 %v1110, %v302
        %v1112 = vstv %s1102
        %v1113 = vsub.f32 %v1112, %v303
        %v1114 = vadd.f32 %v1107, %v1111
        %v1115 = vadd.f32 %v1109, %v1113
        %v1116 = vmul.f32 %v1114, %v1115
        %v1117 = vmin.f32 %v1107, %v1109
        %v1118 = vmin.f32 %v1111, %v1113
        %v1119 = vmin.f32 %v1117, %v1118
        %v1120 = vmax.f32 %v1107, %v1109
        %v1121 = vmax.f32 %v1111, %v1113
        %v1122 = vmax.f32 %v1120, %v1121
        %vm1123 = vcmp.gt.f32.partialorder %v1122, %v304
        %vm1124 = vcmp.le.f32.partialorder %v1122, %v305
        %vm1125 = vmand %vm1123, %vm1124
        %vm1126 = vcmp.gt.f32.partialorder %v1119, 0.0
        %v1127 = vstv %s1104
        %v1128 = vsub.f32 %v302, %v1127
        %v1129 = vand.u32 2147483647, %v1128
        %v1130 = vstv %s1105
        %v1131 = vsub.f32 %v303, %v1130
        %v1132 = vand.u32 2147483647, %v1131
        %v1133 = vmax.f32 %v1129, %v1132
        %vm1134 = vmand %vm1125, %vm1126
        %vm1135 = vcmp.lt.f32.partialorder %v1133, %v306
        %vm1136 = vmand %vm1134, %vm1135
        %v1137 = vsel %vm1136, %v1116, 9999999.0
        %vm1138 = vcmp.lt.f32.partialorder %v1137, %v1091
        %v1139 = vsel %vm1138, %v1137, %v1091
        %v1140 = vsel %vm1138, %v1107, %v1092
        %v1141 = vsel %vm1138, %v1109, %v1093
        %v1142 = vsel %vm1138, %v1111, %v1094
        %v1143 = vsel %vm1138, %v1113, %v1095
        %v1144 = vstv %s1103
        %v1145 = vsel %vm1138, %v1144, %v1097
        %vm1146 = vmor %vm1098, %vm1136
        %s1147 = sld [smem:[#allocation2 + $0x68]]
        %s1148 = sld [smem:[#allocation2 + $0x69]]
        %s1149 = sld [smem:[#allocation2 + $0x6a]]
        %s1150 = sld [smem:[#allocation2 + $0x6b]]
        %s1151 = sld [smem:[#allocation2 + $0x6c]]
        %s1152 = sld [smem:[#allocation2 + $0x6d]]
        %s1153 = sld [smem:[#allocation2 + $0x6e]]
        %v1154 = vstv %s1147
        %v1155 = vsub.f32 %v302, %v1154
        %v1156 = vstv %s1148
        %v1157 = vsub.f32 %v303, %v1156
        %v1158 = vstv %s1149
        %v1159 = vsub.f32 %v1158, %v302
        %v1160 = vstv %s1150
        %v1161 = vsub.f32 %v1160, %v303
        %v1162 = vadd.f32 %v1155, %v1159
        %v1163 = vadd.f32 %v1157, %v1161
        %v1164 = vmul.f32 %v1162, %v1163
        %v1165 = vmin.f32 %v1155, %v1157
        %v1166 = vmin.f32 %v1159, %v1161
        %v1167 = vmin.f32 %v1165, %v1166
        %v1168 = vmax.f32 %v1155, %v1157
        %v1169 = vmax.f32 %v1159, %v1161
        %v1170 = vmax.f32 %v1168, %v1169
        %vm1171 = vcmp.gt.f32.partialorder %v1170, %v304
        %vm1172 = vcmp.le.f32.partialorder %v1170, %v305
        %vm1173 = vmand %vm1171, %vm1172
        %vm1174 = vcmp.gt.f32.partialorder %v1167, 0.0
        %v1175 = vstv %s1152
        %v1176 = vsub.f32 %v302, %v1175
        %v1177 = vand.u32 2147483647, %v1176
        %v1178 = vstv %s1153
        %v1179 = vsub.f32 %v303, %v1178
        %v1180 = vand.u32 2147483647, %v1179
        %v1181 = vmax.f32 %v1177, %v1180
        %vm1182 = vmand %vm1173, %vm1174
        %vm1183 = vcmp.lt.f32.partialorder %v1181, %v306
        %vm1184 = vmand %vm1182, %vm1183
        %v1185 = vsel %vm1184, %v1164, 9999999.0
        %vm1186 = vcmp.lt.f32.partialorder %v1185, %v1139
        %v1187 = vsel %vm1186, %v1185, %v1139
        %v1188 = vsel %vm1186, %v1155, %v1140
        %v1189 = vsel %vm1186, %v1157, %v1141
        %v1190 = vsel %vm1186, %v1159, %v1142
        %v1191 = vsel %vm1186, %v1161, %v1143
        %v1192 = vstv %s1151
        %v1193 = vsel %vm1186, %v1192, %v1145
        %vm1194 = vmor %vm1146, %vm1184
        %s1195 = sld [smem:[#allocation2 + $0x70]]
        %s1196 = sld [smem:[#allocation2 + $0x71]]
        %s1197 = sld [smem:[#allocation2 + $0x72]]
        %s1198 = sld [smem:[#allocation2 + $0x73]]
        %s1199 = sld [smem:[#allocation2 + $0x74]]
        %s1200 = sld [smem:[#allocation2 + $0x75]]
        %s1201 = sld [smem:[#allocation2 + $0x76]]
        %v1202 = vstv %s1195
        %v1203 = vsub.f32 %v302, %v1202
        %v1204 = vstv %s1196
        %v1205 = vsub.f32 %v303, %v1204
        %v1206 = vstv %s1197
        %v1207 = vsub.f32 %v1206, %v302
        %v1208 = vstv %s1198
        %v1209 = vsub.f32 %v1208, %v303
        %v1210 = vadd.f32 %v1203, %v1207
        %v1211 = vadd.f32 %v1205, %v1209
        %v1212 = vmul.f32 %v1210, %v1211
        %v1213 = vmin.f32 %v1203, %v1205
        %v1214 = vmin.f32 %v1207, %v1209
        %v1215 = vmin.f32 %v1213, %v1214
        %v1216 = vmax.f32 %v1203, %v1205
        %v1217 = vmax.f32 %v1207, %v1209
        %v1218 = vmax.f32 %v1216, %v1217
        %vm1219 = vcmp.gt.f32.partialorder %v1218, %v304
        %vm1220 = vcmp.le.f32.partialorder %v1218, %v305
        %vm1221 = vmand %vm1219, %vm1220
        %vm1222 = vcmp.gt.f32.partialorder %v1215, 0.0
        %v1223 = vstv %s1200
        %v1224 = vsub.f32 %v302, %v1223
        %v1225 = vand.u32 2147483647, %v1224
        %v1226 = vstv %s1201
        %v1227 = vsub.f32 %v303, %v1226
        %v1228 = vand.u32 2147483647, %v1227
        %v1229 = vmax.f32 %v1225, %v1228
        %vm1230 = vmand %vm1221, %vm1222
        %vm1231 = vcmp.lt.f32.partialorder %v1229, %v306
        %vm1232 = vmand %vm1230, %vm1231
        %v1233 = vsel %vm1232, %v1212, 9999999.0
        %vm1234 = vcmp.lt.f32.partialorder %v1233, %v1187
        %v1235 = vsel %vm1234, %v1233, %v1187
        %v1236 = vsel %vm1234, %v1203, %v1188
        %v1237 = vsel %vm1234, %v1205, %v1189
        %v1238 = vsel %vm1234, %v1207, %v1190
        %v1239 = vsel %vm1234, %v1209, %v1191
        %v1240 = vstv %s1199
        %v1241 = vsel %vm1234, %v1240, %v1193
        %vm1242 = vmor %vm1194, %vm1232
        %s1243 = sld [smem:[#allocation2 + $0x78]]
        %s1244 = sld [smem:[#allocation2 + $0x79]]
        %s1245 = sld [smem:[#allocation2 + $0x7a]]
        %s1246 = sld [smem:[#allocation2 + $0x7b]]
        %s1247 = sld [smem:[#allocation2 + $0x7c]]
        %s1248 = sld [smem:[#allocation2 + $0x7d]]
        %s1249 = sld [smem:[#allocation2 + $0x7e]]
        %v1250 = vstv %s1243
        %v1251 = vsub.f32 %v302, %v1250
        %v1252 = vstv %s1244
        %v1253 = vsub.f32 %v303, %v1252
        %v1254 = vstv %s1245
        %v1255 = vsub.f32 %v1254, %v302
        %v1256 = vstv %s1246
        %v1257 = vsub.f32 %v1256, %v303
        %v1258 = vadd.f32 %v1251, %v1255
        %v1259 = vadd.f32 %v1253, %v1257
        %v1260 = vmul.f32 %v1258, %v1259
        %v1261 = vmin.f32 %v1251, %v1253
        %v1262 = vmin.f32 %v1255, %v1257
        %v1263 = vmin.f32 %v1261, %v1262
        %v1264 = vmax.f32 %v1251, %v1253
        %v1265 = vmax.f32 %v1255, %v1257
        %v1266 = vmax.f32 %v1264, %v1265
        %vm1267 = vcmp.gt.f32.partialorder %v1266, %v304
        %vm1268 = vcmp.le.f32.partialorder %v1266, %v305
        %vm1269 = vmand %vm1267, %vm1268
        %vm1270 = vcmp.gt.f32.partialorder %v1263, 0.0
        %v1271 = vstv %s1248
        %v1272 = vsub.f32 %v302, %v1271
        %v1273 = vand.u32 2147483647, %v1272
        %v1274 = vstv %s1249
        %v1275 = vsub.f32 %v303, %v1274
        %v1276 = vand.u32 2147483647, %v1275
        %v1277 = vmax.f32 %v1273, %v1276
        %vm1278 = vmand %vm1269, %vm1270
        %vm1279 = vcmp.lt.f32.partialorder %v1277, %v306
        %vm1280 = vmand %vm1278, %vm1279
        %v1281 = vsel %vm1280, %v1260, 9999999.0
        %vm1282 = vcmp.lt.f32.partialorder %v1281, %v1235
        %v1283 = vsel %vm1282, %v1251, %v1236
        %v1284 = vsel %vm1282, %v1253, %v1237
        %v1285 = vsel %vm1282, %v1255, %v1238
        %v1286 = vsel %vm1282, %v1257, %v1239
        %v1287 = vstv %s1247
        %v1288 = vsel %vm1282, %v1287, %v1241
        %vm1289 = vmor %vm1242, %vm1280
        %vm1290 = vmand %vm1289, %vm308
        %v1291 = vsel %vm1290, 1, 0
        %v1292 = vcvt.s32.f32 %v1291
        %v1293 = vmin.f32 %v1283, %v1285
        %v1294 = vmax.f32 %v1283, %v1285
        %v1295 = vmin.f32 %v1284, %v1286
        %v1296 = vmax.f32 %v1284, %v1286
        %v1297 = vmul.f32 %v1293, %v1295
        %v1298 = vmul.f32 %v1294, %v1296
        %v1299 = vadd.f32 %v1298, 1e-09
        %v1300 = vrcp.pop %v1299
        %v1301 = vmul.f32 %v1297, %v1300
        %v1302 = vmax.f32 %v1301, 0.0
        %v1303 = vrsqrt.pop %v1302
        %v1304 = vmul.f32 %v1302, %v1303
        %vm1305 = vcmp.eq.f32.partialorder %v1302, inf
        %v1306 = vsel %vm1305, %v1302, %v1304
        %vm1307 = vcmp.eq.f32.partialorder %v1302, 0.0
        %v1308 = vand.u32 %v1302, 2147483648
        %v1309 = vsel %vm1307, %v1308, %v1306
        %v1310 = vsel %vm1289, %v1309, -1.0
        %v1311 = vsub.f32 1.0, %v894
        %v1312 = vsub.f32 1.0, %v895
        %v1313 = vsub.f32 1.0, %v896
        %v1314 = vsub.f32 1.0, %v897
        %v1315 = vsub.f32 1.0, %v898
        %v1316 = vsub.f32 1.0, %v899
        %v1317 = vsub.f32 1.0, %v900
        %v1318 = vsub.f32 1.0, %v901
        %v1319 = vmul.f32 %v894, %v894
        %v1320 = vmul.f32 %v895, %v895
        %v1321 = vmul.f32 %v896, %v896
        %v1322 = vmul.f32 %v897, %v897
        %v1323 = vmul.f32 %v898, %v898
        %v1324 = vmul.f32 %v899, %v899
        %v1325 = vmul.f32 %v900, %v900
        %v1326 = vmul.f32 %v901, %v901
        %v1327 = vmul.f32 %v1319, -0.75
        %v1328 = vmul.f32 %v1320, -0.75
        %v1329 = vmul.f32 %v1321, -0.75
        %v1330 = vmul.f32 %v1322, -0.75
        %v1331 = vmul.f32 %v1323, -0.75
        %v1332 = vmul.f32 %v1324, -0.75
        %v1333 = vmul.f32 %v1325, -0.75
        %v1334 = vmul.f32 %v1326, -0.75
        %v1335 = vadd.f32 %v1311, 1e-10
        %v1336 = vadd.f32 %v1312, 1e-10
        %v1337 = vadd.f32 %v1313, 1e-10
        %v1338 = vadd.f32 %v1314, 1e-10
        %v1339 = vadd.f32 %v1315, 1e-10
        %v1340 = vadd.f32 %v1316, 1e-10
        %v1341 = vadd.f32 %v1317, 1e-10
        %v1342 = vadd.f32 %v1318, 1e-10
        %v1343 = vlog2.pop %v1335
        %v1344 = vmul.f32 %v1343, 0.6931472
        %v1345 = vlog2.pop %v1336
        %v1346 = vmul.f32 %v1345, 0.6931472
        %v1347 = vlog2.pop %v1337
        %v1348 = vmul.f32 %v1347, 0.6931472
        %v1349 = vlog2.pop %v1338
        %v1350 = vmul.f32 %v1349, 0.6931472
        %v1351 = vlog2.pop %v1339
        %v1352 = vmul.f32 %v1351, 0.6931472
        %v1353 = vlog2.pop %v1340
        %v1354 = vmul.f32 %v1353, 0.6931472
        %v1355 = vlog2.pop %v1341
        %v1356 = vmul.f32 %v1355, 0.6931472
        %v1357 = vlog2.pop %v1342
        %v1358 = vmul.f32 %v1357, 0.6931472
        %v1359 = vmul.f32 %v1327, %v1344
        %v1360 = vmul.f32 %v1328, %v1346
        %v1361 = vmul.f32 %v1329, %v1348
        %v1362 = vmul.f32 %v1330, %v1350
        %v1363 = vmul.f32 %v1331, %v1352
        %v1364 = vmul.f32 %v1332, %v1354
        %v1365 = vmul.f32 %v1333, %v1356
        %v1366 = vmul.f32 %v1334, %v1358
        %v1367 = vadd.f32 %v1359, %v1360
        %v1368 = vadd.f32 %v1367, %v1361
        %v1369 = vadd.f32 %v1368, %v1362
        %v1370 = vadd.f32 %v1369, %v1363
        %v1371 = vadd.f32 %v1370, %v1364
        %v1372 = vadd.f32 %v1371, %v1365
        %v1373 = vadd.f32 %v1372, %v1366
        %v1374 = vsel %vm1289, %v1288, 0.0
        %v1375 = vcvt.f32.s32.to.zero.pseudo %v1374
        %vm1376 = vcmp.eq.s32.totalorder %v1375, 0
        %vm1377 = vcmp.eq.s32.totalorder %v1375, 1
        %vm1378 = vcmp.eq.s32.totalorder %v1375, 2
        %vm1379 = vcmp.eq.s32.totalorder %v1375, 3
        %vm1380 = vcmp.eq.s32.totalorder %v1375, 4
        %vm1381 = vcmp.eq.s32.totalorder %v1375, 5
        %vm1382 = vcmp.eq.s32.totalorder %v1375, 6
        %vm1383 = vcmp.eq.s32.totalorder %v1375, 7
        %v1384 = vsel %vm1376, %v894, 0.0
        %v1385 = vsel %vm1377, %v895, 0.0
        %v1386 = vsel %vm1378, %v896, 0.0
        %v1387 = vsel %vm1379, %v897, 0.0
        %v1388 = vsel %vm1380, %v898, 0.0
        %v1389 = vsel %vm1381, %v899, 0.0
        %v1390 = vsel %vm1382, %v900, 0.0
        %v1391 = vsel %vm1383, %v901, 0.0
        %v1392 = vadd.f32 %v1384, %v1385
        %v1393 = vadd.f32 %v1392, %v1386
        %v1394 = vadd.f32 %v1393, %v1387
        %v1395 = vadd.f32 %v1394, %v1388
        %v1396 = vadd.f32 %v1395, %v1389
        %v1397 = vadd.f32 %v1396, %v1390
        %v1398 = vadd.f32 %v1397, %v1391
        %v1399 = vsub.f32 1.0, %v1398
        %v1400 = vmul.f32 %v1399, -0.25
        %v1401 = vmul.f32 %v1400, %v1399
        %v1402 = vadd.f32 %v1398, 1e-10
        %v1403 = vlog2.pop %v1402
        %v1404 = vmul.f32 %v1403, 0.6931472
        %v1405 = vmul.f32 %v1401, %v1404
        %v1406 = vmul.f32 %v1398, 0.75
        %v1407 = vmul.f32 %v1406, %v1398
        %v1408 = vadd.f32 %v1399, 1e-10
        %v1409 = vlog2.pop %v1408
        %v1410 = vmul.f32 %v1409, 0.6931472
        %v1411 = vmul.f32 %v1407, %v1410
        %v1412 = vadd.f32 %v1405, %v1411
        %v1413 = vadd.f32 %v1373, %v1412
        %v1414 = vmul.f32 %v1413, %v307
        %v1415 = vmax.f32 %v907, 0.0
        %v1416 = vmul.f32 %v907, %v1310
        %v1417 = vsub.f32 %v1415, %v1416
        %v1418 = vand.u32 2147483647, %v907
        %v1419 = vsub.f32 0.0, %v1418
        %v1420 = vmul.f32 %v1419, 1.442695
        %v1421 = vpow.pop %v1420
        %v1422 = vadd.f32 %v1421, 1.0
        %v1423 = vlog2.pop %v1422
        %v1424 = vmul.f32 %v1423, 0.6931472
        %v1425 = vadd.f32 %v1417, %v1424
        %v1426 = vsel %vm1290, %v1425, 0.0
        %v1427 = vsel %vm1289, %v1283, -1.0
        %v1428 = vsel %vm1289, %v1284, -1.0
        %v1429 = vsel %vm1289, %v1285, -1.0
        %v1430 = vsel %vm1289, %v1286, -1.0
        %v1431 = vmax.f32 %v903, %v1427
        %v1432 = vmax.f32 %v905, %v1429
        %v1433 = vadd.f32 %v1431, %v1432
        %v1434 = vmax.f32 %v1433, 0.0
        %v1435 = vmax.f32 %v904, %v1428
        %v1436 = vmax.f32 %v906, %v1430
        %v1437 = vadd.f32 %v1435, %v1436
        %v1438 = vmax.f32 %v1437, 0.0
        %v1439 = vmul.f32 %v1434, %v1438
        %v1440 = vmin.f32 %v903, %v1427
        %v1441 = vmin.f32 %v905, %v1429
        %v1442 = vadd.f32 %v1440, %v1441
        %v1443 = vmax.f32 %v1442, 0.0
        %v1444 = vmin.f32 %v904, %v1428
        %v1445 = vmin.f32 %v906, %v1430
        %v1446 = vadd.f32 %v1444, %v1445
        %v1447 = vmax.f32 %v1446, 0.0
        %v1448 = vmul.f32 %v1443, %v1447
        %v1449 = vadd.f32 %v905, %v903
        %v1450 = vadd.f32 %v906, %v904
        %v1451 = vmul.f32 %v1449, %v1450
        %v1452 = vadd.f32 %v1429, %v1427
        %v1453 = vadd.f32 %v1430, %v1428
        %v1454 = vmul.f32 %v1452, %v1453
        %v1455 = vadd.f32 %v1451, %v1454
        %v1456 = vsub.f32 %v1455, %v1448
        %v1457 = vadd.f32 %v1456, 1e-09
        %v1458 = vrcp.pop %v1457
        %v1459 = vmul.f32 %v1448, %v1458
        %v1460 = vsub.f32 1.0, %v1459
        %v1461 = vsub.f32 %v1439, %v1456
        %v1462 = vadd.f32 %v1439, 1e-09
        %v1463 = vrcp.pop %v1462
        %v1464 = vmul.f32 %v1461, %v1463
        %v1465 = vadd.f32 %v1460, %v1464
        %v1466 = vsel %vm1290, %v1465, 0.0
        %s1467 = scalar_lea.vmem [#allocation10], 32
        %v1468 = vld [vmem:[%s1467] sm:$0xff]
        %v1469 = vld [vmem:[%s1467 + $0x8] sm:$0xff]
        %v1470 = vld [vmem:[%s1467 + $0x10] sm:$0xff]
        %v1471 = vld [vmem:[%s1467 + $0x18] sm:$0xff]
        %v1472 = vadd.f32 %v1468, %v1414
        %v1473 = vadd.f32 %v1469, %v1426
        %v1474 = vadd.f32 %v1470, %v1466
        %v1475 = vadd.f32 %v1471, %v1292
        %1476 = vst [vmem:[%s1467] sm:$0xff] %v1472
        %1477 = vst [vmem:[%s1467 + $0x8] sm:$0xff] %v1473
        %1478 = vst [vmem:[%s1467 + $0x10] sm:$0xff] %v1474
        %1479 = vst [vmem:[%s1467 + $0x18] sm:$0xff] %v1475
        // Predicated region
        $region57: #{tpu_custom_call.1} parent=35 // pred_check
          %p1480 = pneg %p135
        $region58: #{tpu_custom_call.1} parent=35 // pred_check_branch
          %1482 = sbr.rel (%p1480) target = $region60
        $region59: #{tpu_custom_call.1} parent=35 // pred_region
          %s1484 = ssub.s32 1024, 1024
          %1485 = vsyncadd [#allocation4], %s1484
          %s1486 = sshll.u32 [#allocation10], 4
          %s1487 = int_to_ptr.vmem [resolvable:$true] %s1486
          %1492 = dma.vmem_to_hbm [thread:$0]  %s1487, 1024, %s4, [#allocation4], 128, 128, 8
        $region60: #{tpu_custom_call.1} parent=35 // pred_fallthru
          _
        // Predicated region
        $region61: #{tpu_custom_call.1} parent=35 // pred_check
          %p1493 = pneg %p135
        $region62: #{tpu_custom_call.1} parent=35 // pred_check_branch
          %1495 = sbr.rel (%p1493) target = $region64
        $region63: #{tpu_custom_call.1} parent=35 // pred_region
          %1496 = dma.done [#allocation4], 1024
        $region64: #{tpu_custom_call.1} parent=35 // pred_fallthru
          _
      $region36: #{tpu_custom_call.1} parent=5 // pred_fallthru
        _
      %p1497 = scmp.le.s32.totalorder 2, %s18
      // Predicated region
      $region65: #{tpu_custom_call.1} parent=5 // pred_check
        %p1498 = pneg %p1497
      $region66: #{tpu_custom_call.1} parent=5 // pred_check_branch
        %1500 = sbr.rel (%p1498) target = $region68
      $region67: #{tpu_custom_call.1} parent=5 // pred_region
        %s1501 = ssub.s32 %s18, 2
      $region68: #{tpu_custom_call.1} parent=5 // pred_fallthru
        _
    $region6: #{tpu_custom_call.1} parent=1 // loop_footer
      %s22 = sadd.s32 1, %s18
    $region7: #{tpu_custom_call.1} parent=1 // loop_footer_branch
      %17 = sbr.rel target = $region3
    $region8: #{tpu_custom_call.1} parent=1 // loop_exit
      _
    %1502 = vsyncpa [#allocation3], 1
    %s1503 = scalar_lea.sflag [#allocation3], 1
    %1504 = vsyncpa %s1503, 1
    %1505 = vsyncpa [#allocation8], 1
    %s1506 = scalar_lea.sflag [#allocation8], 1
    %1507 = vsyncpa %s1506, 1
    %1508 = vsyncpa [#allocation4], 1
    %s1509 = scalar_lea.sflag [#allocation4], 1
    %1510 = vsyncpa %s1509, 1
    %1511 = vsyncpa [#allocation5], 1
    %s1512 = scalar_lea.sflag [#allocation5], 1
    %1513 = vsyncpa %s1512, 1

</llo_original>
